<compile_context>
chip_gen: v6e
topology: v6e:2x2x1
jax: 0.10.0
libtpu: 0.0.40
codegen_flags: <defaults>
</compile_context>

<pallas_src>
import functools
import math

import jax
import jax.numpy as jnp
import numpy as np
from jax import lax
from jax.experimental import pallas as pl
from jax.experimental.pallas import tpu as pltpu


def _layer_norm_f32(x, w, b, eps=1e-5):
    # torch.var(unbiased=False) == mean((x - mean)^2); rsqrt goes to the EUP slot.
    mean = jnp.mean(x, axis=-1, keepdims=True)
    var = jnp.mean((x - mean) ** 2, axis=-1, keepdims=True)
    return (x - mean) * lax.rsqrt(var + eps) * w + b


def _gelu_exact(x):
    # nn.GELU() default: exact erf-based GELU.
    return 0.5 * x * (1.0 + lax.erf(x * np.float32(1.0 / math.sqrt(2.0))))


def post_norm_block_kernel(
    # inputs
    xfull_ref,
    wq_ref, wk_ref, wv_ref, wo_ref,
    bq_ref, bk_ref, bv_ref, bo_ref,
    ln1w_ref, ln1b_ref,
    w1_ref, b1_ref, w2_ref, b2_ref,
    ln2w_ref, ln2b_ref,
    # output
    out_ref,
    # scratch (persists across the query-tile grid axis)
    k_s, v_s,
    *, num_heads, head_size, q_tile, s_valid, s_pad, kv_chunk,
):
    D = num_heads * head_size
    cdt = k_s.dtype                      # compute (MXU input) dtype, e.g. bf16
    qt = pl.program_id(1)
    n_kv_chunks = s_pad // kv_chunk
    inv_sqrt_hd = np.float32(1.0 / math.sqrt(head_size))

    # ---- build the K / V caches once per batch element (first query tile) --------
    @pl.when(qt == 0)
    def _():
        def project_chunk(off, size):
            xc = xfull_ref[0, pl.ds(off, size), :].astype(cdt)          # (CK, D)
            # K stored transposed (H, hd, CK): lane-dense S for the scores matmul.
            kc = jnp.einsum('sd,hde->hes', xc, wk_ref[...],
                            preferred_element_type=jnp.float32)
            vc = jnp.einsum('sd,hde->hse', xc, wv_ref[...],
                            preferred_element_type=jnp.float32)
            return ((kc + bk_ref[...]).astype(cdt),
                    (vc + bv_ref[...]).astype(cdt))

        if n_kv_chunks == 1:                      # static (trace-time) branch
            kc, vc = project_chunk(0, s_pad)
            k_s[...] = kc
            v_s[...] = vc
        else:
            def body(c, carry):
                off = pl.multiple_of(c * kv_chunk, kv_chunk)
                kc, vc = project_chunk(off, kv_chunk)
                k_s[:, :, pl.ds(off, kv_chunk)] = kc
                v_s[:, pl.ds(off, kv_chunk), :] = vc
                return carry
            lax.fori_loop(0, n_kv_chunks, body, 0)

    # ---- per-query-tile attention (per-head loop; no Q cache) --------------------
    row0 = pl.multiple_of(qt * q_tile, q_tile)
    x_tile_f32 = xfull_ref[0, pl.ds(row0, q_tile), :]                   # (TQ, D) f32
    x_tile = x_tile_f32.astype(cdt)

    if s_valid < s_pad:                           # static: padded keys need masking
        kidx = lax.broadcasted_iota(jnp.int32, (1, s_pad), 1)
        kmask = jnp.where(kidx < s_valid, 0.0, -1e30).astype(jnp.float32)
    else:
        kmask = None

    def head_body(h, acc):
        q_h = jnp.dot(x_tile, wq_ref[h], preferred_element_type=jnp.float32)
        q_h = ((q_h + bq_ref[h]) * inv_sqrt_hd).astype(cdt)             # (TQ, hd)
        s = jnp.dot(q_h, k_s[h], preferred_element_type=jnp.float32)    # (TQ, S)
        if kmask is not None:
            s = s + kmask
        s = s - jnp.max(s, axis=-1, keepdims=True)
        p = jnp.exp(s)
        l = jnp.sum(p, axis=-1, keepdims=True)
        a = jnp.dot(p.astype(cdt), v_s[h], preferred_element_type=jnp.float32)
        a = a * pl.reciprocal(l, approx=True)                           # (TQ, hd)
        # Per-head output projection accumulated in f32 == concat(heads) @ W_o.
        return acc + jnp.dot(a.astype(cdt), wo_ref[h],
                             preferred_element_type=jnp.float32)

    attn_out = lax.fori_loop(0, num_heads, head_body,
                             jnp.zeros((q_tile, D), jnp.float32), unroll=True)
    attn_out = attn_out + bo_ref[...]

    # ---- residual + LayerNorm 1 (f32 statistics) ---------------------------------
    y1 = _layer_norm_f32(x_tile_f32 + attn_out, ln1w_ref[...], ln1b_ref[...])

    # ---- feed-forward: Linear -> GELU -> [Dropout] -> Linear -> [Dropout] --------
    h1 = jnp.dot(y1.astype(cdt), w1_ref[...],
                 preferred_element_type=jnp.float32) + b1_ref[...]
    g = _gelu_exact(h1)
    h2 = jnp.dot(g.astype(cdt), w2_ref[...],
                 preferred_element_type=jnp.float32) + b2_ref[...]

    # ---- residual + LayerNorm 2 ---------------------------------------------------
    y2 = _layer_norm_f32(h2 + y1, ln2w_ref[...], ln2b_ref[...])
    out_ref[0] = y2.astype(out_ref.dtype)


def _pick_q_tile(seq_len):
    if seq_len >= 2048:
        return 256
    if seq_len >= 128:
        return 128
    for t in (64, 32, 16, 8):
        if seq_len >= t:
            return t
    return 8


def _pick_kv_chunk(s_pad):
    # Prefer 128-aligned chunks so dynamic lane-offset stores stay aligned at scale.
    for c in (256, 128, 512, 1024, 64, 32, 16, 8):
        if s_pad % c == 0:
            return c
    return s_pad


def post_norm_attention_block(x, params, *, num_heads, q_tile=None,
                              compute_dtype=jnp.bfloat16,
                              single_buffer_weights=True):
    B, S, D = x.shape
    assert D % num_heads == 0, "embed_dim must be divisible by num_heads"
    hd = D // num_heads
    hidden = params["w1"].shape[1]
    tq = q_tile if q_tile is not None else _pick_q_tile(S)
    assert tq % 8 == 0, "q_tile must be a multiple of 8 (sublane alignment)"
    s_pad = ((S + tq - 1) // tq) * tq
    n_qt = s_pad // tq
    kv_chunk = _pick_kv_chunk(s_pad)
    assert s_pad % kv_chunk == 0
    cdt = compute_dtype
    cdt_size = jnp.dtype(cdt).itemsize
    f32 = jnp.float32

    x_p = x.astype(f32)
    if s_pad != S:
        x_p = jnp.pad(x_p, ((0, 0), (0, s_pad - S), (0, 0)))

    # Head-major weights (H, D, hd) / (H, hd, D); per-head biases; weights in the
    # compute dtype (bf16 MXU inputs, half the DMA/VMEM), f32 biases / LN params.
    def head_major(w):
        return w.reshape(D, num_heads, hd).transpose(1, 0, 2).astype(cdt)

    wq_h = head_major(params["wq"])
    wk_h = head_major(params["wk"])
    wv_h = head_major(params["wv"])
    wo_h = params["wo"].reshape(num_heads, hd, D).astype(cdt)
    bq_h = params["bq"].reshape(num_heads, 1, hd).astype(f32)
    bk_h = params["bk"].reshape(num_heads, hd, 1).astype(f32)   # K stored transposed
    bv_h = params["bv"].reshape(num_heads, 1, hd).astype(f32)
    bo = params["bo"].reshape(1, D).astype(f32)
    ln1w = params["ln1_w"].reshape(1, D).astype(f32)
    ln1b = params["ln1_b"].reshape(1, D).astype(f32)
    w1 = params["w1"].astype(cdt)
    b1 = params["b1"].reshape(1, hidden).astype(f32)
    w2 = params["w2"].astype(cdt)
    b2 = params["b2"].reshape(1, D).astype(f32)
    ln2w = params["ln2_w"].reshape(1, D).astype(f32)
    ln2b = params["ln2_b"].reshape(1, D).astype(f32)

    operands = (x_p, wq_h, wk_h, wv_h, wo_h, bq_h, bk_h, bv_h, bo,
                ln1w, ln1b, w1, b1, w2, b2, ln2w, ln2b)

    kernel = functools.partial(post_norm_block_kernel,
                               num_heads=num_heads, head_size=hd, q_tile=tq,
                               s_valid=S, s_pad=s_pad, kv_chunk=kv_chunk)

    # Advisory cost estimate for the XLA scheduler.
    flops = (2 * B * s_pad * D * (3 * D)          # Q/K/V projections
             + 2 * B * s_pad * s_pad * D * 2      # scores + attn @ V (over all heads)
             + 2 * B * s_pad * D * D              # output projection
             + 2 * B * s_pad * D * hidden * 2)    # MLP
    transcendentals = B * (num_heads * s_pad * s_pad + s_pad * hidden + 4 * s_pad)
    bytes_accessed = int(sum(int(np.prod(a.shape)) * a.dtype.itemsize for a in operands)
                         + B * s_pad * D * 4)
    weight_bytes = int(sum(int(np.prod(a.shape)) * a.dtype.itemsize
                           for a in operands[1:]))

    def run(single_buffer):
        def const_spec(shape):
            nd = len(shape)
            idx = lambda b, t: (0,) * nd
            if single_buffer:
                # Constant-index operands: a single VMEM copy is enough.
                return pl.BlockSpec(shape, idx, pipeline_mode=pl.Buffered(buffer_count=1))
            return pl.BlockSpec(shape, idx)

        in_specs = [
            pl.BlockSpec((1, s_pad, D), lambda b, t: (b, 0, 0)),   # x (full seq, per batch)
            const_spec((num_heads, D, hd)),                        # W_q (head-major)
            const_spec((num_heads, D, hd)),                        # W_k
            const_spec((num_heads, D, hd)),                        # W_v
            const_spec((num_heads, hd, D)),                        # W_o (head-major)
            const_spec((num_heads, 1, hd)),                        # B_q
            const_spec((num_heads, hd, 1)),                        # B_k (transposed)
            const_spec((num_heads, 1, hd)),                        # B_v
            const_spec((1, D)),                                    # B_o
            const_spec((1, D)), const_spec((1, D)),                # LN1 weight / bias
            const_spec((D, hidden)), const_spec((1, hidden)),      # linear1
            const_spec((hidden, D)), const_spec((1, D)),           # linear2
            const_spec((1, D)), const_spec((1, D)),                # LN2 weight / bias
        ]

        w_copies = 1 if single_buffer else 2
        est = (w_copies * weight_bytes
               + 2 * s_pad * D * 4                 # full-seq x block (double-buffered)
               + 2 * tq * D * 4                    # output block
               + 2 * s_pad * D * cdt_size          # K / V caches
               + 8 * tq * max(s_pad, hidden, D) * 4)  # live f32 intermediates margin
        # NOTE: re-derive for v7x (64 MiB physical VMEM); the 96 MiB ceiling targets v6e.
        vmem_limit = int(min(max(est * 3 // 2, 32 * 1024 * 1024), 96 * 1024 * 1024))

        out = pl.pallas_call(
            kernel,
            out_shape=jax.ShapeDtypeStruct((B, s_pad, D), x.dtype),
            grid_spec=pltpu.PrefetchScalarGridSpec(
                num_scalar_prefetch=0,
                grid=(B, n_qt),
                in_specs=in_specs,
                out_specs=pl.BlockSpec((1, tq, D), lambda b, t: (b, t, 0)),
                scratch_shapes=[pltpu.VMEM((num_heads, hd, s_pad), cdt),   # K^T cache
                                pltpu.VMEM((num_heads, s_pad, hd), cdt)],  # V cache
            ),
            compiler_params=pltpu.CompilerParams(
                dimension_semantics=("parallel", "arbitrary"),
                vmem_limit_bytes=vmem_limit),
            cost_estimate=pl.CostEstimate(flops=flops,
                                          transcendentals=transcendentals,
                                          bytes_accessed=bytes_accessed),
        )(*operands)
        return jax.block_until_ready(out)

    if single_buffer_weights and hasattr(pl, "Buffered"):
        try:
            out_p = run(True)
        except Exception:
            # pipeline_mode=Buffered(1) not supported in this runtime: fall back to
            # default double-buffered constant operands (correctness unchanged).
            out_p = run(False)
    else:
        out_p = run(False)

    return out_p if s_pad == S else out_p[:, :S, :]


def reference_jax(x, params, *, num_heads):
    """Pure-JAX f32 reference of the PyTorch forward pass (for validation)."""
    B, S, D = x.shape
    hd = D // num_heads
    q = x @ params["wq"] + params["bq"]
    k = x @ params["wk"] + params["bk"]
    v = x @ params["wv"] + params["bv"]

    def split(t):  # (B,S,D) -> (B,H,S,hd)
        return t.reshape(B, S, num_heads, hd).transpose(0, 2, 1, 3)

    q, k, v = split(q), split(k), split(v)
    s = jnp.einsum("bhqd,bhkd->bhqk", q, k) / np.sqrt(hd)
    p = jax.nn.softmax(s, axis=-1)
    a = jnp.einsum("bhqk,bhkd->bhqd", p, v)
    a = a.transpose(0, 2, 1, 3).reshape(B, S, D)
    attn_out = a @ params["wo"] + params["bo"]

    def ln(t, w, b, eps=1e-5):
        m = jnp.mean(t, axis=-1, keepdims=True)
        var = jnp.mean((t - m) ** 2, axis=-1, keepdims=True)
        return (t - m) / jnp.sqrt(var + eps) * w + b

    y1 = ln(x + attn_out, params["ln1_w"][0], params["ln1_b"][0])
    h1 = y1 @ params["w1"] + params["b1"]
    g = 0.5 * h1 * (1.0 + lax.erf(h1 / np.sqrt(2.0)))
    h2 = g @ params["w2"] + params["b2"]
    return ln(h2 + y1, params["ln2_w"][0], params["ln2_b"][0])


if __name__ == "__main__":
    # Small, module-consistent shapes. The PyTorch module initializes the attention
    # weights to ones / biases to zeros; here the parameters are small random values
    # (forward semantics are parameter-agnostic) so head-splitting and bias handling
    # are actually exercised and the softmax stays numerically well conditioned.
    batch, seq_len, embed_dim, hidden_dim, num_heads = 2, 16, 32, 64, 4
    D, Hd = embed_dim, hidden_dim

    keys = jax.random.split(jax.random.PRNGKey(0), 18)
    r = lambda i, shape, scale: scale * jax.random.normal(keys[i], shape, jnp.float32)

    x = jax.random.normal(keys[0], (batch, seq_len, embed_dim), dtype=jnp.float32)

    params = {
        "wq": r(1, (D, D), 0.1), "wk": r(2, (D, D), 0.1),
        "wv": r(3, (D, D), 0.1), "wo": r(4, (D, D), 0.1),
        "bq": r(5, (1, D), 0.05), "bk": r(6, (1, D), 0.05),
        "bv": r(7, (1, D), 0.05), "bo": r(8, (1, D), 0.05),
        "ln1_w": 1.0 + r(9, (1, D), 0.1), "ln1_b": r(10, (1, D), 0.05),
        "ln2_w": 1.0 + r(11, (1, D), 0.1), "ln2_b": r(12, (1, D), 0.05),
        "w1": r(13, (D, Hd), 0.1), "b1": r(14, (1, Hd), 0.05),
        "w2": r(15, (Hd, D), 0.1), "b2": r(16, (1, D), 0.05),
    }

    # Case 1: seq divisible by the query tile (2 tiles/batch elem, no padding).
    out = post_norm_attention_block(x, params, num_heads=num_heads, q_tile=8)
    out = jax.block_until_ready(out)
    ref = reference_jax(x, params, num_heads=num_heads)
    np.testing.assert_allclose(np.asarray(out), np.asarray(ref), rtol=2e-2, atol=2e-2)

    # Case 2: ragged sequence (12 rows) -> padded to 16 in-kernel with key masking.
    x2 = x[:, :12, :]
    out2 = post_norm_attention_block(x2, params, num_heads=num_heads, q_tile=8)
    out2 = jax.block_until_ready(out2)
    ref2 = reference_jax(x2, params, num_heads=num_heads)
    np.testing.assert_allclose(np.asarray(out2), np.asarray(ref2), rtol=2e-2, atol=2e-2)

    print("KERNEL_OK")
</pallas_src>

<mosaic_0001>
module attributes {stable_mosaic.version = 11 : i64} {
  func.func @post_norm_block_kernel(%arg0: i32, %arg1: i32, %arg2: memref<1x16x32xf32, #tpu.memory_space<vmem>>, %arg3: memref<4x32x8xbf16, #tpu.memory_space<vmem>>, %arg4: memref<4x32x8xbf16, #tpu.memory_space<vmem>>, %arg5: memref<4x32x8xbf16, #tpu.memory_space<vmem>>, %arg6: memref<4x8x32xbf16, #tpu.memory_space<vmem>>, %arg7: memref<4x1x8xf32, #tpu.memory_space<vmem>>, %arg8: memref<4x8x1xf32, #tpu.memory_space<vmem>>, %arg9: memref<4x1x8xf32, #tpu.memory_space<vmem>>, %arg10: memref<1x32xf32, #tpu.memory_space<vmem>>, %arg11: memref<1x32xf32, #tpu.memory_space<vmem>>, %arg12: memref<1x32xf32, #tpu.memory_space<vmem>>, %arg13: memref<32x64xbf16, #tpu.memory_space<vmem>>, %arg14: memref<1x64xf32, #tpu.memory_space<vmem>>, %arg15: memref<64x32xbf16, #tpu.memory_space<vmem>>, %arg16: memref<1x32xf32, #tpu.memory_space<vmem>>, %arg17: memref<1x32xf32, #tpu.memory_space<vmem>>, %arg18: memref<1x32xf32, #tpu.memory_space<vmem>>, %arg19: memref<1x8x32xf32, #tpu.memory_space<vmem>>, %arg20: memref<4x8x16xbf16, #tpu.memory_space<vmem>>, %arg21: memref<4x16x8xbf16, #tpu.memory_space<vmem>>) attributes {dimension_semantics = [#tpu.dimension_semantics<parallel>, #tpu.dimension_semantics<arbitrary>], iteration_bounds = array<i64: 2, 2>, scalar_prefetch = 0 : i64, scratch_operands = 2 : i64, tpu.core_type = #tpu.core_type<tc>, window_params = [{transform_indices = @transform_0, window_bounds = array<i64: 1, 16, 32>}, {pipeline_mode = #tpu.pipeline_mode<synchronous>, transform_indices = @transform_1, window_bounds = array<i64: 4, 32, 8>}, {pipeline_mode = #tpu.pipeline_mode<synchronous>, transform_indices = @transform_2, window_bounds = array<i64: 4, 32, 8>}, {pipeline_mode = #tpu.pipeline_mode<synchronous>, transform_indices = @transform_3, window_bounds = array<i64: 4, 32, 8>}, {pipeline_mode = #tpu.pipeline_mode<synchronous>, transform_indices = @transform_4, window_bounds = array<i64: 4, 8, 32>}, {pipeline_mode = #tpu.pipeline_mode<synchronous>, transform_indices = @transform_5, window_bounds = array<i64: 4, 1, 8>}, {pipeline_mode = #tpu.pipeline_mode<synchronous>, transform_indices = @transform_6, window_bounds = array<i64: 4, 8, 1>}, {pipeline_mode = #tpu.pipeline_mode<synchronous>, transform_indices = @transform_7, window_bounds = array<i64: 4, 1, 8>}, {pipeline_mode = #tpu.pipeline_mode<synchronous>, transform_indices = @transform_8, window_bounds = array<i64: 1, 32>}, {pipeline_mode = #tpu.pipeline_mode<synchronous>, transform_indices = @transform_9, window_bounds = array<i64: 1, 32>}, {pipeline_mode = #tpu.pipeline_mode<synchronous>, transform_indices = @transform_10, window_bounds = array<i64: 1, 32>}, {pipeline_mode = #tpu.pipeline_mode<synchronous>, transform_indices = @transform_11, window_bounds = array<i64: 32, 64>}, {pipeline_mode = #tpu.pipeline_mode<synchronous>, transform_indices = @transform_12, window_bounds = array<i64: 1, 64>}, {pipeline_mode = #tpu.pipeline_mode<synchronous>, transform_indices = @transform_13, window_bounds = array<i64: 64, 32>}, {pipeline_mode = #tpu.pipeline_mode<synchronous>, transform_indices = @transform_14, window_bounds = array<i64: 1, 32>}, {pipeline_mode = #tpu.pipeline_mode<synchronous>, transform_indices = @transform_15, window_bounds = array<i64: 1, 32>}, {pipeline_mode = #tpu.pipeline_mode<synchronous>, transform_indices = @transform_16, window_bounds = array<i64: 1, 32>}, {transform_indices = @transform_17, window_bounds = array<i64: 1, 8, 32>}]} {
    %c0_i32 = arith.constant 0 : i32
    %0 = arith.cmpi eq, %arg1, %c0_i32 : i32
    %1 = arith.extui %0 : i1 to i32
    %c0_i32_0 = arith.constant 0 : i32
    %2 = arith.cmpi ne, %1, %c0_i32_0 : i32
    scf.if %2 {
      %c0_107 = arith.constant 0 : index
      %c0_108 = arith.constant 0 : index
      %c0_109 = arith.constant 0 : index
      %234 = vector.load %arg2[%c0_107, %c0_108, %c0_109] : memref<1x16x32xf32, #tpu.memory_space<vmem>>, vector<1x16x32xf32>
      %235 = vector.shape_cast %234 : vector<1x16x32xf32> to vector<16x32xf32>
      %236 = arith.truncf %235 : vector<16x32xf32> to vector<16x32xbf16>
      %c0_110 = arith.constant 0 : index
      %c0_111 = arith.constant 0 : index
      %c0_112 = arith.constant 0 : index
      %237 = vector.load %arg4[%c0_110, %c0_111, %c0_112] : memref<4x32x8xbf16, #tpu.memory_space<vmem>>, vector<4x32x8xbf16>
      "tpu.trace_start"() <{level = 10 : i32, message = "sd,hde->hes"}> : () -> ()
      %cst_113 = arith.constant dense<0.000000e+00> : vector<4x8x16xf32>
      %238 = tpu.matmul %237, %236, %cst_113 {dimension_numbers = #tpu.dot_dimension_numbers<[1], [1], [0, 2], [0], [0, 0, 0, 2, 1, 0], [], []>} : vector<4x32x8xbf16>, vector<16x32xbf16>, vector<4x8x16xf32> -> vector<4x8x16xf32>
      "tpu.trace_stop"() : () -> ()
      %c0_114 = arith.constant 0 : index
      %c0_115 = arith.constant 0 : index
      %c0_116 = arith.constant 0 : index
      %239 = vector.load %arg5[%c0_114, %c0_115, %c0_116] : memref<4x32x8xbf16, #tpu.memory_space<vmem>>, vector<4x32x8xbf16>
      "tpu.trace_start"() <{level = 10 : i32, message = "sd,hde->hse"}> : () -> ()
      %cst_117 = arith.constant dense<0.000000e+00> : vector<4x8x16xf32>
      %240 = tpu.matmul %239, %236, %cst_117 {dimension_numbers = #tpu.dot_dimension_numbers<[1], [1], [0, 2], [0], [0, 0, 0, 2, 1, 0], [], []>} : vector<4x32x8xbf16>, vector<16x32xbf16>, vector<4x8x16xf32> -> vector<4x8x16xf32>
      %241 = tpu.transpose %240, [0, 2, 1] : vector<4x8x16xf32> -> vector<4x16x8xf32>
      "tpu.trace_stop"() : () -> ()
      %c0_118 = arith.constant 0 : index
      %c0_119 = arith.constant 0 : index
      %c0_120 = arith.constant 0 : index
      %242 = vector.load %arg8[%c0_118, %c0_119, %c0_120] : memref<4x8x1xf32, #tpu.memory_space<vmem>>, vector<4x8x1xf32>
      %243 = vector.broadcast %242 : vector<4x8x1xf32> to vector<4x8x16xf32>
      %244 = arith.addf %238, %243 : vector<4x8x16xf32>
      %245 = arith.truncf %244 : vector<4x8x16xf32> to vector<4x8x16xbf16>
      %c0_121 = arith.constant 0 : index
      %c0_122 = arith.constant 0 : index
      %c0_123 = arith.constant 0 : index
      %246 = vector.load %arg9[%c0_121, %c0_122, %c0_123] : memref<4x1x8xf32, #tpu.memory_space<vmem>>, vector<4x1x8xf32>
      %247 = vector.broadcast %246 : vector<4x1x8xf32> to vector<4x16x8xf32>
      %248 = arith.addf %241, %247 : vector<4x16x8xf32>
      %249 = arith.truncf %248 : vector<4x16x8xf32> to vector<4x16x8xbf16>
      %c0_124 = arith.constant 0 : index
      %c0_125 = arith.constant 0 : index
      %c0_126 = arith.constant 0 : index
      %250 = vector.load %arg20[%c0_124, %c0_125, %c0_126] : memref<4x8x16xbf16, #tpu.memory_space<vmem>>, vector<4x8x16xbf16>
      tpu.vector_store %arg20[%c0_124, %c0_125, %c0_126], %245 {strides = array<i32>} : memref<4x8x16xbf16, #tpu.memory_space<vmem>>, vector<4x8x16xbf16>,
      %c0_127 = arith.constant 0 : index
      %c0_128 = arith.constant 0 : index
      %c0_129 = arith.constant 0 : index
      %251 = vector.load %arg21[%c0_127, %c0_128, %c0_129] : memref<4x16x8xbf16, #tpu.memory_space<vmem>>, vector<4x16x8xbf16>
      tpu.vector_store %arg21[%c0_127, %c0_128, %c0_129], %249 {strides = array<i32>} : memref<4x16x8xbf16, #tpu.memory_space<vmem>>, vector<4x16x8xbf16>,
    } else {
    }
    %c8_i32 = arith.constant 8 : i32
    %3 = arith.muli %arg1, %c8_i32 : i32
    %4 = tpu.assume_multiple %3, 8 : i32
    %c0 = arith.constant 0 : index
    %5 = arith.index_cast %4 : i32 to index
    %c0_1 = arith.constant 0 : index
    %6 = vector.load %arg2[%c0, %5, %c0_1] : memref<1x16x32xf32, #tpu.memory_space<vmem>>, vector<1x8x32xf32>
    %7 = vector.shape_cast %6 : vector<1x8x32xf32> to vector<8x32xf32>
    %8 = arith.truncf %7 : vector<8x32xf32> to vector<8x32xbf16>
    %cst = arith.constant 0.000000e+00 : f32
    %9 = vector.broadcast %cst : f32 to vector<8x32xf32>
    %c0_i32_2 = arith.constant 0 : i32
    %10 = arith.index_cast %c0_i32_2 : i32 to index
    %c0_3 = arith.constant 0 : index
    %c0_4 = arith.constant 0 : index
    %11 = vector.load %arg3[%10, %c0_3, %c0_4] : memref<4x32x8xbf16, #tpu.memory_space<vmem>>, vector<1x32x8xbf16>
    %12 = vector.shape_cast %11 : vector<1x32x8xbf16> to vector<32x8xbf16>
    %cst_5 = arith.constant dense<0.000000e+00> : vector<8x8xf32>
    %13 = tpu.matmul %8, %12, %cst_5 {dimension_numbers = #tpu.dot_dimension_numbers<[1], [0], [0], [1], [0, 0, 1, 1], [], []>} : vector<8x32xbf16>, vector<32x8xbf16>, vector<8x8xf32> -> vector<8x8xf32>
    %14 = arith.index_cast %c0_i32_2 : i32 to index
    %c0_6 = arith.constant 0 : index
    %c0_7 = arith.constant 0 : index
    %15 = vector.load %arg7[%14, %c0_6, %c0_7] : memref<4x1x8xf32, #tpu.memory_space<vmem>>, vector<1x1x8xf32>
    %16 = vector.shape_cast %15 : vector<1x1x8xf32> to vector<1x8xf32>
    %17 = vector.broadcast %16 : vector<1x8xf32> to vector<8x8xf32>
    %18 = arith.addf %13, %17 : vector<8x8xf32>
    %cst_8 = arith.constant 0.353553385 : f32
    %19 = vector.broadcast %cst_8 : f32 to vector<8x8xf32>
    %20 = arith.mulf %18, %19 : vector<8x8xf32>
    %21 = arith.truncf %20 : vector<8x8xf32> to vector<8x8xbf16>
    %22 = arith.index_cast %c0_i32_2 : i32 to index
    %c0_9 = arith.constant 0 : index
    %c0_10 = arith.constant 0 : index
    %23 = vector.load %arg20[%22, %c0_9, %c0_10] : memref<4x8x16xbf16, #tpu.memory_space<vmem>>, vector<1x8x16xbf16>
    %24 = vector.shape_cast %23 : vector<1x8x16xbf16> to vector<8x16xbf16>
    %cst_11 = arith.constant dense<0.000000e+00> : vector<8x16xf32>
    %25 = tpu.matmul %21, %24, %cst_11 {dimension_numbers = #tpu.dot_dimension_numbers<[1], [0], [0], [1], [0, 0, 1, 1], [], []>} : vector<8x8xbf16>, vector<8x16xbf16>, vector<8x16xf32> -> vector<8x16xf32>
    %cst_12 = arith.constant dense<0xFF800000> : vector<8xf32>
    %26 = vector.multi_reduction <maximumf>, %25, %cst_12 [1] : vector<8x16xf32> to vector<8xf32>
    %27 = vector.shape_cast %26 : vector<8xf32> to vector<8x1xf32>
    %28 = vector.broadcast %27 : vector<8x1xf32> to vector<8x16xf32>
    %29 = arith.subf %25, %28 : vector<8x16xf32>
    %30 = math.exp %29 : vector<8x16xf32>
    %cst_13 = arith.constant dense<0.000000e+00> : vector<8xf32>
    %31 = vector.multi_reduction <add>, %30, %cst_13 [1] : vector<8x16xf32> to vector<8xf32>
    %32 = vector.shape_cast %31 : vector<8xf32> to vector<8x1xf32>
    %33 = arith.truncf %30 : vector<8x16xf32> to vector<8x16xbf16>
    %34 = arith.index_cast %c0_i32_2 : i32 to index
    %c0_14 = arith.constant 0 : index
    %c0_15 = arith.constant 0 : index
    %35 = vector.load %arg21[%34, %c0_14, %c0_15] : memref<4x16x8xbf16, #tpu.memory_space<vmem>>, vector<1x16x8xbf16>
    %36 = vector.shape_cast %35 : vector<1x16x8xbf16> to vector<16x8xbf16>
    %cst_16 = arith.constant dense<0.000000e+00> : vector<8x8xf32>
    %37 = tpu.matmul %33, %36, %cst_16 {dimension_numbers = #tpu.dot_dimension_numbers<[1], [0], [0], [1], [0, 0, 1, 1], [], []>} : vector<8x16xbf16>, vector<16x8xbf16>, vector<8x8xf32> -> vector<8x8xf32>
    %38 = tpu.reciprocal %32 {approx = true} : vector<8x1xf32> -> vector<8x1xf32>
    %39 = vector.broadcast %38 : vector<8x1xf32> to vector<8x8xf32>
    %40 = arith.mulf %37, %39 : vector<8x8xf32>
    %41 = arith.truncf %40 : vector<8x8xf32> to vector<8x8xbf16>
    %42 = arith.index_cast %c0_i32_2 : i32 to index
    %c0_17 = arith.constant 0 : index
    %c0_18 = arith.constant 0 : index
    %43 = vector.load %arg6[%42, %c0_17, %c0_18] : memref<4x8x32xbf16, #tpu.memory_space<vmem>>, vector<1x8x32xbf16>
    %44 = vector.shape_cast %43 : vector<1x8x32xbf16> to vector<8x32xbf16>
    %cst_19 = arith.constant dense<0.000000e+00> : vector<8x32xf32>
    %45 = tpu.matmul %41, %44, %cst_19 {dimension_numbers = #tpu.dot_dimension_numbers<[1], [0], [0], [1], [0, 0, 1, 1], [], []>} : vector<8x8xbf16>, vector<8x32xbf16>, vector<8x32xf32> -> vector<8x32xf32>
    %46 = arith.addf %9, %45 : vector<8x32xf32>
    %c1_i32 = arith.constant 1 : i32
    %47 = arith.index_cast %c1_i32 : i32 to index
    %c0_20 = arith.constant 0 : index
    %c0_21 = arith.constant 0 : index
    %48 = vector.load %arg3[%47, %c0_20, %c0_21] : memref<4x32x8xbf16, #tpu.memory_space<vmem>>, vector<1x32x8xbf16>
    %49 = vector.shape_cast %48 : vector<1x32x8xbf16> to vector<32x8xbf16>
    %cst_22 = arith.constant dense<0.000000e+00> : vector<8x8xf32>
    %50 = tpu.matmul %8, %49, %cst_22 {dimension_numbers = #tpu.dot_dimension_numbers<[1], [0], [0], [1], [0, 0, 1, 1], [], []>} : vector<8x32xbf16>, vector<32x8xbf16>, vector<8x8xf32> -> vector<8x8xf32>
    %51 = arith.index_cast %c1_i32 : i32 to index
    %c0_23 = arith.constant 0 : index
    %c0_24 = arith.constant 0 : index
    %52 = vector.load %arg7[%51, %c0_23, %c0_24] : memref<4x1x8xf32, #tpu.memory_space<vmem>>, vector<1x1x8xf32>
    %53 = vector.shape_cast %52 : vector<1x1x8xf32> to vector<1x8xf32>
    %54 = vector.broadcast %53 : vector<1x8xf32> to vector<8x8xf32>
    %55 = arith.addf %50, %54 : vector<8x8xf32>
    %cst_25 = arith.constant 0.353553385 : f32
    %56 = vector.broadcast %cst_25 : f32 to vector<8x8xf32>
    %57 = arith.mulf %55, %56 : vector<8x8xf32>
    %58 = arith.truncf %57 : vector<8x8xf32> to vector<8x8xbf16>
    %59 = arith.index_cast %c1_i32 : i32 to index
    %c0_26 = arith.constant 0 : index
    %c0_27 = arith.constant 0 : index
    %60 = vector.load %arg20[%59, %c0_26, %c0_27] : memref<4x8x16xbf16, #tpu.memory_space<vmem>>, vector<1x8x16xbf16>
    %61 = vector.shape_cast %60 : vector<1x8x16xbf16> to vector<8x16xbf16>
    %cst_28 = arith.constant dense<0.000000e+00> : vector<8x16xf32>
    %62 = tpu.matmul %58, %61, %cst_28 {dimension_numbers = #tpu.dot_dimension_numbers<[1], [0], [0], [1], [0, 0, 1, 1], [], []>} : vector<8x8xbf16>, vector<8x16xbf16>, vector<8x16xf32> -> vector<8x16xf32>
    %cst_29 = arith.constant dense<0xFF800000> : vector<8xf32>
    %63 = vector.multi_reduction <maximumf>, %62, %cst_29 [1] : vector<8x16xf32> to vector<8xf32>
    %64 = vector.shape_cast %63 : vector<8xf32> to vector<8x1xf32>
    %65 = vector.broadcast %64 : vector<8x1xf32> to vector<8x16xf32>
    %66 = arith.subf %62, %65 : vector<8x16xf32>
    %67 = math.exp %66 : vector<8x16xf32>
    %cst_30 = arith.constant dense<0.000000e+00> : vector<8xf32>
    %68 = vector.multi_reduction <add>, %67, %cst_30 [1] : vector<8x16xf32> to vector<8xf32>
    %69 = vector.shape_cast %68 : vector<8xf32> to vector<8x1xf32>
    %70 = arith.truncf %67 : vector<8x16xf32> to vector<8x16xbf16>
    %71 = arith.index_cast %c1_i32 : i32 to index
    %c0_31 = arith.constant 0 : index
    %c0_32 = arith.constant 0 : index
    %72 = vector.load %arg21[%71, %c0_31, %c0_32] : memref<4x16x8xbf16, #tpu.memory_space<vmem>>, vector<1x16x8xbf16>
    %73 = vector.shape_cast %72 : vector<1x16x8xbf16> to vector<16x8xbf16>
    %cst_33 = arith.constant dense<0.000000e+00> : vector<8x8xf32>
    %74 = tpu.matmul %70, %73, %cst_33 {dimension_numbers = #tpu.dot_dimension_numbers<[1], [0], [0], [1], [0, 0, 1, 1], [], []>} : vector<8x16xbf16>, vector<16x8xbf16>, vector<8x8xf32> -> vector<8x8xf32>
    %75 = tpu.reciprocal %69 {approx = true} : vector<8x1xf32> -> vector<8x1xf32>
    %76 = vector.broadcast %75 : vector<8x1xf32> to vector<8x8xf32>
    %77 = arith.mulf %74, %76 : vector<8x8xf32>
    %78 = arith.truncf %77 : vector<8x8xf32> to vector<8x8xbf16>
    %79 = arith.index_cast %c1_i32 : i32 to index
    %c0_34 = arith.constant 0 : index
    %c0_35 = arith.constant 0 : index
    %80 = vector.load %arg6[%79, %c0_34, %c0_35] : memref<4x8x32xbf16, #tpu.memory_space<vmem>>, vector<1x8x32xbf16>
    %81 = vector.shape_cast %80 : vector<1x8x32xbf16> to vector<8x32xbf16>
    %cst_36 = arith.constant dense<0.000000e+00> : vector<8x32xf32>
    %82 = tpu.matmul %78, %81, %cst_36 {dimension_numbers = #tpu.dot_dimension_numbers<[1], [0], [0], [1], [0, 0, 1, 1], [], []>} : vector<8x8xbf16>, vector<8x32xbf16>, vector<8x32xf32> -> vector<8x32xf32>
    %83 = arith.addf %46, %82 : vector<8x32xf32>
    %c2_i32 = arith.constant 2 : i32
    %84 = arith.index_cast %c2_i32 : i32 to index
    %c0_37 = arith.constant 0 : index
    %c0_38 = arith.constant 0 : index
    %85 = vector.load %arg3[%84, %c0_37, %c0_38] : memref<4x32x8xbf16, #tpu.memory_space<vmem>>, vector<1x32x8xbf16>
    %86 = vector.shape_cast %85 : vector<1x32x8xbf16> to vector<32x8xbf16>
    %cst_39 = arith.constant dense<0.000000e+00> : vector<8x8xf32>
    %87 = tpu.matmul %8, %86, %cst_39 {dimension_numbers = #tpu.dot_dimension_numbers<[1], [0], [0], [1], [0, 0, 1, 1], [], []>} : vector<8x32xbf16>, vector<32x8xbf16>, vector<8x8xf32> -> vector<8x8xf32>
    %88 = arith.index_cast %c2_i32 : i32 to index
    %c0_40 = arith.constant 0 : index
    %c0_41 = arith.constant 0 : index
    %89 = vector.load %arg7[%88, %c0_40, %c0_41] : memref<4x1x8xf32, #tpu.memory_space<vmem>>, vector<1x1x8xf32>
    %90 = vector.shape_cast %89 : vector<1x1x8xf32> to vector<1x8xf32>
    %91 = vector.broadcast %90 : vector<1x8xf32> to vector<8x8xf32>
    %92 = arith.addf %87, %91 : vector<8x8xf32>
    %cst_42 = arith.constant 0.353553385 : f32
    %93 = vector.broadcast %cst_42 : f32 to vector<8x8xf32>
    %94 = arith.mulf %92, %93 : vector<8x8xf32>
    %95 = arith.truncf %94 : vector<8x8xf32> to vector<8x8xbf16>
    %96 = arith.index_cast %c2_i32 : i32 to index
    %c0_43 = arith.constant 0 : index
    %c0_44 = arith.constant 0 : index
    %97 = vector.load %arg20[%96, %c0_43, %c0_44] : memref<4x8x16xbf16, #tpu.memory_space<vmem>>, vector<1x8x16xbf16>
    %98 = vector.shape_cast %97 : vector<1x8x16xbf16> to vector<8x16xbf16>
    %cst_45 = arith.constant dense<0.000000e+00> : vector<8x16xf32>
    %99 = tpu.matmul %95, %98, %cst_45 {dimension_numbers = #tpu.dot_dimension_numbers<[1], [0], [0], [1], [0, 0, 1, 1], [], []>} : vector<8x8xbf16>, vector<8x16xbf16>, vector<8x16xf32> -> vector<8x16xf32>
    %cst_46 = arith.constant dense<0xFF800000> : vector<8xf32>
    %100 = vector.multi_reduction <maximumf>, %99, %cst_46 [1] : vector<8x16xf32> to vector<8xf32>
    %101 = vector.shape_cast %100 : vector<8xf32> to vector<8x1xf32>
    %102 = vector.broadcast %101 : vector<8x1xf32> to vector<8x16xf32>
    %103 = arith.subf %99, %102 : vector<8x16xf32>
    %104 = math.exp %103 : vector<8x16xf32>
    %cst_47 = arith.constant dense<0.000000e+00> : vector<8xf32>
    %105 = vector.multi_reduction <add>, %104, %cst_47 [1] : vector<8x16xf32> to vector<8xf32>
    %106 = vector.shape_cast %105 : vector<8xf32> to vector<8x1xf32>
    %107 = arith.truncf %104 : vector<8x16xf32> to vector<8x16xbf16>
    %108 = arith.index_cast %c2_i32 : i32 to index
    %c0_48 = arith.constant 0 : index
    %c0_49 = arith.constant 0 : index
    %109 = vector.load %arg21[%108, %c0_48, %c0_49] : memref<4x16x8xbf16, #tpu.memory_space<vmem>>, vector<1x16x8xbf16>
    %110 = vector.shape_cast %109 : vector<1x16x8xbf16> to vector<16x8xbf16>
    %cst_50 = arith.constant dense<0.000000e+00> : vector<8x8xf32>
    %111 = tpu.matmul %107, %110, %cst_50 {dimension_numbers = #tpu.dot_dimension_numbers<[1], [0], [0], [1], [0, 0, 1, 1], [], []>} : vector<8x16xbf16>, vector<16x8xbf16>, vector<8x8xf32> -> vector<8x8xf32>
    %112 = tpu.reciprocal %106 {approx = true} : vector<8x1xf32> -> vector<8x1xf32>
    %113 = vector.broadcast %112 : vector<8x1xf32> to vector<8x8xf32>
    %114 = arith.mulf %111, %113 : vector<8x8xf32>
    %115 = arith.truncf %114 : vector<8x8xf32> to vector<8x8xbf16>
    %116 = arith.index_cast %c2_i32 : i32 to index
    %c0_51 = arith.constant 0 : index
    %c0_52 = arith.constant 0 : index
    %117 = vector.load %arg6[%116, %c0_51, %c0_52] : memref<4x8x32xbf16, #tpu.memory_space<vmem>>, vector<1x8x32xbf16>
    %118 = vector.shape_cast %117 : vector<1x8x32xbf16> to vector<8x32xbf16>
    %cst_53 = arith.constant dense<0.000000e+00> : vector<8x32xf32>
    %119 = tpu.matmul %115, %118, %cst_53 {dimension_numbers = #tpu.dot_dimension_numbers<[1], [0], [0], [1], [0, 0, 1, 1], [], []>} : vector<8x8xbf16>, vector<8x32xbf16>, vector<8x32xf32> -> vector<8x32xf32>
    %120 = arith.addf %83, %119 : vector<8x32xf32>
    %c3_i32 = arith.constant 3 : i32
    %121 = arith.index_cast %c3_i32 : i32 to index
    %c0_54 = arith.constant 0 : index
    %c0_55 = arith.constant 0 : index
    %122 = vector.load %arg3[%121, %c0_54, %c0_55] : memref<4x32x8xbf16, #tpu.memory_space<vmem>>, vector<1x32x8xbf16>
    %123 = vector.shape_cast %122 : vector<1x32x8xbf16> to vector<32x8xbf16>
    %cst_56 = arith.constant dense<0.000000e+00> : vector<8x8xf32>
    %124 = tpu.matmul %8, %123, %cst_56 {dimension_numbers = #tpu.dot_dimension_numbers<[1], [0], [0], [1], [0, 0, 1, 1], [], []>} : vector<8x32xbf16>, vector<32x8xbf16>, vector<8x8xf32> -> vector<8x8xf32>
    %125 = arith.index_cast %c3_i32 : i32 to index
    %c0_57 = arith.constant 0 : index
    %c0_58 = arith.constant 0 : index
    %126 = vector.load %arg7[%125, %c0_57, %c0_58] : memref<4x1x8xf32, #tpu.memory_space<vmem>>, vector<1x1x8xf32>
    %127 = vector.shape_cast %126 : vector<1x1x8xf32> to vector<1x8xf32>
    %128 = vector.broadcast %127 : vector<1x8xf32> to vector<8x8xf32>
    %129 = arith.addf %124, %128 : vector<8x8xf32>
    %cst_59 = arith.constant 0.353553385 : f32
    %130 = vector.broadcast %cst_59 : f32 to vector<8x8xf32>
    %131 = arith.mulf %129, %130 : vector<8x8xf32>
    %132 = arith.truncf %131 : vector<8x8xf32> to vector<8x8xbf16>
    %133 = arith.index_cast %c3_i32 : i32 to index
    %c0_60 = arith.constant 0 : index
    %c0_61 = arith.constant 0 : index
    %134 = vector.load %arg20[%133, %c0_60, %c0_61] : memref<4x8x16xbf16, #tpu.memory_space<vmem>>, vector<1x8x16xbf16>
    %135 = vector.shape_cast %134 : vector<1x8x16xbf16> to vector<8x16xbf16>
    %cst_62 = arith.constant dense<0.000000e+00> : vector<8x16xf32>
    %136 = tpu.matmul %132, %135, %cst_62 {dimension_numbers = #tpu.dot_dimension_numbers<[1], [0], [0], [1], [0, 0, 1, 1], [], []>} : vector<8x8xbf16>, vector<8x16xbf16>, vector<8x16xf32> -> vector<8x16xf32>
    %cst_63 = arith.constant dense<0xFF800000> : vector<8xf32>
    %137 = vector.multi_reduction <maximumf>, %136, %cst_63 [1] : vector<8x16xf32> to vector<8xf32>
    %138 = vector.shape_cast %137 : vector<8xf32> to vector<8x1xf32>
    %139 = vector.broadcast %138 : vector<8x1xf32> to vector<8x16xf32>
    %140 = arith.subf %136, %139 : vector<8x16xf32>
    %141 = math.exp %140 : vector<8x16xf32>
    %cst_64 = arith.constant dense<0.000000e+00> : vector<8xf32>
    %142 = vector.multi_reduction <add>, %141, %cst_64 [1] : vector<8x16xf32> to vector<8xf32>
    %143 = vector.shape_cast %142 : vector<8xf32> to vector<8x1xf32>
    %144 = arith.truncf %141 : vector<8x16xf32> to vector<8x16xbf16>
    %145 = arith.index_cast %c3_i32 : i32 to index
    %c0_65 = arith.constant 0 : index
    %c0_66 = arith.constant 0 : index
    %146 = vector.load %arg21[%145, %c0_65, %c0_66] : memref<4x16x8xbf16, #tpu.memory_space<vmem>>, vector<1x16x8xbf16>
    %147 = vector.shape_cast %146 : vector<1x16x8xbf16> to vector<16x8xbf16>
    %cst_67 = arith.constant dense<0.000000e+00> : vector<8x8xf32>
    %148 = tpu.matmul %144, %147, %cst_67 {dimension_numbers = #tpu.dot_dimension_numbers<[1], [0], [0], [1], [0, 0, 1, 1], [], []>} : vector<8x16xbf16>, vector<16x8xbf16>, vector<8x8xf32> -> vector<8x8xf32>
    %149 = tpu.reciprocal %143 {approx = true} : vector<8x1xf32> -> vector<8x1xf32>
    %150 = vector.broadcast %149 : vector<8x1xf32> to vector<8x8xf32>
    %151 = arith.mulf %148, %150 : vector<8x8xf32>
    %152 = arith.truncf %151 : vector<8x8xf32> to vector<8x8xbf16>
    %153 = arith.index_cast %c3_i32 : i32 to index
    %c0_68 = arith.constant 0 : index
    %c0_69 = arith.constant 0 : index
    %154 = vector.load %arg6[%153, %c0_68, %c0_69] : memref<4x8x32xbf16, #tpu.memory_space<vmem>>, vector<1x8x32xbf16>
    %155 = vector.shape_cast %154 : vector<1x8x32xbf16> to vector<8x32xbf16>
    %cst_70 = arith.constant dense<0.000000e+00> : vector<8x32xf32>
    %156 = tpu.matmul %152, %155, %cst_70 {dimension_numbers = #tpu.dot_dimension_numbers<[1], [0], [0], [1], [0, 0, 1, 1], [], []>} : vector<8x8xbf16>, vector<8x32xbf16>, vector<8x32xf32> -> vector<8x32xf32>
    %157 = arith.addf %120, %156 : vector<8x32xf32>
    %c4_i32 = arith.constant 4 : i32
    %c0_71 = arith.constant 0 : index
    %c0_72 = arith.constant 0 : index
    %158 = vector.load %arg10[%c0_71, %c0_72] : memref<1x32xf32, #tpu.memory_space<vmem>>, vector<1x32xf32>
    %159 = vector.broadcast %158 : vector<1x32xf32> to vector<8x32xf32>
    %160 = arith.addf %157, %159 : vector<8x32xf32>
    %161 = arith.addf %7, %160 : vector<8x32xf32>
    %c0_73 = arith.constant 0 : index
    %c0_74 = arith.constant 0 : index
    %162 = vector.load %arg11[%c0_73, %c0_74] : memref<1x32xf32, #tpu.memory_space<vmem>>, vector<1x32xf32>
    %c0_75 = arith.constant 0 : index
    %c0_76 = arith.constant 0 : index
    %163 = vector.load %arg12[%c0_75, %c0_76] : memref<1x32xf32, #tpu.memory_space<vmem>>, vector<1x32xf32>
    %cst_77 = arith.constant dense<0.000000e+00> : vector<8xf32>
    %164 = vector.multi_reduction <add>, %161, %cst_77 [1] : vector<8x32xf32> to vector<8xf32>
    %165 = vector.shape_cast %164 : vector<8xf32> to vector<8x1xf32>
    %cst_78 = arith.constant 3.200000e+01 : f32
    %166 = vector.broadcast %cst_78 : f32 to vector<8x1xf32>
    %167 = arith.divf %165, %166 : vector<8x1xf32>
    %168 = vector.broadcast %167 : vector<8x1xf32> to vector<8x32xf32>
    %169 = arith.subf %161, %168 : vector<8x32xf32>
    %170 = arith.mulf %169, %169 : vector<8x32xf32>
    %cst_79 = arith.constant dense<0.000000e+00> : vector<8xf32>
    %171 = vector.multi_reduction <add>, %170, %cst_79 [1] : vector<8x32xf32> to vector<8xf32>
    %172 = vector.shape_cast %171 : vector<8xf32> to vector<8x1xf32>
    %cst_80 = arith.constant 3.200000e+01 : f32
    %173 = vector.broadcast %cst_80 : f32 to vector<8x1xf32>
    %174 = arith.divf %172, %173 : vector<8x1xf32>
    %175 = vector.broadcast %167 : vector<8x1xf32> to vector<8x32xf32>
    %176 = arith.subf %161, %175 : vector<8x32xf32>
    %cst_81 = arith.constant 9.99999974E-6 : f32
    %177 = vector.broadcast %cst_81 : f32 to vector<8x1xf32>
    %178 = arith.addf %174, %177 : vector<8x1xf32>
    %179 = math.rsqrt %178 : vector<8x1xf32>
    %180 = vector.broadcast %179 : vector<8x1xf32> to vector<8x32xf32>
    %181 = arith.mulf %176, %180 : vector<8x32xf32>
    %182 = vector.broadcast %162 : vector<1x32xf32> to vector<8x32xf32>
    %183 = arith.mulf %181, %182 : vector<8x32xf32>
    %184 = vector.broadcast %163 : vector<1x32xf32> to vector<8x32xf32>
    %185 = arith.addf %183, %184 : vector<8x32xf32>
    %186 = arith.truncf %185 : vector<8x32xf32> to vector<8x32xbf16>
    %c0_82 = arith.constant 0 : index
    %c0_83 = arith.constant 0 : index
    %187 = vector.load %arg13[%c0_82, %c0_83] : memref<32x64xbf16, #tpu.memory_space<vmem>>, vector<32x64xbf16>
    %cst_84 = arith.constant dense<0.000000e+00> : vector<8x64xf32>
    %188 = tpu.matmul %186, %187, %cst_84 {dimension_numbers = #tpu.dot_dimension_numbers<[1], [0], [0], [1], [0, 0, 1, 1], [], []>} : vector<8x32xbf16>, vector<32x64xbf16>, vector<8x64xf32> -> vector<8x64xf32>
    %c0_85 = arith.constant 0 : index
    %c0_86 = arith.constant 0 : index
    %189 = vector.load %arg14[%c0_85, %c0_86] : memref<1x64xf32, #tpu.memory_space<vmem>>, vector<1x64xf32>
    %190 = vector.broadcast %189 : vector<1x64xf32> to vector<8x64xf32>
    %191 = arith.addf %188, %190 : vector<8x64xf32>
    %cst_87 = arith.constant 5.000000e-01 : f32
    %192 = vector.broadcast %cst_87 : f32 to vector<8x64xf32>
    %193 = arith.mulf %192, %191 : vector<8x64xf32>
    %cst_88 = arith.constant 0.707106769 : f32
    %194 = vector.broadcast %cst_88 : f32 to vector<8x64xf32>
    %195 = arith.mulf %191, %194 : vector<8x64xf32>
    %196 = math.erf %195 : vector<8x64xf32>
    %cst_89 = arith.constant 1.000000e+00 : f32
    %197 = vector.broadcast %cst_89 : f32 to vector<8x64xf32>
    %198 = arith.addf %197, %196 : vector<8x64xf32>
    %199 = arith.mulf %193, %198 : vector<8x64xf32>
    %200 = arith.truncf %199 : vector<8x64xf32> to vector<8x64xbf16>
    %c0_90 = arith.constant 0 : index
    %c0_91 = arith.constant 0 : index
    %201 = vector.load %arg15[%c0_90, %c0_91] : memref<64x32xbf16, #tpu.memory_space<vmem>>, vector<64x32xbf16>
    %cst_92 = arith.constant dense<0.000000e+00> : vector<8x32xf32>
    %202 = tpu.matmul %200, %201, %cst_92 {dimension_numbers = #tpu.dot_dimension_numbers<[1], [0], [0], [1], [0, 0, 1, 1], [], []>} : vector<8x64xbf16>, vector<64x32xbf16>, vector<8x32xf32> -> vector<8x32xf32>
    %c0_93 = arith.constant 0 : index
    %c0_94 = arith.constant 0 : index
    %203 = vector.load %arg16[%c0_93, %c0_94] : memref<1x32xf32, #tpu.memory_space<vmem>>, vector<1x32xf32>
    %204 = vector.broadcast %203 : vector<1x32xf32> to vector<8x32xf32>
    %205 = arith.addf %202, %204 : vector<8x32xf32>
    %206 = arith.addf %205, %185 : vector<8x32xf32>
    %c0_95 = arith.constant 0 : index
    %c0_96 = arith.constant 0 : index
    %207 = vector.load %arg17[%c0_95, %c0_96] : memref<1x32xf32, #tpu.memory_space<vmem>>, vector<1x32xf32>
    %c0_97 = arith.constant 0 : index
    %c0_98 = arith.constant 0 : index
    %208 = vector.load %arg18[%c0_97, %c0_98] : memref<1x32xf32, #tpu.memory_space<vmem>>, vector<1x32xf32>
    %cst_99 = arith.constant dense<0.000000e+00> : vector<8xf32>
    %209 = vector.multi_reduction <add>, %206, %cst_99 [1] : vector<8x32xf32> to vector<8xf32>
    %210 = vector.shape_cast %209 : vector<8xf32> to vector<8x1xf32>
    %cst_100 = arith.constant 3.200000e+01 : f32
    %211 = vector.broadcast %cst_100 : f32 to vector<8x1xf32>
    %212 = arith.divf %210, %211 : vector<8x1xf32>
    %213 = vector.broadcast %212 : vector<8x1xf32> to vector<8x32xf32>
    %214 = arith.subf %206, %213 : vector<8x32xf32>
    %215 = arith.mulf %214, %214 : vector<8x32xf32>
    %cst_101 = arith.constant dense<0.000000e+00> : vector<8xf32>
    %216 = vector.multi_reduction <add>, %215, %cst_101 [1] : vector<8x32xf32> to vector<8xf32>
    %217 = vector.shape_cast %216 : vector<8xf32> to vector<8x1xf32>
    %cst_102 = arith.constant 3.200000e+01 : f32
    %218 = vector.broadcast %cst_102 : f32 to vector<8x1xf32>
    %219 = arith.divf %217, %218 : vector<8x1xf32>
    %220 = vector.broadcast %212 : vector<8x1xf32> to vector<8x32xf32>
    %221 = arith.subf %206, %220 : vector<8x32xf32>
    %cst_103 = arith.constant 9.99999974E-6 : f32
    %222 = vector.broadcast %cst_103 : f32 to vector<8x1xf32>
    %223 = arith.addf %219, %222 : vector<8x1xf32>
    %224 = math.rsqrt %223 : vector<8x1xf32>
    %225 = vector.broadcast %224 : vector<8x1xf32> to vector<8x32xf32>
    %226 = arith.mulf %221, %225 : vector<8x32xf32>
    %227 = vector.broadcast %207 : vector<1x32xf32> to vector<8x32xf32>
    %228 = arith.mulf %226, %227 : vector<8x32xf32>
    %229 = vector.broadcast %208 : vector<1x32xf32> to vector<8x32xf32>
    %230 = arith.addf %228, %229 : vector<8x32xf32>
    %c0_104 = arith.constant 0 : index
    %c0_105 = arith.constant 0 : index
    %c0_106 = arith.constant 0 : index
    %231 = vector.load %arg19[%c0_104, %c0_105, %c0_106] : memref<1x8x32xf32, #tpu.memory_space<vmem>>, vector<1x8x32xf32>
    %232 = vector.shape_cast %231 : vector<1x8x32xf32> to vector<8x32xf32>
    %233 = vector.shape_cast %230 : vector<8x32xf32> to vector<1x8x32xf32>
    tpu.vector_store %arg19[%c0_104, %c0_105, %c0_106], %233 {strides = array<i32>} : memref<1x8x32xf32, #tpu.memory_space<vmem>>, vector<1x8x32xf32>,
    return
  }
  func.func @transform_0(%arg0: i32, %arg1: i32) -> (i32, i32, i32) {
    %c0_i32 = arith.constant 0 : i32
    %c0_i32_0 = arith.constant 0 : i32
    %c0_i32_1 = arith.constant 0 : i32
    return %arg0, %c0_i32, %c0_i32_0 : i32, i32, i32
  }
  func.func @transform_1(%arg0: i32, %arg1: i32) -> (i32, i32, i32) {
    %c0_i32 = arith.constant 0 : i32
    %c0_i32_0 = arith.constant 0 : i32
    %c0_i32_1 = arith.constant 0 : i32
    %c0_i32_2 = arith.constant 0 : i32
    return %c0_i32, %c0_i32_0, %c0_i32_1 : i32, i32, i32
  }
  func.func @transform_2(%arg0: i32, %arg1: i32) -> (i32, i32, i32) {
    %c0_i32 = arith.constant 0 : i32
    %c0_i32_0 = arith.constant 0 : i32
    %c0_i32_1 = arith.constant 0 : i32
    %c0_i32_2 = arith.constant 0 : i32
    return %c0_i32, %c0_i32_0, %c0_i32_1 : i32, i32, i32
  }
  func.func @transform_3(%arg0: i32, %arg1: i32) -> (i32, i32, i32) {
    %c0_i32 = arith.constant 0 : i32
    %c0_i32_0 = arith.constant 0 : i32
    %c0_i32_1 = arith.constant 0 : i32
    %c0_i32_2 = arith.constant 0 : i32
    return %c0_i32, %c0_i32_0, %c0_i32_1 : i32, i32, i32
  }
  func.func @transform_4(%arg0: i32, %arg1: i32) -> (i32, i32, i32) {
    %c0_i32 = arith.constant 0 : i32
    %c0_i32_0 = arith.constant 0 : i32
    %c0_i32_1 = arith.constant 0 : i32
    %c0_i32_2 = arith.constant 0 : i32
    return %c0_i32, %c0_i32_0, %c0_i32_1 : i32, i32, i32
  }
  func.func @transform_5(%arg0: i32, %arg1: i32) -> (i32, i32, i32) {
    %c0_i32 = arith.constant 0 : i32
    %c0_i32_0 = arith.constant 0 : i32
    %c0_i32_1 = arith.constant 0 : i32
    %c0_i32_2 = arith.constant 0 : i32
    return %c0_i32, %c0_i32_0, %c0_i32_1 : i32, i32, i32
  }
  func.func @transform_6(%arg0: i32, %arg1: i32) -> (i32, i32, i32) {
    %c0_i32 = arith.constant 0 : i32
    %c0_i32_0 = arith.constant 0 : i32
    %c0_i32_1 = arith.constant 0 : i32
    %c0_i32_2 = arith.constant 0 : i32
    return %c0_i32, %c0_i32_0, %c0_i32_1 : i32, i32, i32
  }
  func.func @transform_7(%arg0: i32, %arg1: i32) -> (i32, i32, i32) {
    %c0_i32 = arith.constant 0 : i32
    %c0_i32_0 = arith.constant 0 : i32
    %c0_i32_1 = arith.constant 0 : i32
    %c0_i32_2 = arith.constant 0 : i32
    return %c0_i32, %c0_i32_0, %c0_i32_1 : i32, i32, i32
  }
  func.func @transform_8(%arg0: i32, %arg1: i32) -> (i32, i32) {
    %c0_i32 = arith.constant 0 : i32
    %c0_i32_0 = arith.constant 0 : i32
    %c0_i32_1 = arith.constant 0 : i32
    return %c0_i32, %c0_i32_0 : i32, i32
  }
  func.func @transform_9(%arg0: i32, %arg1: i32) -> (i32, i32) {
    %c0_i32 = arith.constant 0 : i32
    %c0_i32_0 = arith.constant 0 : i32
    %c0_i32_1 = arith.constant 0 : i32
    return %c0_i32, %c0_i32_0 : i32, i32
  }
  func.func @transform_10(%arg0: i32, %arg1: i32) -> (i32, i32) {
    %c0_i32 = arith.constant 0 : i32
    %c0_i32_0 = arith.constant 0 : i32
    %c0_i32_1 = arith.constant 0 : i32
    return %c0_i32, %c0_i32_0 : i32, i32
  }
  func.func @transform_11(%arg0: i32, %arg1: i32) -> (i32, i32) {
    %c0_i32 = arith.constant 0 : i32
    %c0_i32_0 = arith.constant 0 : i32
    %c0_i32_1 = arith.constant 0 : i32
    return %c0_i32, %c0_i32_0 : i32, i32
  }
  func.func @transform_12(%arg0: i32, %arg1: i32) -> (i32, i32) {
    %c0_i32 = arith.constant 0 : i32
    %c0_i32_0 = arith.constant 0 : i32
    %c0_i32_1 = arith.constant 0 : i32
    return %c0_i32, %c0_i32_0 : i32, i32
  }
  func.func @transform_13(%arg0: i32, %arg1: i32) -> (i32, i32) {
    %c0_i32 = arith.constant 0 : i32
    %c0_i32_0 = arith.constant 0 : i32
    %c0_i32_1 = arith.constant 0 : i32
    return %c0_i32, %c0_i32_0 : i32, i32
  }
  func.func @transform_14(%arg0: i32, %arg1: i32) -> (i32, i32) {
    %c0_i32 = arith.constant 0 : i32
    %c0_i32_0 = arith.constant 0 : i32
    %c0_i32_1 = arith.constant 0 : i32
    return %c0_i32, %c0_i32_0 : i32, i32
  }
  func.func @transform_15(%arg0: i32, %arg1: i32) -> (i32, i32) {
    %c0_i32 = arith.constant 0 : i32
    %c0_i32_0 = arith.constant 0 : i32
    %c0_i32_1 = arith.constant 0 : i32
    return %c0_i32, %c0_i32_0 : i32, i32
  }
  func.func @transform_16(%arg0: i32, %arg1: i32) -> (i32, i32) {
    %c0_i32 = arith.constant 0 : i32
    %c0_i32_0 = arith.constant 0 : i32
    %c0_i32_1 = arith.constant 0 : i32
    return %c0_i32, %c0_i32_0 : i32, i32
  }
  func.func @transform_17(%arg0: i32, %arg1: i32) -> (i32, i32, i32) {
    %c0_i32 = arith.constant 0 : i32
    %c0_i32_0 = arith.constant 0 : i32
    return %arg0, %arg1, %c0_i32 : i32, i32, i32
  }
}

module attributes {stable_mosaic.version = 11 : i64} {
  func.func @post_norm_block_kernel(%arg0: i32, %arg1: i32, %arg2: memref<1x16x32xf32, #tpu.memory_space<vmem>>, %arg3: memref<4x32x8xbf16, #tpu.memory_space<vmem>>, %arg4: memref<4x32x8xbf16, #tpu.memory_space<vmem>>, %arg5: memref<4x32x8xbf16, #tpu.memory_space<vmem>>, %arg6: memref<4x8x32xbf16, #tpu.memory_space<vmem>>, %arg7: memref<4x1x8xf32, #tpu.memory_space<vmem>>, %arg8: memref<4x8x1xf32, #tpu.memory_space<vmem>>, %arg9: memref<4x1x8xf32, #tpu.memory_space<vmem>>, %arg10: memref<1x32xf32, #tpu.memory_space<vmem>>, %arg11: memref<1x32xf32, #tpu.memory_space<vmem>>, %arg12: memref<1x32xf32, #tpu.memory_space<vmem>>, %arg13: memref<32x64xbf16, #tpu.memory_space<vmem>>, %arg14: memref<1x64xf32, #tpu.memory_space<vmem>>, %arg15: memref<64x32xbf16, #tpu.memory_space<vmem>>, %arg16: memref<1x32xf32, #tpu.memory_space<vmem>>, %arg17: memref<1x32xf32, #tpu.memory_space<vmem>>, %arg18: memref<1x32xf32, #tpu.memory_space<vmem>>, %arg19: memref<1x8x32xf32, #tpu.memory_space<vmem>>, %arg20: memref<4x8x16xbf16, #tpu.memory_space<vmem>>, %arg21: memref<4x16x8xbf16, #tpu.memory_space<vmem>>) attributes {dimension_semantics = [#tpu.dimension_semantics<parallel>, #tpu.dimension_semantics<arbitrary>], iteration_bounds = array<i64: 2, 2>, scalar_prefetch = 0 : i64, scratch_operands = 2 : i64, tpu.core_type = #tpu.core_type<tc>, window_params = [{transform_indices = @transform_0, window_bounds = array<i64: 1, 16, 32>}, {pipeline_mode = #tpu.pipeline_mode<synchronous>, transform_indices = @transform_1, window_bounds = array<i64: 4, 32, 8>}, {pipeline_mode = #tpu.pipeline_mode<synchronous>, transform_indices = @transform_2, window_bounds = array<i64: 4, 32, 8>}, {pipeline_mode = #tpu.pipeline_mode<synchronous>, transform_indices = @transform_3, window_bounds = array<i64: 4, 32, 8>}, {pipeline_mode = #tpu.pipeline_mode<synchronous>, transform_indices = @transform_4, window_bounds = array<i64: 4, 8, 32>}, {pipeline_mode = #tpu.pipeline_mode<synchronous>, transform_indices = @transform_5, window_bounds = array<i64: 4, 1, 8>}, {pipeline_mode = #tpu.pipeline_mode<synchronous>, transform_indices = @transform_6, window_bounds = array<i64: 4, 8, 1>}, {pipeline_mode = #tpu.pipeline_mode<synchronous>, transform_indices = @transform_7, window_bounds = array<i64: 4, 1, 8>}, {pipeline_mode = #tpu.pipeline_mode<synchronous>, transform_indices = @transform_8, window_bounds = array<i64: 1, 32>}, {pipeline_mode = #tpu.pipeline_mode<synchronous>, transform_indices = @transform_9, window_bounds = array<i64: 1, 32>}, {pipeline_mode = #tpu.pipeline_mode<synchronous>, transform_indices = @transform_10, window_bounds = array<i64: 1, 32>}, {pipeline_mode = #tpu.pipeline_mode<synchronous>, transform_indices = @transform_11, window_bounds = array<i64: 32, 64>}, {pipeline_mode = #tpu.pipeline_mode<synchronous>, transform_indices = @transform_12, window_bounds = array<i64: 1, 64>}, {pipeline_mode = #tpu.pipeline_mode<synchronous>, transform_indices = @transform_13, window_bounds = array<i64: 64, 32>}, {pipeline_mode = #tpu.pipeline_mode<synchronous>, transform_indices = @transform_14, window_bounds = array<i64: 1, 32>}, {pipeline_mode = #tpu.pipeline_mode<synchronous>, transform_indices = @transform_15, window_bounds = array<i64: 1, 32>}, {pipeline_mode = #tpu.pipeline_mode<synchronous>, transform_indices = @transform_16, window_bounds = array<i64: 1, 32>}, {transform_indices = @transform_17, window_bounds = array<i64: 1, 8, 32>}]} {
    %c0_i32 = arith.constant 0 : i32
    %0 = arith.cmpi eq, %arg1, %c0_i32 : i32
    %1 = arith.extui %0 : i1 to i32
    %c0_i32_0 = arith.constant 0 : i32
    %2 = arith.cmpi ne, %1, %c0_i32_0 : i32
    scf.if %2 {
      %c0_107 = arith.constant 0 : index
      %c0_108 = arith.constant 0 : index
      %c0_109 = arith.constant 0 : index
      %234 = vector.load %arg2[%c0_107, %c0_108, %c0_109] : memref<1x16x32xf32, #tpu.memory_space<vmem>>, vector<1x16x32xf32>
      %235 = vector.shape_cast %234 : vector<1x16x32xf32> to vector<16x32xf32>
      %236 = arith.truncf %235 : vector<16x32xf32> to vector<16x32xbf16>
      %c0_110 = arith.constant 0 : index
      %c0_111 = arith.constant 0 : index
      %c0_112 = arith.constant 0 : index
      %237 = vector.load %arg4[%c0_110, %c0_111, %c0_112] : memref<4x32x8xbf16, #tpu.memory_space<vmem>>, vector<4x32x8xbf16>
      "tpu.trace_start"() <{level = 10 : i32, message = "sd,hde->hes"}> : () -> ()
      %cst_113 = arith.constant dense<0.000000e+00> : vector<4x8x16xf32>
      %238 = tpu.matmul %237, %236, %cst_113 {dimension_numbers = #tpu.dot_dimension_numbers<[1], [1], [0, 2], [0], [0, 0, 0, 2, 1, 0], [], []>} : vector<4x32x8xbf16>, vector<16x32xbf16>, vector<4x8x16xf32> -> vector<4x8x16xf32>
      "tpu.trace_stop"() : () -> ()
      %c0_114 = arith.constant 0 : index
      %c0_115 = arith.constant 0 : index
      %c0_116 = arith.constant 0 : index
      %239 = vector.load %arg5[%c0_114, %c0_115, %c0_116] : memref<4x32x8xbf16, #tpu.memory_space<vmem>>, vector<4x32x8xbf16>
      "tpu.trace_start"() <{level = 10 : i32, message = "sd,hde->hse"}> : () -> ()
      %cst_117 = arith.constant dense<0.000000e+00> : vector<4x8x16xf32>
      %240 = tpu.matmul %239, %236, %cst_117 {dimension_numbers = #tpu.dot_dimension_numbers<[1], [1], [0, 2], [0], [0, 0, 0, 2, 1, 0], [], []>} : vector<4x32x8xbf16>, vector<16x32xbf16>, vector<4x8x16xf32> -> vector<4x8x16xf32>
      %241 = tpu.transpose %240, [0, 2, 1] : vector<4x8x16xf32> -> vector<4x16x8xf32>
      "tpu.trace_stop"() : () -> ()
      %c0_118 = arith.constant 0 : index
      %c0_119 = arith.constant 0 : index
      %c0_120 = arith.constant 0 : index
      %242 = vector.load %arg8[%c0_118, %c0_119, %c0_120] : memref<4x8x1xf32, #tpu.memory_space<vmem>>, vector<4x8x1xf32>
      %243 = vector.broadcast %242 : vector<4x8x1xf32> to vector<4x8x16xf32>
      %244 = arith.addf %238, %243 : vector<4x8x16xf32>
      %245 = arith.truncf %244 : vector<4x8x16xf32> to vector<4x8x16xbf16>
      %c0_121 = arith.constant 0 : index
      %c0_122 = arith.constant 0 : index
      %c0_123 = arith.constant 0 : index
      %246 = vector.load %arg9[%c0_121, %c0_122, %c0_123] : memref<4x1x8xf32, #tpu.memory_space<vmem>>, vector<4x1x8xf32>
      %247 = vector.broadcast %246 : vector<4x1x8xf32> to vector<4x16x8xf32>
      %248 = arith.addf %241, %247 : vector<4x16x8xf32>
      %249 = arith.truncf %248 : vector<4x16x8xf32> to vector<4x16x8xbf16>
      %c0_124 = arith.constant 0 : index
      %c0_125 = arith.constant 0 : index
      %c0_126 = arith.constant 0 : index
      %250 = vector.load %arg20[%c0_124, %c0_125, %c0_126] : memref<4x8x16xbf16, #tpu.memory_space<vmem>>, vector<4x8x16xbf16>
      tpu.vector_store %arg20[%c0_124, %c0_125, %c0_126], %245 {strides = array<i32>} : memref<4x8x16xbf16, #tpu.memory_space<vmem>>, vector<4x8x16xbf16>,
      %c0_127 = arith.constant 0 : index
      %c0_128 = arith.constant 0 : index
      %c0_129 = arith.constant 0 : index
      %251 = vector.load %arg21[%c0_127, %c0_128, %c0_129] : memref<4x16x8xbf16, #tpu.memory_space<vmem>>, vector<4x16x8xbf16>
      tpu.vector_store %arg21[%c0_127, %c0_128, %c0_129], %249 {strides = array<i32>} : memref<4x16x8xbf16, #tpu.memory_space<vmem>>, vector<4x16x8xbf16>,
    } else {
    }
    %c8_i32 = arith.constant 8 : i32
    %3 = arith.muli %arg1, %c8_i32 : i32
    %4 = tpu.assume_multiple %3, 8 : i32
    %c0 = arith.constant 0 : index
    %5 = arith.index_cast %4 : i32 to index
    %c0_1 = arith.constant 0 : index
    %6 = vector.load %arg2[%c0, %5, %c0_1] : memref<1x16x32xf32, #tpu.memory_space<vmem>>, vector<1x8x32xf32>
    %7 = vector.shape_cast %6 : vector<1x8x32xf32> to vector<8x32xf32>
    %8 = arith.truncf %7 : vector<8x32xf32> to vector<8x32xbf16>
    %cst = arith.constant 0.000000e+00 : f32
    %9 = vector.broadcast %cst : f32 to vector<8x32xf32>
    %c0_i32_2 = arith.constant 0 : i32
    %10 = arith.index_cast %c0_i32_2 : i32 to index
    %c0_3 = arith.constant 0 : index
    %c0_4 = arith.constant 0 : index
    %11 = vector.load %arg3[%10, %c0_3, %c0_4] : memref<4x32x8xbf16, #tpu.memory_space<vmem>>, vector<1x32x8xbf16>
    %12 = vector.shape_cast %11 : vector<1x32x8xbf16> to vector<32x8xbf16>
    %cst_5 = arith.constant dense<0.000000e+00> : vector<8x8xf32>
    %13 = tpu.matmul %8, %12, %cst_5 {dimension_numbers = #tpu.dot_dimension_numbers<[1], [0], [0], [1], [0, 0, 1, 1], [], []>} : vector<8x32xbf16>, vector<32x8xbf16>, vector<8x8xf32> -> vector<8x8xf32>
    %14 = arith.index_cast %c0_i32_2 : i32 to index
    %c0_6 = arith.constant 0 : index
    %c0_7 = arith.constant 0 : index
    %15 = vector.load %arg7[%14, %c0_6, %c0_7] : memref<4x1x8xf32, #tpu.memory_space<vmem>>, vector<1x1x8xf32>
    %16 = vector.shape_cast %15 : vector<1x1x8xf32> to vector<1x8xf32>
    %17 = vector.broadcast %16 : vector<1x8xf32> to vector<8x8xf32>
    %18 = arith.addf %13, %17 : vector<8x8xf32>
    %cst_8 = arith.constant 0.353553385 : f32
    %19 = vector.broadcast %cst_8 : f32 to vector<8x8xf32>
    %20 = arith.mulf %18, %19 : vector<8x8xf32>
    %21 = arith.truncf %20 : vector<8x8xf32> to vector<8x8xbf16>
    %22 = arith.index_cast %c0_i32_2 : i32 to index
    %c0_9 = arith.constant 0 : index
    %c0_10 = arith.constant 0 : index
    %23 = vector.load %arg20[%22, %c0_9, %c0_10] : memref<4x8x16xbf16, #tpu.memory_space<vmem>>, vector<1x8x16xbf16>
    %24 = vector.shape_cast %23 : vector<1x8x16xbf16> to vector<8x16xbf16>
    %cst_11 = arith.constant dense<0.000000e+00> : vector<8x16xf32>
    %25 = tpu.matmul %21, %24, %cst_11 {dimension_numbers = #tpu.dot_dimension_numbers<[1], [0], [0], [1], [0, 0, 1, 1], [], []>} : vector<8x8xbf16>, vector<8x16xbf16>, vector<8x16xf32> -> vector<8x16xf32>
    %cst_12 = arith.constant dense<0xFF800000> : vector<8xf32>
    %26 = vector.multi_reduction <maximumf>, %25, %cst_12 [1] : vector<8x16xf32> to vector<8xf32>
    %27 = vector.shape_cast %26 : vector<8xf32> to vector<8x1xf32>
    %28 = vector.broadcast %27 : vector<8x1xf32> to vector<8x16xf32>
    %29 = arith.subf %25, %28 : vector<8x16xf32>
    %30 = math.exp %29 : vector<8x16xf32>
    %cst_13 = arith.constant dense<0.000000e+00> : vector<8xf32>
    %31 = vector.multi_reduction <add>, %30, %cst_13 [1] : vector<8x16xf32> to vector<8xf32>
    %32 = vector.shape_cast %31 : vector<8xf32> to vector<8x1xf32>
    %33 = arith.truncf %30 : vector<8x16xf32> to vector<8x16xbf16>
    %34 = arith.index_cast %c0_i32_2 : i32 to index
    %c0_14 = arith.constant 0 : index
    %c0_15 = arith.constant 0 : index
    %35 = vector.load %arg21[%34, %c0_14, %c0_15] : memref<4x16x8xbf16, #tpu.memory_space<vmem>>, vector<1x16x8xbf16>
    %36 = vector.shape_cast %35 : vector<1x16x8xbf16> to vector<16x8xbf16>
    %cst_16 = arith.constant dense<0.000000e+00> : vector<8x8xf32>
    %37 = tpu.matmul %33, %36, %cst_16 {dimension_numbers = #tpu.dot_dimension_numbers<[1], [0], [0], [1], [0, 0, 1, 1], [], []>} : vector<8x16xbf16>, vector<16x8xbf16>, vector<8x8xf32> -> vector<8x8xf32>
    %38 = tpu.reciprocal %32 {approx = true} : vector<8x1xf32> -> vector<8x1xf32>
    %39 = vector.broadcast %38 : vector<8x1xf32> to vector<8x8xf32>
    %40 = arith.mulf %37, %39 : vector<8x8xf32>
    %41 = arith.truncf %40 : vector<8x8xf32> to vector<8x8xbf16>
    %42 = arith.index_cast %c0_i32_2 : i32 to index
    %c0_17 = arith.constant 0 : index
    %c0_18 = arith.constant 0 : index
    %43 = vector.load %arg6[%42, %c0_17, %c0_18] : memref<4x8x32xbf16, #tpu.memory_space<vmem>>, vector<1x8x32xbf16>
    %44 = vector.shape_cast %43 : vector<1x8x32xbf16> to vector<8x32xbf16>
    %cst_19 = arith.constant dense<0.000000e+00> : vector<8x32xf32>
    %45 = tpu.matmul %41, %44, %cst_19 {dimension_numbers = #tpu.dot_dimension_numbers<[1], [0], [0], [1], [0, 0, 1, 1], [], []>} : vector<8x8xbf16>, vector<8x32xbf16>, vector<8x32xf32> -> vector<8x32xf32>
    %46 = arith.addf %9, %45 : vector<8x32xf32>
    %c1_i32 = arith.constant 1 : i32
    %47 = arith.index_cast %c1_i32 : i32 to index
    %c0_20 = arith.constant 0 : index
    %c0_21 = arith.constant 0 : index
    %48 = vector.load %arg3[%47, %c0_20, %c0_21] : memref<4x32x8xbf16, #tpu.memory_space<vmem>>, vector<1x32x8xbf16>
    %49 = vector.shape_cast %48 : vector<1x32x8xbf16> to vector<32x8xbf16>
    %cst_22 = arith.constant dense<0.000000e+00> : vector<8x8xf32>
    %50 = tpu.matmul %8, %49, %cst_22 {dimension_numbers = #tpu.dot_dimension_numbers<[1], [0], [0], [1], [0, 0, 1, 1], [], []>} : vector<8x32xbf16>, vector<32x8xbf16>, vector<8x8xf32> -> vector<8x8xf32>
    %51 = arith.index_cast %c1_i32 : i32 to index
    %c0_23 = arith.constant 0 : index
    %c0_24 = arith.constant 0 : index
    %52 = vector.load %arg7[%51, %c0_23, %c0_24] : memref<4x1x8xf32, #tpu.memory_space<vmem>>, vector<1x1x8xf32>
    %53 = vector.shape_cast %52 : vector<1x1x8xf32> to vector<1x8xf32>
    %54 = vector.broadcast %53 : vector<1x8xf32> to vector<8x8xf32>
    %55 = arith.addf %50, %54 : vector<8x8xf32>
    %cst_25 = arith.constant 0.353553385 : f32
    %56 = vector.broadcast %cst_25 : f32 to vector<8x8xf32>
    %57 = arith.mulf %55, %56 : vector<8x8xf32>
    %58 = arith.truncf %57 : vector<8x8xf32> to vector<8x8xbf16>
    %59 = arith.index_cast %c1_i32 : i32 to index
    %c0_26 = arith.constant 0 : index
    %c0_27 = arith.constant 0 : index
    %60 = vector.load %arg20[%59, %c0_26, %c0_27] : memref<4x8x16xbf16, #tpu.memory_space<vmem>>, vector<1x8x16xbf16>
    %61 = vector.shape_cast %60 : vector<1x8x16xbf16> to vector<8x16xbf16>
    %cst_28 = arith.constant dense<0.000000e+00> : vector<8x16xf32>
    %62 = tpu.matmul %58, %61, %cst_28 {dimension_numbers = #tpu.dot_dimension_numbers<[1], [0], [0], [1], [0, 0, 1, 1], [], []>} : vector<8x8xbf16>, vector<8x16xbf16>, vector<8x16xf32> -> vector<8x16xf32>
    %cst_29 = arith.constant dense<0xFF800000> : vector<8xf32>
    %63 = vector.multi_reduction <maximumf>, %62, %cst_29 [1] : vector<8x16xf32> to vector<8xf32>
    %64 = vector.shape_cast %63 : vector<8xf32> to vector<8x1xf32>
    %65 = vector.broadcast %64 : vector<8x1xf32> to vector<8x16xf32>
    %66 = arith.subf %62, %65 : vector<8x16xf32>
    %67 = math.exp %66 : vector<8x16xf32>
    %cst_30 = arith.constant dense<0.000000e+00> : vector<8xf32>
    %68 = vector.multi_reduction <add>, %67, %cst_30 [1] : vector<8x16xf32> to vector<8xf32>
    %69 = vector.shape_cast %68 : vector<8xf32> to vector<8x1xf32>
    %70 = arith.truncf %67 : vector<8x16xf32> to vector<8x16xbf16>
    %71 = arith.index_cast %c1_i32 : i32 to index
    %c0_31 = arith.constant 0 : index
    %c0_32 = arith.constant 0 : index
    %72 = vector.load %arg21[%71, %c0_31, %c0_32] : memref<4x16x8xbf16, #tpu.memory_space<vmem>>, vector<1x16x8xbf16>
    %73 = vector.shape_cast %72 : vector<1x16x8xbf16> to vector<16x8xbf16>
    %cst_33 = arith.constant dense<0.000000e+00> : vector<8x8xf32>
    %74 = tpu.matmul %70, %73, %cst_33 {dimension_numbers = #tpu.dot_dimension_numbers<[1], [0], [0], [1], [0, 0, 1, 1], [], []>} : vector<8x16xbf16>, vector<16x8xbf16>, vector<8x8xf32> -> vector<8x8xf32>
    %75 = tpu.reciprocal %69 {approx = true} : vector<8x1xf32> -> vector<8x1xf32>
    %76 = vector.broadcast %75 : vector<8x1xf32> to vector<8x8xf32>
    %77 = arith.mulf %74, %76 : vector<8x8xf32>
    %78 = arith.truncf %77 : vector<8x8xf32> to vector<8x8xbf16>
    %79 = arith.index_cast %c1_i32 : i32 to index
    %c0_34 = arith.constant 0 : index
    %c0_35 = arith.constant 0 : index
    %80 = vector.load %arg6[%79, %c0_34, %c0_35] : memref<4x8x32xbf16, #tpu.memory_space<vmem>>, vector<1x8x32xbf16>
    %81 = vector.shape_cast %80 : vector<1x8x32xbf16> to vector<8x32xbf16>
    %cst_36 = arith.constant dense<0.000000e+00> : vector<8x32xf32>
    %82 = tpu.matmul %78, %81, %cst_36 {dimension_numbers = #tpu.dot_dimension_numbers<[1], [0], [0], [1], [0, 0, 1, 1], [], []>} : vector<8x8xbf16>, vector<8x32xbf16>, vector<8x32xf32> -> vector<8x32xf32>
    %83 = arith.addf %46, %82 : vector<8x32xf32>
    %c2_i32 = arith.constant 2 : i32
    %84 = arith.index_cast %c2_i32 : i32 to index
    %c0_37 = arith.constant 0 : index
    %c0_38 = arith.constant 0 : index
    %85 = vector.load %arg3[%84, %c0_37, %c0_38] : memref<4x32x8xbf16, #tpu.memory_space<vmem>>, vector<1x32x8xbf16>
    %86 = vector.shape_cast %85 : vector<1x32x8xbf16> to vector<32x8xbf16>
    %cst_39 = arith.constant dense<0.000000e+00> : vector<8x8xf32>
    %87 = tpu.matmul %8, %86, %cst_39 {dimension_numbers = #tpu.dot_dimension_numbers<[1], [0], [0], [1], [0, 0, 1, 1], [], []>} : vector<8x32xbf16>, vector<32x8xbf16>, vector<8x8xf32> -> vector<8x8xf32>
    %88 = arith.index_cast %c2_i32 : i32 to index
    %c0_40 = arith.constant 0 : index
    %c0_41 = arith.constant 0 : index
    %89 = vector.load %arg7[%88, %c0_40, %c0_41] : memref<4x1x8xf32, #tpu.memory_space<vmem>>, vector<1x1x8xf32>
    %90 = vector.shape_cast %89 : vector<1x1x8xf32> to vector<1x8xf32>
    %91 = vector.broadcast %90 : vector<1x8xf32> to vector<8x8xf32>
    %92 = arith.addf %87, %91 : vector<8x8xf32>
    %cst_42 = arith.constant 0.353553385 : f32
    %93 = vector.broadcast %cst_42 : f32 to vector<8x8xf32>
    %94 = arith.mulf %92, %93 : vector<8x8xf32>
    %95 = arith.truncf %94 : vector<8x8xf32> to vector<8x8xbf16>
    %96 = arith.index_cast %c2_i32 : i32 to index
    %c0_43 = arith.constant 0 : index
    %c0_44 = arith.constant 0 : index
    %97 = vector.load %arg20[%96, %c0_43, %c0_44] : memref<4x8x16xbf16, #tpu.memory_space<vmem>>, vector<1x8x16xbf16>
    %98 = vector.shape_cast %97 : vector<1x8x16xbf16> to vector<8x16xbf16>
    %cst_45 = arith.constant dense<0.000000e+00> : vector<8x16xf32>
    %99 = tpu.matmul %95, %98, %cst_45 {dimension_numbers = #tpu.dot_dimension_numbers<[1], [0], [0], [1], [0, 0, 1, 1], [], []>} : vector<8x8xbf16>, vector<8x16xbf16>, vector<8x16xf32> -> vector<8x16xf32>
    %cst_46 = arith.constant dense<0xFF800000> : vector<8xf32>
    %100 = vector.multi_reduction <maximumf>, %99, %cst_46 [1] : vector<8x16xf32> to vector<8xf32>
    %101 = vector.shape_cast %100 : vector<8xf32> to vector<8x1xf32>
    %102 = vector.broadcast %101 : vector<8x1xf32> to vector<8x16xf32>
    %103 = arith.subf %99, %102 : vector<8x16xf32>
    %104 = math.exp %103 : vector<8x16xf32>
    %cst_47 = arith.constant dense<0.000000e+00> : vector<8xf32>
    %105 = vector.multi_reduction <add>, %104, %cst_47 [1] : vector<8x16xf32> to vector<8xf32>
    %106 = vector.shape_cast %105 : vector<8xf32> to vector<8x1xf32>
    %107 = arith.truncf %104 : vector<8x16xf32> to vector<8x16xbf16>
    %108 = arith.index_cast %c2_i32 : i32 to index
    %c0_48 = arith.constant 0 : index
    %c0_49 = arith.constant 0 : index
    %109 = vector.load %arg21[%108, %c0_48, %c0_49] : memref<4x16x8xbf16, #tpu.memory_space<vmem>>, vector<1x16x8xbf16>
    %110 = vector.shape_cast %109 : vector<1x16x8xbf16> to vector<16x8xbf16>
    %cst_50 = arith.constant dense<0.000000e+00> : vector<8x8xf32>
    %111 = tpu.matmul %107, %110, %cst_50 {dimension_numbers = #tpu.dot_dimension_numbers<[1], [0], [0], [1], [0, 0, 1, 1], [], []>} : vector<8x16xbf16>, vector<16x8xbf16>, vector<8x8xf32> -> vector<8x8xf32>
    %112 = tpu.reciprocal %106 {approx = true} : vector<8x1xf32> -> vector<8x1xf32>
    %113 = vector.broadcast %112 : vector<8x1xf32> to vector<8x8xf32>
    %114 = arith.mulf %111, %113 : vector<8x8xf32>
    %115 = arith.truncf %114 : vector<8x8xf32> to vector<8x8xbf16>
    %116 = arith.index_cast %c2_i32 : i32 to index
    %c0_51 = arith.constant 0 : index
    %c0_52 = arith.constant 0 : index
    %117 = vector.load %arg6[%116, %c0_51, %c0_52] : memref<4x8x32xbf16, #tpu.memory_space<vmem>>, vector<1x8x32xbf16>
    %118 = vector.shape_cast %117 : vector<1x8x32xbf16> to vector<8x32xbf16>
    %cst_53 = arith.constant dense<0.000000e+00> : vector<8x32xf32>
    %119 = tpu.matmul %115, %118, %cst_53 {dimension_numbers = #tpu.dot_dimension_numbers<[1], [0], [0], [1], [0, 0, 1, 1], [], []>} : vector<8x8xbf16>, vector<8x32xbf16>, vector<8x32xf32> -> vector<8x32xf32>
    %120 = arith.addf %83, %119 : vector<8x32xf32>
    %c3_i32 = arith.constant 3 : i32
    %121 = arith.index_cast %c3_i32 : i32 to index
    %c0_54 = arith.constant 0 : index
    %c0_55 = arith.constant 0 : index
    %122 = vector.load %arg3[%121, %c0_54, %c0_55] : memref<4x32x8xbf16, #tpu.memory_space<vmem>>, vector<1x32x8xbf16>
    %123 = vector.shape_cast %122 : vector<1x32x8xbf16> to vector<32x8xbf16>
    %cst_56 = arith.constant dense<0.000000e+00> : vector<8x8xf32>
    %124 = tpu.matmul %8, %123, %cst_56 {dimension_numbers = #tpu.dot_dimension_numbers<[1], [0], [0], [1], [0, 0, 1, 1], [], []>} : vector<8x32xbf16>, vector<32x8xbf16>, vector<8x8xf32> -> vector<8x8xf32>
    %125 = arith.index_cast %c3_i32 : i32 to index
    %c0_57 = arith.constant 0 : index
    %c0_58 = arith.constant 0 : index
    %126 = vector.load %arg7[%125, %c0_57, %c0_58] : memref<4x1x8xf32, #tpu.memory_space<vmem>>, vector<1x1x8xf32>
    %127 = vector.shape_cast %126 : vector<1x1x8xf32> to vector<1x8xf32>
    %128 = vector.broadcast %127 : vector<1x8xf32> to vector<8x8xf32>
    %129 = arith.addf %124, %128 : vector<8x8xf32>
    %cst_59 = arith.constant 0.353553385 : f32
    %130 = vector.broadcast %cst_59 : f32 to vector<8x8xf32>
    %131 = arith.mulf %129, %130 : vector<8x8xf32>
    %132 = arith.truncf %131 : vector<8x8xf32> to vector<8x8xbf16>
    %133 = arith.index_cast %c3_i32 : i32 to index
    %c0_60 = arith.constant 0 : index
    %c0_61 = arith.constant 0 : index
    %134 = vector.load %arg20[%133, %c0_60, %c0_61] : memref<4x8x16xbf16, #tpu.memory_space<vmem>>, vector<1x8x16xbf16>
    %135 = vector.shape_cast %134 : vector<1x8x16xbf16> to vector<8x16xbf16>
    %cst_62 = arith.constant dense<0.000000e+00> : vector<8x16xf32>
    %136 = tpu.matmul %132, %135, %cst_62 {dimension_numbers = #tpu.dot_dimension_numbers<[1], [0], [0], [1], [0, 0, 1, 1], [], []>} : vector<8x8xbf16>, vector<8x16xbf16>, vector<8x16xf32> -> vector<8x16xf32>
    %cst_63 = arith.constant dense<0xFF800000> : vector<8xf32>
    %137 = vector.multi_reduction <maximumf>, %136, %cst_63 [1] : vector<8x16xf32> to vector<8xf32>
    %138 = vector.shape_cast %137 : vector<8xf32> to vector<8x1xf32>
    %139 = vector.broadcast %138 : vector<8x1xf32> to vector<8x16xf32>
    %140 = arith.subf %136, %139 : vector<8x16xf32>
    %141 = math.exp %140 : vector<8x16xf32>
    %cst_64 = arith.constant dense<0.000000e+00> : vector<8xf32>
    %142 = vector.multi_reduction <add>, %141, %cst_64 [1] : vector<8x16xf32> to vector<8xf32>
    %143 = vector.shape_cast %142 : vector<8xf32> to vector<8x1xf32>
    %144 = arith.truncf %141 : vector<8x16xf32> to vector<8x16xbf16>
    %145 = arith.index_cast %c3_i32 : i32 to index
    %c0_65 = arith.constant 0 : index
    %c0_66 = arith.constant 0 : index
    %146 = vector.load %arg21[%145, %c0_65, %c0_66] : memref<4x16x8xbf16, #tpu.memory_space<vmem>>, vector<1x16x8xbf16>
    %147 = vector.shape_cast %146 : vector<1x16x8xbf16> to vector<16x8xbf16>
    %cst_67 = arith.constant dense<0.000000e+00> : vector<8x8xf32>
    %148 = tpu.matmul %144, %147, %cst_67 {dimension_numbers = #tpu.dot_dimension_numbers<[1], [0], [0], [1], [0, 0, 1, 1], [], []>} : vector<8x16xbf16>, vector<16x8xbf16>, vector<8x8xf32> -> vector<8x8xf32>
    %149 = tpu.reciprocal %143 {approx = true} : vector<8x1xf32> -> vector<8x1xf32>
    %150 = vector.broadcast %149 : vector<8x1xf32> to vector<8x8xf32>
    %151 = arith.mulf %148, %150 : vector<8x8xf32>
    %152 = arith.truncf %151 : vector<8x8xf32> to vector<8x8xbf16>
    %153 = arith.index_cast %c3_i32 : i32 to index
    %c0_68 = arith.constant 0 : index
    %c0_69 = arith.constant 0 : index
    %154 = vector.load %arg6[%153, %c0_68, %c0_69] : memref<4x8x32xbf16, #tpu.memory_space<vmem>>, vector<1x8x32xbf16>
    %155 = vector.shape_cast %154 : vector<1x8x32xbf16> to vector<8x32xbf16>
    %cst_70 = arith.constant dense<0.000000e+00> : vector<8x32xf32>
    %156 = tpu.matmul %152, %155, %cst_70 {dimension_numbers = #tpu.dot_dimension_numbers<[1], [0], [0], [1], [0, 0, 1, 1], [], []>} : vector<8x8xbf16>, vector<8x32xbf16>, vector<8x32xf32> -> vector<8x32xf32>
    %157 = arith.addf %120, %156 : vector<8x32xf32>
    %c4_i32 = arith.constant 4 : i32
    %c0_71 = arith.constant 0 : index
    %c0_72 = arith.constant 0 : index
    %158 = vector.load %arg10[%c0_71, %c0_72] : memref<1x32xf32, #tpu.memory_space<vmem>>, vector<1x32xf32>
    %159 = vector.broadcast %158 : vector<1x32xf32> to vector<8x32xf32>
    %160 = arith.addf %157, %159 : vector<8x32xf32>
    %161 = arith.addf %7, %160 : vector<8x32xf32>
    %c0_73 = arith.constant 0 : index
    %c0_74 = arith.constant 0 : index
    %162 = vector.load %arg11[%c0_73, %c0_74] : memref<1x32xf32, #tpu.memory_space<vmem>>, vector<1x32xf32>
    %c0_75 = arith.constant 0 : index
    %c0_76 = arith.constant 0 : index
    %163 = vector.load %arg12[%c0_75, %c0_76] : memref<1x32xf32, #tpu.memory_space<vmem>>, vector<1x32xf32>
    %cst_77 = arith.constant dense<0.000000e+00> : vector<8xf32>
    %164 = vector.multi_reduction <add>, %161, %cst_77 [1] : vector<8x32xf32> to vector<8xf32>
    %165 = vector.shape_cast %164 : vector<8xf32> to vector<8x1xf32>
    %cst_78 = arith.constant 3.200000e+01 : f32
    %166 = vector.broadcast %cst_78 : f32 to vector<8x1xf32>
    %167 = arith.divf %165, %166 : vector<8x1xf32>
    %168 = vector.broadcast %167 : vector<8x1xf32> to vector<8x32xf32>
    %169 = arith.subf %161, %168 : vector<8x32xf32>
    %170 = arith.mulf %169, %169 : vector<8x32xf32>
    %cst_79 = arith.constant dense<0.000000e+00> : vector<8xf32>
    %171 = vector.multi_reduction <add>, %170, %cst_79 [1] : vector<8x32xf32> to vector<8xf32>
    %172 = vector.shape_cast %171 : vector<8xf32> to vector<8x1xf32>
    %cst_80 = arith.constant 3.200000e+01 : f32
    %173 = vector.broadcast %cst_80 : f32 to vector<8x1xf32>
    %174 = arith.divf %172, %173 : vector<8x1xf32>
    %175 = vector.broadcast %167 : vector<8x1xf32> to vector<8x32xf32>
    %176 = arith.subf %161, %175 : vector<8x32xf32>
    %cst_81 = arith.constant 9.99999974E-6 : f32
    %177 = vector.broadcast %cst_81 : f32 to vector<8x1xf32>
    %178 = arith.addf %174, %177 : vector<8x1xf32>
    %179 = math.rsqrt %178 : vector<8x1xf32>
    %180 = vector.broadcast %179 : vector<8x1xf32> to vector<8x32xf32>
    %181 = arith.mulf %176, %180 : vector<8x32xf32>
    %182 = vector.broadcast %162 : vector<1x32xf32> to vector<8x32xf32>
    %183 = arith.mulf %181, %182 : vector<8x32xf32>
    %184 = vector.broadcast %163 : vector<1x32xf32> to vector<8x32xf32>
    %185 = arith.addf %183, %184 : vector<8x32xf32>
    %186 = arith.truncf %185 : vector<8x32xf32> to vector<8x32xbf16>
    %c0_82 = arith.constant 0 : index
    %c0_83 = arith.constant 0 : index
    %187 = vector.load %arg13[%c0_82, %c0_83] : memref<32x64xbf16, #tpu.memory_space<vmem>>, vector<32x64xbf16>
    %cst_84 = arith.constant dense<0.000000e+00> : vector<8x64xf32>
    %188 = tpu.matmul %186, %187, %cst_84 {dimension_numbers = #tpu.dot_dimension_numbers<[1], [0], [0], [1], [0, 0, 1, 1], [], []>} : vector<8x32xbf16>, vector<32x64xbf16>, vector<8x64xf32> -> vector<8x64xf32>
    %c0_85 = arith.constant 0 : index
    %c0_86 = arith.constant 0 : index
    %189 = vector.load %arg14[%c0_85, %c0_86] : memref<1x64xf32, #tpu.memory_space<vmem>>, vector<1x64xf32>
    %190 = vector.broadcast %189 : vector<1x64xf32> to vector<8x64xf32>
    %191 = arith.addf %188, %190 : vector<8x64xf32>
    %cst_87 = arith.constant 5.000000e-01 : f32
    %192 = vector.broadcast %cst_87 : f32 to vector<8x64xf32>
    %193 = arith.mulf %192, %191 : vector<8x64xf32>
    %cst_88 = arith.constant 0.707106769 : f32
    %194 = vector.broadcast %cst_88 : f32 to vector<8x64xf32>
    %195 = arith.mulf %191, %194 : vector<8x64xf32>
    %196 = math.erf %195 : vector<8x64xf32>
    %cst_89 = arith.constant 1.000000e+00 : f32
    %197 = vector.broadcast %cst_89 : f32 to vector<8x64xf32>
    %198 = arith.addf %197, %196 : vector<8x64xf32>
    %199 = arith.mulf %193, %198 : vector<8x64xf32>
    %200 = arith.truncf %199 : vector<8x64xf32> to vector<8x64xbf16>
    %c0_90 = arith.constant 0 : index
    %c0_91 = arith.constant 0 : index
    %201 = vector.load %arg15[%c0_90, %c0_91] : memref<64x32xbf16, #tpu.memory_space<vmem>>, vector<64x32xbf16>
    %cst_92 = arith.constant dense<0.000000e+00> : vector<8x32xf32>
    %202 = tpu.matmul %200, %201, %cst_92 {dimension_numbers = #tpu.dot_dimension_numbers<[1], [0], [0], [1], [0, 0, 1, 1], [], []>} : vector<8x64xbf16>, vector<64x32xbf16>, vector<8x32xf32> -> vector<8x32xf32>
    %c0_93 = arith.constant 0 : index
    %c0_94 = arith.constant 0 : index
    %203 = vector.load %arg16[%c0_93, %c0_94] : memref<1x32xf32, #tpu.memory_space<vmem>>, vector<1x32xf32>
    %204 = vector.broadcast %203 : vector<1x32xf32> to vector<8x32xf32>
    %205 = arith.addf %202, %204 : vector<8x32xf32>
    %206 = arith.addf %205, %185 : vector<8x32xf32>
    %c0_95 = arith.constant 0 : index
    %c0_96 = arith.constant 0 : index
    %207 = vector.load %arg17[%c0_95, %c0_96] : memref<1x32xf32, #tpu.memory_space<vmem>>, vector<1x32xf32>
    %c0_97 = arith.constant 0 : index
    %c0_98 = arith.constant 0 : index
    %208 = vector.load %arg18[%c0_97, %c0_98] : memref<1x32xf32, #tpu.memory_space<vmem>>, vector<1x32xf32>
    %cst_99 = arith.constant dense<0.000000e+00> : vector<8xf32>
    %209 = vector.multi_reduction <add>, %206, %cst_99 [1] : vector<8x32xf32> to vector<8xf32>
    %210 = vector.shape_cast %209 : vector<8xf32> to vector<8x1xf32>
    %cst_100 = arith.constant 3.200000e+01 : f32
    %211 = vector.broadcast %cst_100 : f32 to vector<8x1xf32>
    %212 = arith.divf %210, %211 : vector<8x1xf32>
    %213 = vector.broadcast %212 : vector<8x1xf32> to vector<8x32xf32>
    %214 = arith.subf %206, %213 : vector<8x32xf32>
    %215 = arith.mulf %214, %214 : vector<8x32xf32>
    %cst_101 = arith.constant dense<0.000000e+00> : vector<8xf32>
    %216 = vector.multi_reduction <add>, %215, %cst_101 [1] : vector<8x32xf32> to vector<8xf32>
    %217 = vector.shape_cast %216 : vector<8xf32> to vector<8x1xf32>
    %cst_102 = arith.constant 3.200000e+01 : f32
    %218 = vector.broadcast %cst_102 : f32 to vector<8x1xf32>
    %219 = arith.divf %217, %218 : vector<8x1xf32>
    %220 = vector.broadcast %212 : vector<8x1xf32> to vector<8x32xf32>
    %221 = arith.subf %206, %220 : vector<8x32xf32>
    %cst_103 = arith.constant 9.99999974E-6 : f32
    %222 = vector.broadcast %cst_103 : f32 to vector<8x1xf32>
    %223 = arith.addf %219, %222 : vector<8x1xf32>
    %224 = math.rsqrt %223 : vector<8x1xf32>
    %225 = vector.broadcast %224 : vector<8x1xf32> to vector<8x32xf32>
    %226 = arith.mulf %221, %225 : vector<8x32xf32>
    %227 = vector.broadcast %207 : vector<1x32xf32> to vector<8x32xf32>
    %228 = arith.mulf %226, %227 : vector<8x32xf32>
    %229 = vector.broadcast %208 : vector<1x32xf32> to vector<8x32xf32>
    %230 = arith.addf %228, %229 : vector<8x32xf32>
    %c0_104 = arith.constant 0 : index
    %c0_105 = arith.constant 0 : index
    %c0_106 = arith.constant 0 : index
    %231 = vector.load %arg19[%c0_104, %c0_105, %c0_106] : memref<1x8x32xf32, #tpu.memory_space<vmem>>, vector<1x8x32xf32>
    %232 = vector.shape_cast %231 : vector<1x8x32xf32> to vector<8x32xf32>
    %233 = vector.shape_cast %230 : vector<8x32xf32> to vector<1x8x32xf32>
    tpu.vector_store %arg19[%c0_104, %c0_105, %c0_106], %233 {strides = array<i32>} : memref<1x8x32xf32, #tpu.memory_space<vmem>>, vector<1x8x32xf32>,
    return
  }
  func.func @transform_0(%arg0: i32, %arg1: i32) -> (i32, i32, i32) {
    %c0_i32 = arith.constant 0 : i32
    %c0_i32_0 = arith.constant 0 : i32
    %c0_i32_1 = arith.constant 0 : i32
    return %arg0, %c0_i32, %c0_i32_0 : i32, i32, i32
  }
  func.func @transform_1(%arg0: i32, %arg1: i32) -> (i32, i32, i32) {
    %c0_i32 = arith.constant 0 : i32
    %c0_i32_0 = arith.constant 0 : i32
    %c0_i32_1 = arith.constant 0 : i32
    %c0_i32_2 = arith.constant 0 : i32
    return %c0_i32, %c0_i32_0, %c0_i32_1 : i32, i32, i32
  }
  func.func @transform_2(%arg0: i32, %arg1: i32) -> (i32, i32, i32) {
    %c0_i32 = arith.constant 0 : i32
    %c0_i32_0 = arith.constant 0 : i32
    %c0_i32_1 = arith.constant 0 : i32
    %c0_i32_2 = arith.constant 0 : i32
    return %c0_i32, %c0_i32_0, %c0_i32_1 : i32, i32, i32
  }
  func.func @transform_3(%arg0: i32, %arg1: i32) -> (i32, i32, i32) {
    %c0_i32 = arith.constant 0 : i32
    %c0_i32_0 = arith.constant 0 : i32
    %c0_i32_1 = arith.constant 0 : i32
    %c0_i32_2 = arith.constant 0 : i32
    return %c0_i32, %c0_i32_0, %c0_i32_1 : i32, i32, i32
  }
  func.func @transform_4(%arg0: i32, %arg1: i32) -> (i32, i32, i32) {
    %c0_i32 = arith.constant 0 : i32
    %c0_i32_0 = arith.constant 0 : i32
    %c0_i32_1 = arith.constant 0 : i32
    %c0_i32_2 = arith.constant 0 : i32
    return %c0_i32, %c0_i32_0, %c0_i32_1 : i32, i32, i32
  }
  func.func @transform_5(%arg0: i32, %arg1: i32) -> (i32, i32, i32) {
    %c0_i32 = arith.constant 0 : i32
    %c0_i32_0 = arith.constant 0 : i32
    %c0_i32_1 = arith.constant 0 : i32
    %c0_i32_2 = arith.constant 0 : i32
    return %c0_i32, %c0_i32_0, %c0_i32_1 : i32, i32, i32
  }
  func.func @transform_6(%arg0: i32, %arg1: i32) -> (i32, i32, i32) {
    %c0_i32 = arith.constant 0 : i32
    %c0_i32_0 = arith.constant 0 : i32
    %c0_i32_1 = arith.constant 0 : i32
    %c0_i32_2 = arith.constant 0 : i32
    return %c0_i32, %c0_i32_0, %c0_i32_1 : i32, i32, i32
  }
  func.func @transform_7(%arg0: i32, %arg1: i32) -> (i32, i32, i32) {
    %c0_i32 = arith.constant 0 : i32
    %c0_i32_0 = arith.constant 0 : i32
    %c0_i32_1 = arith.constant 0 : i32
    %c0_i32_2 = arith.constant 0 : i32
    return %c0_i32, %c0_i32_0, %c0_i32_1 : i32, i32, i32
  }
  func.func @transform_8(%arg0: i32, %arg1: i32) -> (i32, i32) {
    %c0_i32 = arith.constant 0 : i32
    %c0_i32_0 = arith.constant 0 : i32
    %c0_i32_1 = arith.constant 0 : i32
    return %c0_i32, %c0_i32_0 : i32, i32
  }
  func.func @transform_9(%arg0: i32, %arg1: i32) -> (i32, i32) {
    %c0_i32 = arith.constant 0 : i32
    %c0_i32_0 = arith.constant 0 : i32
    %c0_i32_1 = arith.constant 0 : i32
    return %c0_i32, %c0_i32_0 : i32, i32
  }
  func.func @transform_10(%arg0: i32, %arg1: i32) -> (i32, i32) {
    %c0_i32 = arith.constant 0 : i32
    %c0_i32_0 = arith.constant 0 : i32
    %c0_i32_1 = arith.constant 0 : i32
    return %c0_i32, %c0_i32_0 : i32, i32
  }
  func.func @transform_11(%arg0: i32, %arg1: i32) -> (i32, i32) {
    %c0_i32 = arith.constant 0 : i32
    %c0_i32_0 = arith.constant 0 : i32
    %c0_i32_1 = arith.constant 0 : i32
    return %c0_i32, %c0_i32_0 : i32, i32
  }
  func.func @transform_12(%arg0: i32, %arg1: i32) -> (i32, i32) {
    %c0_i32 = arith.constant 0 : i32
    %c0_i32_0 = arith.constant 0 : i32
    %c0_i32_1 = arith.constant 0 : i32
    return %c0_i32, %c0_i32_0 : i32, i32
  }
  func.func @transform_13(%arg0: i32, %arg1: i32) -> (i32, i32) {
    %c0_i32 = arith.constant 0 : i32
    %c0_i32_0 = arith.constant 0 : i32
    %c0_i32_1 = arith.constant 0 : i32
    return %c0_i32, %c0_i32_0 : i32, i32
  }
  func.func @transform_14(%arg0: i32, %arg1: i32) -> (i32, i32) {
    %c0_i32 = arith.constant 0 : i32
    %c0_i32_0 = arith.constant 0 : i32
    %c0_i32_1 = arith.constant 0 : i32
    return %c0_i32, %c0_i32_0 : i32, i32
  }
  func.func @transform_15(%arg0: i32, %arg1: i32) -> (i32, i32) {
    %c0_i32 = arith.constant 0 : i32
    %c0_i32_0 = arith.constant 0 : i32
    %c0_i32_1 = arith.constant 0 : i32
    return %c0_i32, %c0_i32_0 : i32, i32
  }
  func.func @transform_16(%arg0: i32, %arg1: i32) -> (i32, i32) {
    %c0_i32 = arith.constant 0 : i32
    %c0_i32_0 = arith.constant 0 : i32
    %c0_i32_1 = arith.constant 0 : i32
    return %c0_i32, %c0_i32_0 : i32, i32
  }
  func.func @transform_17(%arg0: i32, %arg1: i32) -> (i32, i32, i32) {
    %c0_i32 = arith.constant 0 : i32
    %c0_i32_0 = arith.constant 0 : i32
    return %arg0, %arg1, %c0_i32 : i32, i32, i32
  }
}

</mosaic_0001>

<llo_original>
// kernel: tpu_custom_call.1
$region0: #{tpu_custom_call.1}
  #allocation0 [shape = 'u32[]', space=smem, size = 0x4, offset = 0x4, fixed_abs, tag = 'smem constant byte address 0x4 - core index']
  #allocation1 [shape = 'u32[144,128]{1,0:T(1,128)}', space=vmem, size = 0x12000, scoped, tag = 'internal scratch']
  #allocation2 [shape = 'bf16[4,8,16]{2,1,0:T(8,128)(2,1)}', space=vmem, size = 0x2000, scoped, tag = 'scratch operand']
  #allocation3 [shape = 'bf16[4,16,8]{2,1,0:T(8,128)(2,1)}', space=vmem, size = 0x4000, scoped, tag = 'scratch operand']
  %s0 = inlined_call_operand.vmem [shape: f32[2,16,32], index: 0, kind: input, shape index: {}]
  %s1 = inlined_call_operand.vmem [shape: bf16[4,32,8], index: 1, kind: input, shape index: {}]
  %s2 = inlined_call_operand.vmem [shape: bf16[4,32,8], index: 2, kind: input, shape index: {}]
  %s3 = inlined_call_operand.vmem [shape: bf16[4,32,8], index: 3, kind: input, shape index: {}]
  %s4 = inlined_call_operand.vmem [shape: bf16[4,8,32], index: 4, kind: input, shape index: {}]
  %s5 = inlined_call_operand.vmem [shape: f32[4,1,8], index: 5, kind: input, shape index: {}]
  %s6 = inlined_call_operand.vmem [shape: f32[4,8,1], index: 6, kind: input, shape index: {}]
  %s7 = inlined_call_operand.vmem [shape: f32[4,1,8], index: 7, kind: input, shape index: {}]
  %s8 = inlined_call_operand.vmem [shape: f32[1,32], index: 8, kind: input, shape index: {}]
  %s9 = inlined_call_operand.vmem [shape: f32[1,32], index: 9, kind: input, shape index: {}]
  %s10 = inlined_call_operand.vmem [shape: f32[1,32], index: 10, kind: input, shape index: {}]
  %s11 = inlined_call_operand.vmem [shape: bf16[32,64], index: 11, kind: input, shape index: {}]
  %s12 = inlined_call_operand.vmem [shape: f32[1,64], index: 12, kind: input, shape index: {}]
  %s13 = inlined_call_operand.vmem [shape: bf16[64,32], index: 13, kind: input, shape index: {}]
  %s14 = inlined_call_operand.vmem [shape: f32[1,32], index: 14, kind: input, shape index: {}]
  %s15 = inlined_call_operand.vmem [shape: f32[1,32], index: 15, kind: input, shape index: {}]
  %s16 = inlined_call_operand.vmem [shape: f32[1,32], index: 16, kind: input, shape index: {}]
  %s17 = inlined_call_operand.hbm [shape: f32[2,16,32], index: 17, kind: output, shape index: {}]
  %s18 = sld [smem:[#allocation0]]
  $region105: #{tpu_custom_call.1} parent=0
    _
  %s20 = ssub.s32 1, %s18
  %s21 = scalar_select 0, %s20, %s18
  $region1: #{tpu_custom_call.1} parent=0
    #allocation4 [shape = 'u8[8192]{0}', space=vmem, size = 0x2000, scoped, tag = 'output window, operand 0']
    #allocation5 [shape = 's32[2]{0}', space=sflag, size = 0x8, scoped, tag = 'scoped memory for tpu_custom_call.1']
    %22 = vsyncpa [#allocation5], 0
    %s23 = scalar_lea.sflag [#allocation5], 1
    %24 = vsyncpa %s23, 0
    loop: start=0, step=1, limit=6
    $region2: #{tpu_custom_call.1} parent=1 // loop_pre_header
      _
    $region3: #{tpu_custom_call.1} parent=1 // loop_header
      %s26 = sphi 0, %s30
      %p27 = scmp.ge.s32.totalorder %s26, 6
      %s33 = sphi 0, %s45
      %s34 = sphi 0, %s41
      %s35 = sphi 0, %s33
      %s36 = sphi 0, %s34
      %s37 = sphi 0, %s35
      %s38 = sphi 0, %s36
      %s48 = sphi 0, %s50
      %s51 = sphi 0, %s48
      %s52 = sphi 0, %s51
      %s68 = sphi 0, %s52
      %s72 = sphi 0, %s72
      %s74 = sphi 0, %s72
      %s75 = sphi 0, %s74
      %s89 = sphi 0, %s75
      %s93 = sphi 0, %s93
      %s95 = sphi 0, %s93
      %s96 = sphi 0, %s95
      %s110 = sphi 0, %s96
      %s114 = sphi 0, %s114
      %s116 = sphi 0, %s114
      %s117 = sphi 0, %s116
      %s131 = sphi 0, %s117
      %s135 = sphi 0, %s135
      %s137 = sphi 0, %s135
      %s138 = sphi 0, %s137
      %s152 = sphi 0, %s138
      %s156 = sphi 0, %s156
      %s158 = sphi 0, %s156
      %s159 = sphi 0, %s158
      %s173 = sphi 0, %s159
      %s177 = sphi 0, %s177
      %s179 = sphi 0, %s177
      %s180 = sphi 0, %s179
      %s194 = sphi 0, %s180
      %s198 = sphi 0, %s198
      %s200 = sphi 0, %s198
      %s201 = sphi 0, %s200
      %s215 = sphi 0, %s201
      %s219 = sphi 0, %s219
      %s221 = sphi 0, %s219
      %s222 = sphi 0, %s221
      %s236 = sphi 0, %s222
      %s240 = sphi 0, %s240
      %s242 = sphi 0, %s240
      %s243 = sphi 0, %s242
      %s257 = sphi 0, %s243
      %s261 = sphi 0, %s261
      %s263 = sphi 0, %s261
      %s264 = sphi 0, %s263
      %s278 = sphi 0, %s264
      %s282 = sphi 0, %s282
      %s284 = sphi 0, %s282
      %s285 = sphi 0, %s284
      %s299 = sphi 0, %s285
      %s303 = sphi 0, %s303
      %s305 = sphi 0, %s303
      %s306 = sphi 0, %s305
      %s320 = sphi 0, %s306
      %s324 = sphi 0, %s324
      %s326 = sphi 0, %s324
      %s327 = sphi 0, %s326
      %s341 = sphi 0, %s327
      %s345 = sphi 0, %s345
      %s347 = sphi 0, %s345
      %s348 = sphi 0, %s347
      %s362 = sphi 0, %s348
      %s366 = sphi 0, %s366
      %s368 = sphi 0, %s366
      %s369 = sphi 0, %s368
      %s383 = sphi 0, %s369
      %s387 = sphi 0, %s387
      %s389 = sphi 0, %s387
      %s390 = sphi 0, %s389
      %s404 = sphi 0, %s390
      %s412 = sphi 0, %s414
      %s415 = sphi 0, %s412
      %s416 = sphi 0, %s415
      %s432 = sphi 0, %s416
    $region4: #{tpu_custom_call.1} parent=1 // loop_header_branch
      %29 = sbr.rel (%p27) target = $region8
    $region5: #{tpu_custom_call.1} parent=1 // loop_body
      %s31 = ssub.s32 %s26, 1
      %s32 = ssub.s32 %s26, 2
      %s39 = sadd.s32 1, %s34
      %p40 = scmp.ge.s32.totalorder %s39, 2
      %s41 = scalar_select %p40, 0, %s39
      %s42 = sadd.s32 1, %s33
      %s43 = scalar_select %p40, %s42, %s33
      %p44 = scmp.ge.s32.totalorder %s43, 2
      %s45 = scalar_select %p44, 0, %s43
      %s46 = ssub.s32 %s33, %s45
      %p47 = scmp.eq.s32.totalorder %s46, 0
      %s49 = sadd.s32 %s48, 1
      %s50 = scalar_select %p47, %s48, %s49
      %p53 = pneg %p47
      %p54 = scmp.eq.s32.totalorder %s26, 3
      %p55 = por %p53, %p54
      %p56 = scmp.ne.s32.totalorder %s48, %s51
      %p57 = scmp.eq.s32.totalorder %s26, 0
      %p58 = por %p56, %p57
      %p59 = scmp.ne.s32.totalorder %s48, %s51
      %p60 = scmp.eq.s32.totalorder %s31, 3
      %p61 = por %p59, %p60
      %p62 = scmp.ne.s32.totalorder %s51, %s52
      %p63 = scmp.eq.s32.totalorder %s31, 0
      %p64 = por %p62, %p63
      %p65 = scmp.ne.s32.totalorder %s51, %s52
      %p66 = scmp.eq.s32.totalorder %s32, 3
      %p67 = por %p65, %p66
      %p69 = scmp.ne.s32.totalorder %s52, %s68
      %p70 = scmp.eq.s32.totalorder %s32, 0
      %p71 = por %p69, %p70
      %s73 = sadd.s32 %s72, 1
      %p76 = scmp.eq.s32.totalorder %s26, 3
      %p77 = scmp.ne.s32.totalorder %s72, %s74
      %p78 = scmp.eq.s32.totalorder %s26, 0
      %p79 = por %p77, %p78
      %p80 = scmp.ne.s32.totalorder %s72, %s74
      %p81 = scmp.eq.s32.totalorder %s31, 3
      %p82 = por %p80, %p81
      %p83 = scmp.ne.s32.totalorder %s74, %s75
      %p84 = scmp.eq.s32.totalorder %s31, 0
      %p85 = por %p83, %p84
      %p86 = scmp.ne.s32.totalorder %s74, %s75
      %p87 = scmp.eq.s32.totalorder %s32, 3
      %p88 = por %p86, %p87
      %p90 = scmp.ne.s32.totalorder %s75, %s89
      %p91 = scmp.eq.s32.totalorder %s32, 0
      %p92 = por %p90, %p91
      %s94 = sadd.s32 %s93, 1
      %p97 = scmp.eq.s32.totalorder %s26, 3
      %p98 = scmp.ne.s32.totalorder %s93, %s95
      %p99 = scmp.eq.s32.totalorder %s26, 0
      %p100 = por %p98, %p99
      %p101 = scmp.ne.s32.totalorder %s93, %s95
      %p102 = scmp.eq.s32.totalorder %s31, 3
      %p103 = por %p101, %p102
      %p104 = scmp.ne.s32.totalorder %s95, %s96
      %p105 = scmp.eq.s32.totalorder %s31, 0
      %p106 = por %p104, %p105
      %p107 = scmp.ne.s32.totalorder %s95, %s96
      %p108 = scmp.eq.s32.totalorder %s32, 3
      %p109 = por %p107, %p108
      %p111 = scmp.ne.s32.totalorder %s96, %s110
      %p112 = scmp.eq.s32.totalorder %s32, 0
      %p113 = por %p111, %p112
      %s115 = sadd.s32 %s114, 1
      %p118 = scmp.eq.s32.totalorder %s26, 3
      %p119 = scmp.ne.s32.totalorder %s114, %s116
      %p120 = scmp.eq.s32.totalorder %s26, 0
      %p121 = por %p119, %p120
      %p122 = scmp.ne.s32.totalorder %s114, %s116
      %p123 = scmp.eq.s32.totalorder %s31, 3
      %p124 = por %p122, %p123
      %p125 = scmp.ne.s32.totalorder %s116, %s117
      %p126 = scmp.eq.s32.totalorder %s31, 0
      %p127 = por %p125, %p126
      %p128 = scmp.ne.s32.totalorder %s116, %s117
      %p129 = scmp.eq.s32.totalorder %s32, 3
      %p130 = por %p128, %p129
      %p132 = scmp.ne.s32.totalorder %s117, %s131
      %p133 = scmp.eq.s32.totalorder %s32, 0
      %p134 = por %p132, %p133
      %s136 = sadd.s32 %s135, 1
      %p139 = scmp.eq.s32.totalorder %s26, 3
      %p140 = scmp.ne.s32.totalorder %s135, %s137
      %p141 = scmp.eq.s32.totalorder %s26, 0
      %p142 = por %p140, %p141
      %p143 = scmp.ne.s32.totalorder %s135, %s137
      %p144 = scmp.eq.s32.totalorder %s31, 3
      %p145 = por %p143, %p144
      %p146 = scmp.ne.s32.totalorder %s137, %s138
      %p147 = scmp.eq.s32.totalorder %s31, 0
      %p148 = por %p146, %p147
      %p149 = scmp.ne.s32.totalorder %s137, %s138
      %p150 = scmp.eq.s32.totalorder %s32, 3
      %p151 = por %p149, %p150
      %p153 = scmp.ne.s32.totalorder %s138, %s152
      %p154 = scmp.eq.s32.totalorder %s32, 0
      %p155 = por %p153, %p154
      %s157 = sadd.s32 %s156, 1
      %p160 = scmp.eq.s32.totalorder %s26, 3
      %p161 = scmp.ne.s32.totalorder %s156, %s158
      %p162 = scmp.eq.s32.totalorder %s26, 0
      %p163 = por %p161, %p162
      %p164 = scmp.ne.s32.totalorder %s156, %s158
      %p165 = scmp.eq.s32.totalorder %s31, 3
      %p166 = por %p164, %p165
      %p167 = scmp.ne.s32.totalorder %s158, %s159
      %p168 = scmp.eq.s32.totalorder %s31, 0
      %p169 = por %p167, %p168
      %p170 = scmp.ne.s32.totalorder %s158, %s159
      %p171 = scmp.eq.s32.totalorder %s32, 3
      %p172 = por %p170, %p171
      %p174 = scmp.ne.s32.totalorder %s159, %s173
      %p175 = scmp.eq.s32.totalorder %s32, 0
      %p176 = por %p174, %p175
      %s178 = sadd.s32 %s177, 1
      %p181 = scmp.eq.s32.totalorder %s26, 3
      %p182 = scmp.ne.s32.totalorder %s177, %s179
      %p183 = scmp.eq.s32.totalorder %s26, 0
      %p184 = por %p182, %p183
      %p185 = scmp.ne.s32.totalorder %s177, %s179
      %p186 = scmp.eq.s32.totalorder %s31, 3
      %p187 = por %p185, %p186
      %p188 = scmp.ne.s32.totalorder %s179, %s180
      %p189 = scmp.eq.s32.totalorder %s31, 0
      %p190 = por %p188, %p189
      %p191 = scmp.ne.s32.totalorder %s179, %s180
      %p192 = scmp.eq.s32.totalorder %s32, 3
      %p193 = por %p191, %p192
      %p195 = scmp.ne.s32.totalorder %s180, %s194
      %p196 = scmp.eq.s32.totalorder %s32, 0
      %p197 = por %p195, %p196
      %s199 = sadd.s32 %s198, 1
      %p202 = scmp.eq.s32.totalorder %s26, 3
      %p203 = scmp.ne.s32.totalorder %s198, %s200
      %p204 = scmp.eq.s32.totalorder %s26, 0
      %p205 = por %p203, %p204
      %p206 = scmp.ne.s32.totalorder %s198, %s200
      %p207 = scmp.eq.s32.totalorder %s31, 3
      %p208 = por %p206, %p207
      %p209 = scmp.ne.s32.totalorder %s200, %s201
      %p210 = scmp.eq.s32.totalorder %s31, 0
      %p211 = por %p209, %p210
      %p212 = scmp.ne.s32.totalorder %s200, %s201
      %p213 = scmp.eq.s32.totalorder %s32, 3
      %p214 = por %p212, %p213
      %p216 = scmp.ne.s32.totalorder %s201, %s215
      %p217 = scmp.eq.s32.totalorder %s32, 0
      %p218 = por %p216, %p217
      %s220 = sadd.s32 %s219, 1
      %p223 = scmp.eq.s32.totalorder %s26, 3
      %p224 = scmp.ne.s32.totalorder %s219, %s221
      %p225 = scmp.eq.s32.totalorder %s26, 0
      %p226 = por %p224, %p225
      %p227 = scmp.ne.s32.totalorder %s219, %s221
      %p228 = scmp.eq.s32.totalorder %s31, 3
      %p229 = por %p227, %p228
      %p230 = scmp.ne.s32.totalorder %s221, %s222
      %p231 = scmp.eq.s32.totalorder %s31, 0
      %p232 = por %p230, %p231
      %p233 = scmp.ne.s32.totalorder %s221, %s222
      %p234 = scmp.eq.s32.totalorder %s32, 3
      %p235 = por %p233, %p234
      %p237 = scmp.ne.s32.totalorder %s222, %s236
      %p238 = scmp.eq.s32.totalorder %s32, 0
      %p239 = por %p237, %p238
      %s241 = sadd.s32 %s240, 1
      %p244 = scmp.eq.s32.totalorder %s26, 3
      %p245 = scmp.ne.s32.totalorder %s240, %s242
      %p246 = scmp.eq.s32.totalorder %s26, 0
      %p247 = por %p245, %p246
      %p248 = scmp.ne.s32.totalorder %s240, %s242
      %p249 = scmp.eq.s32.totalorder %s31, 3
      %p250 = por %p248, %p249
      %p251 = scmp.ne.s32.totalorder %s242, %s243
      %p252 = scmp.eq.s32.totalorder %s31, 0
      %p253 = por %p251, %p252
      %p254 = scmp.ne.s32.totalorder %s242, %s243
      %p255 = scmp.eq.s32.totalorder %s32, 3
      %p256 = por %p254, %p255
      %p258 = scmp.ne.s32.totalorder %s243, %s257
      %p259 = scmp.eq.s32.totalorder %s32, 0
      %p260 = por %p258, %p259
      %s262 = sadd.s32 %s261, 1
      %p265 = scmp.eq.s32.totalorder %s26, 3
      %p266 = scmp.ne.s32.totalorder %s261, %s263
      %p267 = scmp.eq.s32.totalorder %s26, 0
      %p268 = por %p266, %p267
      %p269 = scmp.ne.s32.totalorder %s261, %s263
      %p270 = scmp.eq.s32.totalorder %s31, 3
      %p271 = por %p269, %p270
      %p272 = scmp.ne.s32.totalorder %s263, %s264
      %p273 = scmp.eq.s32.totalorder %s31, 0
      %p274 = por %p272, %p273
      %p275 = scmp.ne.s32.totalorder %s263, %s264
      %p276 = scmp.eq.s32.totalorder %s32, 3
      %p277 = por %p275, %p276
      %p279 = scmp.ne.s32.totalorder %s264, %s278
      %p280 = scmp.eq.s32.totalorder %s32, 0
      %p281 = por %p279, %p280
      %s283 = sadd.s32 %s282, 1
      %p286 = scmp.eq.s32.totalorder %s26, 3
      %p287 = scmp.ne.s32.totalorder %s282, %s284
      %p288 = scmp.eq.s32.totalorder %s26, 0
      %p289 = por %p287, %p288
      %p290 = scmp.ne.s32.totalorder %s282, %s284
      %p291 = scmp.eq.s32.totalorder %s31, 3
      %p292 = por %p290, %p291
      %p293 = scmp.ne.s32.totalorder %s284, %s285
      %p294 = scmp.eq.s32.totalorder %s31, 0
      %p295 = por %p293, %p294
      %p296 = scmp.ne.s32.totalorder %s284, %s285
      %p297 = scmp.eq.s32.totalorder %s32, 3
      %p298 = por %p296, %p297
      %p300 = scmp.ne.s32.totalorder %s285, %s299
      %p301 = scmp.eq.s32.totalorder %s32, 0
      %p302 = por %p300, %p301
      %s304 = sadd.s32 %s303, 1
      %p307 = scmp.eq.s32.totalorder %s26, 3
      %p308 = scmp.ne.s32.totalorder %s303, %s305
      %p309 = scmp.eq.s32.totalorder %s26, 0
      %p310 = por %p308, %p309
      %p311 = scmp.ne.s32.totalorder %s303, %s305
      %p312 = scmp.eq.s32.totalorder %s31, 3
      %p313 = por %p311, %p312
      %p314 = scmp.ne.s32.totalorder %s305, %s306
      %p315 = scmp.eq.s32.totalorder %s31, 0
      %p316 = por %p314, %p315
      %p317 = scmp.ne.s32.totalorder %s305, %s306
      %p318 = scmp.eq.s32.totalorder %s32, 3
      %p319 = por %p317, %p318
      %p321 = scmp.ne.s32.totalorder %s306, %s320
      %p322 = scmp.eq.s32.totalorder %s32, 0
      %p323 = por %p321, %p322
      %s325 = sadd.s32 %s324, 1
      %p328 = scmp.eq.s32.totalorder %s26, 3
      %p329 = scmp.ne.s32.totalorder %s324, %s326
      %p330 = scmp.eq.s32.totalorder %s26, 0
      %p331 = por %p329, %p330
      %p332 = scmp.ne.s32.totalorder %s324, %s326
      %p333 = scmp.eq.s32.totalorder %s31, 3
      %p334 = por %p332, %p333
      %p335 = scmp.ne.s32.totalorder %s326, %s327
      %p336 = scmp.eq.s32.totalorder %s31, 0
      %p337 = por %p335, %p336
      %p338 = scmp.ne.s32.totalorder %s326, %s327
      %p339 = scmp.eq.s32.totalorder %s32, 3
      %p340 = por %p338, %p339
      %p342 = scmp.ne.s32.totalorder %s327, %s341
      %p343 = scmp.eq.s32.totalorder %s32, 0
      %p344 = por %p342, %p343
      %s346 = sadd.s32 %s345, 1
      %p349 = scmp.eq.s32.totalorder %s26, 3
      %p350 = scmp.ne.s32.totalorder %s345, %s347
      %p351 = scmp.eq.s32.totalorder %s26, 0
      %p352 = por %p350, %p351
      %p353 = scmp.ne.s32.totalorder %s345, %s347
      %p354 = scmp.eq.s32.totalorder %s31, 3
      %p355 = por %p353, %p354
      %p356 = scmp.ne.s32.totalorder %s347, %s348
      %p357 = scmp.eq.s32.totalorder %s31, 0
      %p358 = por %p356, %p357
      %p359 = scmp.ne.s32.totalorder %s347, %s348
      %p360 = scmp.eq.s32.totalorder %s32, 3
      %p361 = por %p359, %p360
      %p363 = scmp.ne.s32.totalorder %s348, %s362
      %p364 = scmp.eq.s32.totalorder %s32, 0
      %p365 = por %p363, %p364
      %s367 = sadd.s32 %s366, 1
      %p370 = scmp.eq.s32.totalorder %s26, 3
      %p371 = scmp.ne.s32.totalorder %s366, %s368
      %p372 = scmp.eq.s32.totalorder %s26, 0
      %p373 = por %p371, %p372
      %p374 = scmp.ne.s32.totalorder %s366, %s368
      %p375 = scmp.eq.s32.totalorder %s31, 3
      %p376 = por %p374, %p375
      %p377 = scmp.ne.s32.totalorder %s368, %s369
      %p378 = scmp.eq.s32.totalorder %s31, 0
      %p379 = por %p377, %p378
      %p380 = scmp.ne.s32.totalorder %s368, %s369
      %p381 = scmp.eq.s32.totalorder %s32, 3
      %p382 = por %p380, %p381
      %p384 = scmp.ne.s32.totalorder %s369, %s383
      %p385 = scmp.eq.s32.totalorder %s32, 0
      %p386 = por %p384, %p385
      %s388 = sadd.s32 %s387, 1
      %p391 = scmp.eq.s32.totalorder %s26, 3
      %p392 = scmp.ne.s32.totalorder %s387, %s389
      %p393 = scmp.eq.s32.totalorder %s26, 0
      %p394 = por %p392, %p393
      %p395 = scmp.ne.s32.totalorder %s387, %s389
      %p396 = scmp.eq.s32.totalorder %s31, 3
      %p397 = por %p395, %p396
      %p398 = scmp.ne.s32.totalorder %s389, %s390
      %p399 = scmp.eq.s32.totalorder %s31, 0
      %p400 = por %p398, %p399
      %p401 = scmp.ne.s32.totalorder %s389, %s390
      %p402 = scmp.eq.s32.totalorder %s32, 3
      %p403 = por %p401, %p402
      %p405 = scmp.ne.s32.totalorder %s390, %s404
      %p406 = scmp.eq.s32.totalorder %s32, 0
      %p407 = por %p405, %p406
      %s408 = ssub.s32 %s33, %s45
      %s409 = ssub.s32 %s34, %s41
      %s410 = sor.u32 %s408, %s409
      %p411 = scmp.eq.s32.totalorder %s410, 0
      %s413 = sadd.s32 %s412, 1
      %s414 = scalar_select %p411, %s412, %s413
      %p417 = pneg %p411
      %p418 = scmp.eq.s32.totalorder %s26, 3
      %p419 = por %p417, %p418
      %p420 = scmp.ne.s32.totalorder %s412, %s415
      %p421 = scmp.eq.s32.totalorder %s26, 0
      %p422 = por %p420, %p421
      %p423 = scmp.ne.s32.totalorder %s412, %s415
      %p424 = scmp.eq.s32.totalorder %s31, 3
      %p425 = por %p423, %p424
      %p426 = scmp.ne.s32.totalorder %s415, %s416
      %p427 = scmp.eq.s32.totalorder %s31, 0
      %p428 = por %p426, %p427
      %p429 = scmp.ne.s32.totalorder %s415, %s416
      %p430 = scmp.eq.s32.totalorder %s32, 3
      %p431 = por %p429, %p430
      %p433 = scmp.ne.s32.totalorder %s416, %s432
      %p434 = scmp.eq.s32.totalorder %s32, 0
      %p435 = por %p433, %p434
      %p436 = scmp.le.s32.totalorder 1, %s26
      %p437 = scmp.lt.s32.totalorder %s26, 5
      %p438 = pnand %p436, %p437
      %p439 = pneg %p438
      // Predicated region
      $region9: #{tpu_custom_call.1} parent=5 // pred_check
        _
      $region10: #{tpu_custom_call.1} parent=5 // pred_check_branch
        %441 = sbr.rel (%p438) target = $region12
      $region11: #{tpu_custom_call.1} parent=5 // pred_region
        %s442 = ssub.s32 %s26, 1
        // Predicated region
        $region13: #{tpu_custom_call.1} parent=11 // pred_check
          %p443 = pneg %p85
        $region14: #{tpu_custom_call.1} parent=11 // pred_check_branch
          %445 = sbr.rel (%p443) target = $region16
        $region15: #{tpu_custom_call.1} parent=11 // pred_region
          _
        $region16: #{tpu_custom_call.1} parent=11 // pred_fallthru
          _
        // Predicated region
        $region17: #{tpu_custom_call.1} parent=11 // pred_check
          %p446 = pneg %p106
        $region18: #{tpu_custom_call.1} parent=11 // pred_check_branch
          %448 = sbr.rel (%p446) target = $region20
        $region19: #{tpu_custom_call.1} parent=11 // pred_region
          _
        $region20: #{tpu_custom_call.1} parent=11 // pred_fallthru
          _
        // Predicated region
        $region21: #{tpu_custom_call.1} parent=11 // pred_check
          %p449 = pneg %p127
        $region22: #{tpu_custom_call.1} parent=11 // pred_check_branch
          %451 = sbr.rel (%p449) target = $region24
        $region23: #{tpu_custom_call.1} parent=11 // pred_region
          _
        $region24: #{tpu_custom_call.1} parent=11 // pred_fallthru
          _
        // Predicated region
        $region25: #{tpu_custom_call.1} parent=11 // pred_check
          %p452 = pneg %p148
        $region26: #{tpu_custom_call.1} parent=11 // pred_check_branch
          %454 = sbr.rel (%p452) target = $region28
        $region27: #{tpu_custom_call.1} parent=11 // pred_region
          _
        $region28: #{tpu_custom_call.1} parent=11 // pred_fallthru
          _
        // Predicated region
        $region29: #{tpu_custom_call.1} parent=11 // pred_check
          %p455 = pneg %p169
        $region30: #{tpu_custom_call.1} parent=11 // pred_check_branch
          %457 = sbr.rel (%p455) target = $region32
        $region31: #{tpu_custom_call.1} parent=11 // pred_region
          _
        $region32: #{tpu_custom_call.1} parent=11 // pred_fallthru
          _
        // Predicated region
        $region33: #{tpu_custom_call.1} parent=11 // pred_check
          %p458 = pneg %p190
        $region34: #{tpu_custom_call.1} parent=11 // pred_check_branch
          %460 = sbr.rel (%p458) target = $region36
        $region35: #{tpu_custom_call.1} parent=11 // pred_region
          _
        $region36: #{tpu_custom_call.1} parent=11 // pred_fallthru
          _
        // Predicated region
        $region37: #{tpu_custom_call.1} parent=11 // pred_check
          %p461 = pneg %p211
        $region38: #{tpu_custom_call.1} parent=11 // pred_check_branch
          %463 = sbr.rel (%p461) target = $region40
        $region39: #{tpu_custom_call.1} parent=11 // pred_region
          _
        $region40: #{tpu_custom_call.1} parent=11 // pred_fallthru
          _
        // Predicated region
        $region41: #{tpu_custom_call.1} parent=11 // pred_check
          %p464 = pneg %p232
        $region42: #{tpu_custom_call.1} parent=11 // pred_check_branch
          %466 = sbr.rel (%p464) target = $region44
        $region43: #{tpu_custom_call.1} parent=11 // pred_region
          _
        $region44: #{tpu_custom_call.1} parent=11 // pred_fallthru
          _
        // Predicated region
        $region45: #{tpu_custom_call.1} parent=11 // pred_check
          %p467 = pneg %p253
        $region46: #{tpu_custom_call.1} parent=11 // pred_check_branch
          %469 = sbr.rel (%p467) target = $region48
        $region47: #{tpu_custom_call.1} parent=11 // pred_region
          _
        $region48: #{tpu_custom_call.1} parent=11 // pred_fallthru
          _
        // Predicated region
        $region49: #{tpu_custom_call.1} parent=11 // pred_check
          %p470 = pneg %p274
        $region50: #{tpu_custom_call.1} parent=11 // pred_check_branch
          %472 = sbr.rel (%p470) target = $region52
        $region51: #{tpu_custom_call.1} parent=11 // pred_region
          _
        $region52: #{tpu_custom_call.1} parent=11 // pred_fallthru
          _
        // Predicated region
        $region53: #{tpu_custom_call.1} parent=11 // pred_check
          %p473 = pneg %p295
        $region54: #{tpu_custom_call.1} parent=11 // pred_check_branch
          %475 = sbr.rel (%p473) target = $region56
        $region55: #{tpu_custom_call.1} parent=11 // pred_region
          _
        $region56: #{tpu_custom_call.1} parent=11 // pred_fallthru
          _
        // Predicated region
        $region57: #{tpu_custom_call.1} parent=11 // pred_check
          %p476 = pneg %p316
        $region58: #{tpu_custom_call.1} parent=11 // pred_check_branch
          %478 = sbr.rel (%p476) target = $region60
        $region59: #{tpu_custom_call.1} parent=11 // pred_region
          _
        $region60: #{tpu_custom_call.1} parent=11 // pred_fallthru
          _
        // Predicated region
        $region61: #{tpu_custom_call.1} parent=11 // pred_check
          %p479 = pneg %p337
        $region62: #{tpu_custom_call.1} parent=11 // pred_check_branch
          %481 = sbr.rel (%p479) target = $region64
        $region63: #{tpu_custom_call.1} parent=11 // pred_region
          _
        $region64: #{tpu_custom_call.1} parent=11 // pred_fallthru
          _
        // Predicated region
        $region65: #{tpu_custom_call.1} parent=11 // pred_check
          %p482 = pneg %p358
        $region66: #{tpu_custom_call.1} parent=11 // pred_check_branch
          %484 = sbr.rel (%p482) target = $region68
        $region67: #{tpu_custom_call.1} parent=11 // pred_region
          _
        $region68: #{tpu_custom_call.1} parent=11 // pred_fallthru
          _
        // Predicated region
        $region69: #{tpu_custom_call.1} parent=11 // pred_check
          %p485 = pneg %p379
        $region70: #{tpu_custom_call.1} parent=11 // pred_check_branch
          %487 = sbr.rel (%p485) target = $region72
        $region71: #{tpu_custom_call.1} parent=11 // pred_region
          _
        $region72: #{tpu_custom_call.1} parent=11 // pred_fallthru
          _
        // Predicated region
        $region73: #{tpu_custom_call.1} parent=11 // pred_check
          %p488 = pneg %p400
        $region74: #{tpu_custom_call.1} parent=11 // pred_check_branch
          %490 = sbr.rel (%p488) target = $region76
        $region75: #{tpu_custom_call.1} parent=11 // pred_region
          _
        $region76: #{tpu_custom_call.1} parent=11 // pred_fallthru
          _
      $region12: #{tpu_custom_call.1} parent=5 // pred_fallthru
        _
      %p491 = scmp.lt.s32.totalorder %s26, 4
      // Predicated region
      $region77: #{tpu_custom_call.1} parent=5 // pred_check
        %p492 = pneg %p491
      $region78: #{tpu_custom_call.1} parent=5 // pred_check_branch
        %494 = sbr.rel (%p492) target = $region80
      $region79: #{tpu_custom_call.1} parent=5 // pred_region
        // Predicated region
        $region81: #{tpu_custom_call.1} parent=79 // pred_check
          %p495 = pneg %p58
        $region82: #{tpu_custom_call.1} parent=79 // pred_check_branch
          %497 = sbr.rel (%p495) target = $region84
        $region83: #{tpu_custom_call.1} parent=79 // pred_region
          %p498 = scmp.lt.s32.totalorder %s33, 1
          %s499 = scalar_select %p498, %s33, 1
          %s500 = smul.addr %s499, 2
          %s501 = smul.addr %s500, 8
          %s502 = scalar_lea.vmem %s0, %s501
        $region84: #{tpu_custom_call.1} parent=79 // pred_fallthru
          _
      $region80: #{tpu_custom_call.1} parent=5 // pred_fallthru
        _
      %p503 = scmp.le.s32.totalorder 1, %s26
      %p504 = scmp.lt.s32.totalorder %s26, 5
      %p505 = pnand %p503, %p504
      %p506 = pneg %p505
      // Predicated region
      $region85: #{tpu_custom_call.1} parent=5 // pred_check
        _
      $region86: #{tpu_custom_call.1} parent=5 // pred_check_branch
        %508 = sbr.rel (%p505) target = $region88
      $region87: #{tpu_custom_call.1} parent=5 // pred_region
        %s509 = ssub.s32 %s26, 1
        %p510 = scmp.lt.s32.totalorder %s35, 1
        %s511 = scalar_select %p510, %s35, 1
        %s512 = smul.addr %s511, 2
        %s513 = smul.addr %s512, 8
        %s514 = scalar_lea.vmem %s0, %s513
        %p515 = pneg %p64
        %p516 = pneg %p61
        %p517 = pneg %p85
        %p518 = pneg %p82
        %p519 = pneg %p106
        %p520 = pneg %p103
        %p521 = pneg %p127
        %p522 = pneg %p124
        %p523 = pneg %p148
        %p524 = pneg %p145
        %p525 = pneg %p169
        %p526 = pneg %p166
        %p527 = pneg %p190
        %p528 = pneg %p187
        %p529 = pneg %p211
        %p530 = pneg %p208
        %p531 = pneg %p232
        %p532 = pneg %p229
        %p533 = pneg %p253
        %p534 = pneg %p250
        %p535 = pneg %p274
        %p536 = pneg %p271
        %p537 = pneg %p295
        %p538 = pneg %p292
        %p539 = pneg %p316
        %p540 = pneg %p313
        %p541 = pneg %p337
        %p542 = pneg %p334
        %p543 = pneg %p358
        %p544 = pneg %p355
        %p545 = pneg %p379
        %p546 = pneg %p376
        %p547 = pneg %p400
        %p548 = pneg %p397
        %p549 = pneg %p428
        %p550 = pneg %p425
        %s551 = sand.u32 %s415, 1
        %s552 = scalar_lea.sflag [#allocation5], %s551
        %s553 = sand.u32 %s415, 1
        %s554 = smul.addr %s553, 8
        %s555 = scalar_lea.vmem [#allocation4], %s554
        %p556 = scmp.lt.s32.totalorder %s35, 1
        %s557 = scalar_select %p556, %s35, 1
        %s558 = smul.addr %s557, 2
        %s559 = smul.addr %s558, 8
        %s560 = scalar_lea.vmem %s0, %s559
        %p562 = scmp.eq.s32.totalorder %s36, 0
        // Predicated region
        $region89: #{tpu_custom_call.1} parent=87 // pred_check
          %p563 = pneg %p562
        $region90: #{tpu_custom_call.1} parent=87 // pred_check_branch
          %565 = sbr.rel (%p563) target = $region92
        $region91: #{tpu_custom_call.1} parent=87 // pred_region
          %v566 = vld [vmem:[%s560] sm:$0xff]
          %v567 = vld [vmem:[%s560 + $0x8] sm:$0xff]
          %v568 = vpack.c.bf16 %v567, %v566
          %v569 = vld [vmem:[%s2] sm:$0xf]
          %v570 = vld [vmem:[%s2 + $0x4] sm:$0xf]
          %v571 = vld [vmem:[%s2 + $0x8] sm:$0xf]
          %v572 = vld [vmem:[%s2 + $0xc] sm:$0xf]
          %v573 = vld [vmem:[%s2 + $0x10] sm:$0xf]
          %v574 = vld [vmem:[%s2 + $0x14] sm:$0xf]
          %v575 = vld [vmem:[%s2 + $0x18] sm:$0xf]
          %v576 = vld [vmem:[%s2 + $0x1c] sm:$0xf]
          %v577 = vld [vmem:[%s2 + $0x20] sm:$0xf]
          %v578 = vld [vmem:[%s2 + $0x24] sm:$0xf]
          %v579 = vld [vmem:[%s2 + $0x28] sm:$0xf]
          %v580 = vld [vmem:[%s2 + $0x2c] sm:$0xf]
          %v581 = vld [vmem:[%s2 + $0x30] sm:$0xf]
          %v582 = vld [vmem:[%s2 + $0x34] sm:$0xf]
          %v583 = vld [vmem:[%s2 + $0x38] sm:$0xf]
          %v584 = vld [vmem:[%s2 + $0x3c] sm:$0xf]
          %v585 = vld [vmem:[%s3] sm:$0xf]
          %v586 = vld [vmem:[%s3 + $0x4] sm:$0xf]
          %v587 = vld [vmem:[%s3 + $0x8] sm:$0xf]
          %v588 = vld [vmem:[%s3 + $0xc] sm:$0xf]
          %v589 = vld [vmem:[%s3 + $0x10] sm:$0xf]
          %v590 = vld [vmem:[%s3 + $0x14] sm:$0xf]
          %v591 = vld [vmem:[%s3 + $0x18] sm:$0xf]
          %v592 = vld [vmem:[%s3 + $0x1c] sm:$0xf]
          %v593 = vld [vmem:[%s3 + $0x20] sm:$0xf]
          %v594 = vld [vmem:[%s3 + $0x24] sm:$0xf]
          %v595 = vld [vmem:[%s3 + $0x28] sm:$0xf]
          %v596 = vld [vmem:[%s3 + $0x2c] sm:$0xf]
          %v597 = vld [vmem:[%s3 + $0x30] sm:$0xf]
          %v598 = vld [vmem:[%s3 + $0x34] sm:$0xf]
          %v599 = vld [vmem:[%s3 + $0x38] sm:$0xf]
          %v600 = vld [vmem:[%s3 + $0x3c] sm:$0xf]
          %v617 = vunpack.c.l.b16 %v585
          %v618 = vunpack.c.l.b16 %v586
          %v619 = vunpack.c.l.b16 %v587
          %v620 = vunpack.c.l.b16 %v588
          %v621 = vunpack.c.l.b16 %v589
          %v622 = vunpack.c.l.b16 %v590
          %v623 = vunpack.c.l.b16 %v591
          %v624 = vunpack.c.l.b16 %v592
          %v625 = vunpack.c.l.b16 %v593
          %v626 = vunpack.c.l.b16 %v594
          %v627 = vunpack.c.l.b16 %v595
          %v628 = vunpack.c.l.b16 %v596
          %v629 = vunpack.c.l.b16 %v597
          %v630 = vunpack.c.l.b16 %v598
          %v631 = vunpack.c.l.b16 %v599
          %v632 = vunpack.c.l.b16 %v600
          %v633 = vpack.c.b16 %v618, %v617
          %v634 = vpack.c.b16 %v620, %v619
          %v635 = vpack.c.b16 %v622, %v621
          %v636 = vpack.c.b16 %v624, %v623
          %v637 = vpack.c.b16 %v626, %v625
          %v638 = vpack.c.b16 %v628, %v627
          %v639 = vpack.c.b16 %v630, %v629
          %v640 = vpack.c.b16 %v632, %v631
          %649 = vxpose.xlu0.c.b16.start [1/8] %v633, 128
          %650 = vxpose.xlu0.c.b16.cont [2/8] %v634, 128
          %651 = vxpose.xlu0.c.b16.cont [3/8] 0, 128
          %652 = vxpose.xlu0.c.b16.cont [4/8] 0, 128
          %653 = vxpose.xlu0.c.b16.cont [5/8] 0, 128
          %654 = vxpose.xlu0.c.b16.cont [6/8] 0, 128
          %655 = vxpose.xlu0.c.b16.cont [7/8] 0, 128
          %656 = vxpose.xlu0.c.b16.end [8/8] 0, 128
          %v657 = vpop.trf.xlu0
          %v658 = vpop.trf.xlu0
          %v659 = vpop.trf.xlu0
          %v660 = vpop.trf.xlu0
          %v661 = vpop.trf.xlu0
          %v662 = vpop.trf.xlu0
          %v663 = vpop.trf.xlu0
          %v664 = vpop.trf.xlu0
          %665 = vxpose.xlu0.c.b16.start [1/8] %v635, 128
          %666 = vxpose.xlu0.c.b16.cont [2/8] %v636, 128
          %667 = vxpose.xlu0.c.b16.cont [3/8] 0, 128
          %668 = vxpose.xlu0.c.b16.cont [4/8] 0, 128
          %669 = vxpose.xlu0.c.b16.cont [5/8] 0, 128
          %670 = vxpose.xlu0.c.b16.cont [6/8] 0, 128
          %671 = vxpose.xlu0.c.b16.cont [7/8] 0, 128
          %672 = vxpose.xlu0.c.b16.end [8/8] 0, 128
          %v673 = vpop.trf.xlu0
          %v674 = vpop.trf.xlu0
          %v675 = vpop.trf.xlu0
          %v676 = vpop.trf.xlu0
          %v677 = vpop.trf.xlu0
          %v678 = vpop.trf.xlu0
          %v679 = vpop.trf.xlu0
          %v680 = vpop.trf.xlu0
          %681 = vxpose.xlu0.c.b16.start [1/8] %v637, 128
          %682 = vxpose.xlu0.c.b16.cont [2/8] %v638, 128
          %683 = vxpose.xlu0.c.b16.cont [3/8] 0, 128
          %684 = vxpose.xlu0.c.b16.cont [4/8] 0, 128
          %685 = vxpose.xlu0.c.b16.cont [5/8] 0, 128
          %686 = vxpose.xlu0.c.b16.cont [6/8] 0, 128
          %687 = vxpose.xlu0.c.b16.cont [7/8] 0, 128
          %688 = vxpose.xlu0.c.b16.end [8/8] 0, 128
          %v689 = vpop.trf.xlu0
          %v690 = vpop.trf.xlu0
          %v691 = vpop.trf.xlu0
          %v692 = vpop.trf.xlu0
          %v693 = vpop.trf.xlu0
          %v694 = vpop.trf.xlu0
          %v695 = vpop.trf.xlu0
          %v696 = vpop.trf.xlu0
          %697 = vxpose.xlu0.c.b16.start [1/8] %v639, 128
          %698 = vxpose.xlu0.c.b16.cont [2/8] %v640, 128
          %699 = vxpose.xlu0.c.b16.cont [3/8] 0, 128
          %700 = vxpose.xlu0.c.b16.cont [4/8] 0, 128
          %701 = vxpose.xlu0.c.b16.cont [5/8] 0, 128
          %702 = vxpose.xlu0.c.b16.cont [6/8] 0, 128
          %703 = vxpose.xlu0.c.b16.cont [7/8] 0, 128
          %704 = vxpose.xlu0.c.b16.end [8/8] 0, 128
          %v705 = vpop.trf.xlu0
          %v706 = vpop.trf.xlu0
          %v707 = vpop.trf.xlu0
          %v708 = vpop.trf.xlu0
          %v709 = vpop.trf.xlu0
          %v710 = vpop.trf.xlu0
          %v711 = vpop.trf.xlu0
          %v712 = vpop.trf.xlu0
          %v717 = vunpack.c.l.b16 %v657
          %v718 = vunpack.c.l.b16 %v673
          %v719 = vunpack.c.l.b16 %v689
          %v720 = vunpack.c.l.b16 %v705
          %v721 = vpack.c.b16 %v718, %v717
          %v722 = vpack.c.b16 %v720, %v719
          %vm723 = vcmask 261120
          %v725 = vsel %vm723, %v721, 0
          %v728 = vsel %vm723, %v722, 0
          %v731 = vsel %vm723, %v568, 0
          %733 = vmatprep.subr.bf16.mxu0 0
          %734 = vmatpush1.bf16.xpose.msra.mxu0 0
          %735 = vmatprep.subr.bf16.mxu0 0
          %736 = vmatpush1.bf16.xpose.msra.mxu0 0
          %737 = vmatprep.subr.bf16.mxu0 0
          %738 = vmatpush1.bf16.xpose.msra.mxu0 0
          %739 = vmatprep.subr.bf16.mxu0 0
          %740 = vmatpush1.bf16.xpose.msra.mxu0 0
          %741 = vmatprep.subr.bf16.mxu0 0
          %742 = vmatpush1.bf16.xpose.msra.mxu0 0
          %743 = vmatprep.subr.bf16.mxu0 0
          %744 = vmatpush1.bf16.xpose.msra.mxu0 0
          %745 = vmatprep.subr.bf16.mxu0 0
          %746 = vmatpush1.bf16.xpose.msra.mxu0 0
          %747 = vmatprep.subr.bf16.mxu0 0
          %748 = vmatpush1.bf16.xpose.msra.mxu0 %v731
          %749 = vmatprep.subr.bf16.mxu0 0
          %750 = vmatpush2.bf16.xpose.msra.mxu0 0
          %751 = vmatprep.subr.bf16.mxu0 0
          %752 = vmatpush2.bf16.xpose.msra.mxu0 0
          %753 = vmatprep.subr.bf16.mxu0 0
          %754 = vmatpush2.bf16.xpose.msra.mxu0 0
          %755 = vmatprep.subr.bf16.mxu0 0
          %756 = vmatpush2.bf16.xpose.msra.mxu0 0
          %757 = vmatprep.subr.bf16.mxu0 0
          %758 = vmatpush2.bf16.xpose.msra.mxu0 0
          %759 = vmatprep.subr.bf16.mxu0 0
          %760 = vmatpush2.bf16.xpose.msra.mxu0 0
          %761 = vmatprep.subr.bf16.mxu0 0
          %762 = vmatpush2.bf16.xpose.msra.mxu0 0
          %763 = vmatprep.subr.bf16.mxu0 0
          %764 = vmatpush2.bf16.xpose.msra.mxu0 0
          %765 = vmatprep.mubr.bf16.mxu0 0
          %766 = vmatmul.mubr.bf16.gmra.mxu0 %v725
          %v767 = vpop.f32.mrf.mxu0
          %v768 = vadd.f32 0.0, %v767
          %v769 = vpop.f32.mrf.mxu0
          %v770 = vpop.f32.mrf.mxu0
          %v771 = vadd.f32 0.0, %v770
          %v772 = vpop.f32.mrf.mxu0
          %773 = vmatprep.mubr.bf16.mxu0 0
          %774 = vmatmul.mubr.bf16.gmra.mxu0 %v728
          %v775 = vpop.f32.mrf.mxu0
          %v776 = vadd.f32 0.0, %v775
          %v777 = vpop.f32.mrf.mxu0
          %v778 = vpop.f32.mrf.mxu0
          %v779 = vadd.f32 0.0, %v778
          %v780 = vpop.f32.mrf.mxu0
          %781 = vdwg.mxu0
          %782 = vxpose.xlu0.b32.start [1/16] %v768, 128
          %783 = vxpose.xlu0.b32.cont [2/16] 0.0, 128
          %784 = vxpose.xlu0.b32.cont [3/16] 0.0, 128
          %785 = vxpose.xlu0.b32.cont [4/16] 0.0, 128
          %786 = vxpose.xlu0.b32.cont [5/16] 0.0, 128
          %787 = vxpose.xlu0.b32.cont [6/16] 0.0, 128
          %788 = vxpose.xlu0.b32.cont [7/16] 0.0, 128
          %789 = vxpose.xlu0.b32.cont [8/16] 0.0, 128
          %790 = vxpose.xlu0.b32.cont [9/16] 0.0, 128
          %791 = vxpose.xlu0.b32.cont [10/16] 0.0, 128
          %792 = vxpose.xlu0.b32.cont [11/16] 0.0, 128
          %793 = vxpose.xlu0.b32.cont [12/16] 0.0, 128
          %794 = vxpose.xlu0.b32.cont [13/16] 0.0, 128
          %795 = vxpose.xlu0.b32.cont [14/16] 0.0, 128
          %796 = vxpose.xlu0.b32.cont [15/16] 0.0, 128
          %797 = vxpose.xlu0.b32.end [16/16] 0.0, 128
          %v798 = vpop.trf.xlu0
          %v799 = vpop.trf.xlu0
          %v800 = vpop.trf.xlu0
          %v801 = vpop.trf.xlu0
          %v802 = vpop.trf.xlu0
          %v803 = vpop.trf.xlu0
          %v804 = vpop.trf.xlu0
          %v805 = vpop.trf.xlu0
          %v806 = vpop.trf.xlu0
          %v807 = vpop.trf.xlu0
          %v808 = vpop.trf.xlu0
          %v809 = vpop.trf.xlu0
          %v810 = vpop.trf.xlu0
          %v811 = vpop.trf.xlu0
          %v812 = vpop.trf.xlu0
          %v813 = vpop.trf.xlu0
          %814 = vxpose.xlu0.b32.start [1/16] %v771, 128
          %815 = vxpose.xlu0.b32.cont [2/16] 0.0, 128
          %816 = vxpose.xlu0.b32.cont [3/16] 0.0, 128
          %817 = vxpose.xlu0.b32.cont [4/16] 0.0, 128
          %818 = vxpose.xlu0.b32.cont [5/16] 0.0, 128
          %819 = vxpose.xlu0.b32.cont [6/16] 0.0, 128
          %820 = vxpose.xlu0.b32.cont [7/16] 0.0, 128
          %821 = vxpose.xlu0.b32.cont [8/16] 0.0, 128
          %822 = vxpose.xlu0.b32.cont [9/16] 0.0, 128
          %823 = vxpose.xlu0.b32.cont [10/16] 0.0, 128
          %824 = vxpose.xlu0.b32.cont [11/16] 0.0, 128
          %825 = vxpose.xlu0.b32.cont [12/16] 0.0, 128
          %826 = vxpose.xlu0.b32.cont [13/16] 0.0, 128
          %827 = vxpose.xlu0.b32.cont [14/16] 0.0, 128
          %828 = vxpose.xlu0.b32.cont [15/16] 0.0, 128
          %829 = vxpose.xlu0.b32.end [16/16] 0.0, 128
          %v830 = vpop.trf.xlu0
          %v831 = vpop.trf.xlu0
          %v832 = vpop.trf.xlu0
          %v833 = vpop.trf.xlu0
          %v834 = vpop.trf.xlu0
          %v835 = vpop.trf.xlu0
          %v836 = vpop.trf.xlu0
          %v837 = vpop.trf.xlu0
          %v838 = vpop.trf.xlu0
          %v839 = vpop.trf.xlu0
          %v840 = vpop.trf.xlu0
          %v841 = vpop.trf.xlu0
          %v842 = vpop.trf.xlu0
          %v843 = vpop.trf.xlu0
          %v844 = vpop.trf.xlu0
          %v845 = vpop.trf.xlu0
          %846 = vxpose.xlu0.b32.start [1/16] %v776, 128
          %847 = vxpose.xlu0.b32.cont [2/16] 0.0, 128
          %848 = vxpose.xlu0.b32.cont [3/16] 0.0, 128
          %849 = vxpose.xlu0.b32.cont [4/16] 0.0, 128
          %850 = vxpose.xlu0.b32.cont [5/16] 0.0, 128
          %851 = vxpose.xlu0.b32.cont [6/16] 0.0, 128
          %852 = vxpose.xlu0.b32.cont [7/16] 0.0, 128
          %853 = vxpose.xlu0.b32.cont [8/16] 0.0, 128
          %854 = vxpose.xlu0.b32.cont [9/16] 0.0, 128
          %855 = vxpose.xlu0.b32.cont [10/16] 0.0, 128
          %856 = vxpose.xlu0.b32.cont [11/16] 0.0, 128
          %857 = vxpose.xlu0.b32.cont [12/16] 0.0, 128
          %858 = vxpose.xlu0.b32.cont [13/16] 0.0, 128
          %859 = vxpose.xlu0.b32.cont [14/16] 0.0, 128
          %860 = vxpose.xlu0.b32.cont [15/16] 0.0, 128
          %861 = vxpose.xlu0.b32.end [16/16] 0.0, 128
          %v862 = vpop.trf.xlu0
          %v863 = vpop.trf.xlu0
          %v864 = vpop.trf.xlu0
          %v865 = vpop.trf.xlu0
          %v866 = vpop.trf.xlu0
          %v867 = vpop.trf.xlu0
          %v868 = vpop.trf.xlu0
          %v869 = vpop.trf.xlu0
          %v870 = vpop.trf.xlu0
          %v871 = vpop.trf.xlu0
          %v872 = vpop.trf.xlu0
          %v873 = vpop.trf.xlu0
          %v874 = vpop.trf.xlu0
          %v875 = vpop.trf.xlu0
          %v876 = vpop.trf.xlu0
          %v877 = vpop.trf.xlu0
          %878 = vxpose.xlu0.b32.start [1/16] %v779, 128
          %879 = vxpose.xlu0.b32.cont [2/16] 0.0, 128
          %880 = vxpose.xlu0.b32.cont [3/16] 0.0, 128
          %881 = vxpose.xlu0.b32.cont [4/16] 0.0, 128
          %882 = vxpose.xlu0.b32.cont [5/16] 0.0, 128
          %883 = vxpose.xlu0.b32.cont [6/16] 0.0, 128
          %884 = vxpose.xlu0.b32.cont [7/16] 0.0, 128
          %885 = vxpose.xlu0.b32.cont [8/16] 0.0, 128
          %886 = vxpose.xlu0.b32.cont [9/16] 0.0, 128
          %887 = vxpose.xlu0.b32.cont [10/16] 0.0, 128
          %888 = vxpose.xlu0.b32.cont [11/16] 0.0, 128
          %889 = vxpose.xlu0.b32.cont [12/16] 0.0, 128
          %890 = vxpose.xlu0.b32.cont [13/16] 0.0, 128
          %891 = vxpose.xlu0.b32.cont [14/16] 0.0, 128
          %892 = vxpose.xlu0.b32.cont [15/16] 0.0, 128
          %893 = vxpose.xlu0.b32.end [16/16] 0.0, 128
          %v894 = vpop.trf.xlu0
          %v895 = vpop.trf.xlu0
          %v896 = vpop.trf.xlu0
          %v897 = vpop.trf.xlu0
          %v898 = vpop.trf.xlu0
          %v899 = vpop.trf.xlu0
          %v900 = vpop.trf.xlu0
          %v901 = vpop.trf.xlu0
          %v902 = vpop.trf.xlu0
          %v903 = vpop.trf.xlu0
          %v904 = vpop.trf.xlu0
          %v905 = vpop.trf.xlu0
          %v906 = vpop.trf.xlu0
          %v907 = vpop.trf.xlu0
          %v908 = vpop.trf.xlu0
          %v909 = vpop.trf.xlu0
          %v910 = vld [vmem:[%s6] sm:$0xff]
          %v911 = vld [vmem:[%s6 + $0x8] sm:$0xff]
          %v912 = vld [vmem:[%s6 + $0x10] sm:$0xff]
          %v913 = vld [vmem:[%s6 + $0x18] sm:$0xff]
          %915 = vset.pattern.permute.xlu0 0
          %916 = vperm.xlu0 %915, %v910
          %v917 = vpop.permute.xlu0 %916
          %920 = vset.pattern.permute.xlu0 0
          %921 = vperm.xlu0 %920, %v911
          %v922 = vpop.permute.xlu0 %921
          %925 = vset.pattern.permute.xlu0 0
          %926 = vperm.xlu0 %925, %v912
          %v927 = vpop.permute.xlu0 %926
          %930 = vset.pattern.permute.xlu0 0
          %931 = vperm.xlu0 %930, %v913
          %v932 = vpop.permute.xlu0 %931
          %v950 = vunpack.c.l.b16 %v569
          %v951 = vunpack.c.l.b16 %v570
          %v952 = vunpack.c.l.b16 %v571
          %v953 = vunpack.c.l.b16 %v572
          %v954 = vunpack.c.l.b16 %v573
          %v955 = vunpack.c.l.b16 %v574
          %v956 = vunpack.c.l.b16 %v575
          %v957 = vunpack.c.l.b16 %v576
          %v958 = vunpack.c.l.b16 %v577
          %v959 = vunpack.c.l.b16 %v578
          %v960 = vunpack.c.l.b16 %v579
          %v961 = vunpack.c.l.b16 %v580
          %v962 = vunpack.c.l.b16 %v581
          %v963 = vunpack.c.l.b16 %v582
          %v964 = vunpack.c.l.b16 %v583
          %v965 = vunpack.c.l.b16 %v584
          %v966 = vpack.c.b16 %v951, %v950
          %v967 = vpack.c.b16 %v953, %v952
          %v968 = vpack.c.b16 %v955, %v954
          %v969 = vpack.c.b16 %v957, %v956
          %v970 = vpack.c.b16 %v959, %v958
          %v971 = vpack.c.b16 %v961, %v960
          %v972 = vpack.c.b16 %v963, %v962
          %v973 = vpack.c.b16 %v965, %v964
          %982 = vxpose.xlu0.c.b16.start [1/8] %v966, 128
          %983 = vxpose.xlu0.c.b16.cont [2/8] %v967, 128
          %984 = vxpose.xlu0.c.b16.cont [3/8] 0, 128
          %985 = vxpose.xlu0.c.b16.cont [4/8] 0, 128
          %986 = vxpose.xlu0.c.b16.cont [5/8] 0, 128
          %987 = vxpose.xlu0.c.b16.cont [6/8] 0, 128
          %988 = vxpose.xlu0.c.b16.cont [7/8] 0, 128
          %989 = vxpose.xlu0.c.b16.end [8/8] 0, 128
          %v990 = vpop.trf.xlu0
          %v991 = vpop.trf.xlu0
          %v992 = vpop.trf.xlu0
          %v993 = vpop.trf.xlu0
          %v994 = vpop.trf.xlu0
          %v995 = vpop.trf.xlu0
          %v996 = vpop.trf.xlu0
          %v997 = vpop.trf.xlu0
          %998 = vxpose.xlu0.c.b16.start [1/8] %v968, 128
          %999 = vxpose.xlu0.c.b16.cont [2/8] %v969, 128
          %1000 = vxpose.xlu0.c.b16.cont [3/8] 0, 128
          %1001 = vxpose.xlu0.c.b16.cont [4/8] 0, 128
          %1002 = vxpose.xlu0.c.b16.cont [5/8] 0, 128
          %1003 = vxpose.xlu0.c.b16.cont [6/8] 0, 128
          %1004 = vxpose.xlu0.c.b16.cont [7/8] 0, 128
          %1005 = vxpose.xlu0.c.b16.end [8/8] 0, 128
          %v1006 = vpop.trf.xlu0
          %v1007 = vpop.trf.xlu0
          %v1008 = vpop.trf.xlu0
          %v1009 = vpop.trf.xlu0
          %v1010 = vpop.trf.xlu0
          %v1011 = vpop.trf.xlu0
          %v1012 = vpop.trf.xlu0
          %v1013 = vpop.trf.xlu0
          %1014 = vxpose.xlu0.c.b16.start [1/8] %v970, 128
          %1015 = vxpose.xlu0.c.b16.cont [2/8] %v971, 128
          %1016 = vxpose.xlu0.c.b16.cont [3/8] 0, 128
          %1017 = vxpose.xlu0.c.b16.cont [4/8] 0, 128
          %1018 = vxpose.xlu0.c.b16.cont [5/8] 0, 128
          %1019 = vxpose.xlu0.c.b16.cont [6/8] 0, 128
          %1020 = vxpose.xlu0.c.b16.cont [7/8] 0, 128
          %1021 = vxpose.xlu0.c.b16.end [8/8] 0, 128
          %v1022 = vpop.trf.xlu0
          %v1023 = vpop.trf.xlu0
          %v1024 = vpop.trf.xlu0
          %v1025 = vpop.trf.xlu0
          %v1026 = vpop.trf.xlu0
          %v1027 = vpop.trf.xlu0
          %v1028 = vpop.trf.xlu0
          %v1029 = vpop.trf.xlu0
          %1030 = vxpose.xlu0.c.b16.start [1/8] %v972, 128
          %1031 = vxpose.xlu0.c.b16.cont [2/8] %v973, 128
          %1032 = vxpose.xlu0.c.b16.cont [3/8] 0, 128
          %1033 = vxpose.xlu0.c.b16.cont [4/8] 0, 128
          %1034 = vxpose.xlu0.c.b16.cont [5/8] 0, 128
          %1035 = vxpose.xlu0.c.b16.cont [6/8] 0, 128
          %1036 = vxpose.xlu0.c.b16.cont [7/8] 0, 128
          %1037 = vxpose.xlu0.c.b16.end [8/8] 0, 128
          %v1038 = vpop.trf.xlu0
          %v1039 = vpop.trf.xlu0
          %v1040 = vpop.trf.xlu0
          %v1041 = vpop.trf.xlu0
          %v1042 = vpop.trf.xlu0
          %v1043 = vpop.trf.xlu0
          %v1044 = vpop.trf.xlu0
          %v1045 = vpop.trf.xlu0
          %v1050 = vunpack.c.l.b16 %v990
          %v1051 = vunpack.c.l.b16 %v1006
          %v1052 = vunpack.c.l.b16 %v1022
          %v1053 = vunpack.c.l.b16 %v1038
          %v1054 = vpack.c.b16 %v1051, %v1050
          %v1055 = vpack.c.b16 %v1053, %v1052
          %v1057 = vsel %vm723, %v1054, 0
          %v1060 = vsel %vm723, %v1055, 0
          %1062 = vmatprep.subr.bf16.mxu0 0
          %1063 = vmatpush1.bf16.xpose.msra.mxu0 0
          %1064 = vmatprep.subr.bf16.mxu0 0
          %1065 = vmatpush1.bf16.xpose.msra.mxu0 0
          %1066 = vmatprep.subr.bf16.mxu0 0
          %1067 = vmatpush1.bf16.xpose.msra.mxu0 0
          %1068 = vmatprep.subr.bf16.mxu0 0
          %1069 = vmatpush1.bf16.xpose.msra.mxu0 0
          %1070 = vmatprep.subr.bf16.mxu0 0
          %1071 = vmatpush1.bf16.xpose.msra.mxu0 0
          %1072 = vmatprep.subr.bf16.mxu0 0
          %1073 = vmatpush1.bf16.xpose.msra.mxu0 0
          %1074 = vmatprep.subr.bf16.mxu0 0
          %1075 = vmatpush1.bf16.xpose.msra.mxu0 0
          %1076 = vmatprep.subr.bf16.mxu0 0
          %1077 = vmatpush1.bf16.xpose.msra.mxu0 %v731
          %1078 = vmatprep.subr.bf16.mxu0 0
          %1079 = vmatpush2.bf16.xpose.msra.mxu0 0
          %1080 = vmatprep.subr.bf16.mxu0 0
          %1081 = vmatpush2.bf16.xpose.msra.mxu0 0
          %1082 = vmatprep.subr.bf16.mxu0 0
          %1083 = vmatpush2.bf16.xpose.msra.mxu0 0
          %1084 = vmatprep.subr.bf16.mxu0 0
          %1085 = vmatpush2.bf16.xpose.msra.mxu0 0
          %1086 = vmatprep.subr.bf16.mxu0 0
          %1087 = vmatpush2.bf16.xpose.msra.mxu0 0
          %1088 = vmatprep.subr.bf16.mxu0 0
          %1089 = vmatpush2.bf16.xpose.msra.mxu0 0
          %1090 = vmatprep.subr.bf16.mxu0 0
          %1091 = vmatpush2.bf16.xpose.msra.mxu0 0
          %1092 = vmatprep.subr.bf16.mxu0 0
          %1093 = vmatpush2.bf16.xpose.msra.mxu0 0
          %1094 = vmatprep.mubr.bf16.mxu0 0
          %1095 = vmatmul.mubr.bf16.gmra.mxu0 %v1057
          %v1096 = vpop.f32.mrf.mxu0
          %v1097 = vadd.f32 %v917, %v1096
          %v1098 = vpop.f32.mrf.mxu0
          %v1099 = vpop.f32.mrf.mxu0
          %v1100 = vadd.f32 %v922, %v1099
          %v1101 = vpop.f32.mrf.mxu0
          %1102 = vmatprep.mubr.bf16.mxu0 0
          %1103 = vmatmul.mubr.bf16.gmra.mxu0 %v1060
          %v1104 = vpop.f32.mrf.mxu0
          %v1105 = vadd.f32 %v927, %v1104
          %v1106 = vpop.f32.mrf.mxu0
          %v1107 = vpop.f32.mrf.mxu0
          %v1108 = vadd.f32 %v932, %v1107
          %v1109 = vpop.f32.mrf.mxu0
          %1110 = vdwg.mxu0
          %v1111 = vpack.c.bf16 %v1097, %v1097
          %v1112 = vpack.c.bf16 %v1100, %v1100
          %v1113 = vpack.c.bf16 %v1105, %v1105
          %v1114 = vpack.c.bf16 %v1108, %v1108
          %v1115 = vld [vmem:[%s7] sm:$0x1]
          %v1116 = vld [vmem:[%s7 + $0x1] sm:$0x1]
          %v1117 = vld [vmem:[%s7 + $0x2] sm:$0x1]
          %v1118 = vld [vmem:[%s7 + $0x3] sm:$0x1]
          %v1123 = vlaneseq
          %v1124 = vshrl.u32 %v1123, 7
          %v1125 = vsub.s32 0, %v1124
          %v1126 = vrot.slane %v1115, %v1125
          %v1127 = vlaneseq
          %v1128 = vshrl.u32 %v1127, 7
          %v1129 = vsub.s32 0, %v1128
          %v1130 = vrot.slane %v1116, %v1129
          %v1131 = vlaneseq
          %v1132 = vshrl.u32 %v1131, 7
          %v1133 = vsub.s32 0, %v1132
          %v1134 = vrot.slane %v1117, %v1133
          %v1135 = vlaneseq
          %v1136 = vshrl.u32 %v1135, 7
          %v1137 = vsub.s32 0, %v1136
          %v1138 = vrot.slane %v1118, %v1137
          %v1143 = vadd.f32 %v798, %v1126
          %v1144 = vadd.f32 %v799, %v1126
          %v1145 = vadd.f32 %v830, %v1130
          %v1146 = vadd.f32 %v831, %v1130
          %v1147 = vadd.f32 %v862, %v1134
          %v1148 = vadd.f32 %v863, %v1134
          %v1149 = vadd.f32 %v894, %v1138
          %v1150 = vadd.f32 %v895, %v1138
          %v1151 = vpack.c.bf16 %v1144, %v1143
          %v1152 = vpack.c.bf16 %v1146, %v1145
          %v1153 = vpack.c.bf16 %v1148, %v1147
          %v1154 = vpack.c.bf16 %v1150, %v1149
          %vm1155 = vcmask 125952
          %1156 = vst.msk [vmem:[#allocation2] sm:$0xf] %vm1155, %v1111
          %1157 = vst.msk [vmem:[#allocation2 + $0x4] sm:$0xf] %vm1155, %v1112
          %1158 = vst.msk [vmem:[#allocation2 + $0x8] sm:$0xf] %vm1155, %v1113
          %1159 = vst.msk [vmem:[#allocation2 + $0xc] sm:$0xf] %vm1155, %v1114
          %v1164 = vunpack.c.l.b16 %v1151
          %v1165 = vunpack.c.h.b16 %v1151
          %v1166 = vunpack.c.l.b16 %v1152
          %v1167 = vunpack.c.h.b16 %v1152
          %v1168 = vunpack.c.l.b16 %v1153
          %v1169 = vunpack.c.h.b16 %v1153
          %v1170 = vunpack.c.l.b16 %v1154
          %v1171 = vunpack.c.h.b16 %v1154
          %v1172 = vpack.c.b16 %v1164, %v1164
          %v1173 = vpack.c.b16 %v1165, %v1165
          %v1174 = vpack.c.b16 %v1166, %v1166
          %v1175 = vpack.c.b16 %v1167, %v1167
          %v1176 = vpack.c.b16 %v1168, %v1168
          %v1177 = vpack.c.b16 %v1169, %v1169
          %v1178 = vpack.c.b16 %v1170, %v1170
          %v1179 = vpack.c.b16 %v1171, %v1171
          %vm1188 = vcmask 60416
          %1189 = vst.msk [vmem:[#allocation3] sm:$0xf] %vm1188, %v1172
          %1190 = vst.msk [vmem:[#allocation3 + $0x4] sm:$0xf] %vm1188, %v1173
          %1191 = vst.msk [vmem:[#allocation3 + $0x8] sm:$0xf] %vm1188, %v1174
          %1192 = vst.msk [vmem:[#allocation3 + $0xc] sm:$0xf] %vm1188, %v1175
          %1193 = vst.msk [vmem:[#allocation3 + $0x10] sm:$0xf] %vm1188, %v1176
          %1194 = vst.msk [vmem:[#allocation3 + $0x14] sm:$0xf] %vm1188, %v1177
          %1195 = vst.msk [vmem:[#allocation3 + $0x18] sm:$0xf] %vm1188, %v1178
          %1196 = vst.msk [vmem:[#allocation3 + $0x1c] sm:$0xf] %vm1188, %v1179
        $region92: #{tpu_custom_call.1} parent=87 // pred_fallthru
          _
        %s1197 = smul.u32 %s36, 8
        %s1198 = scalar_lea.vmem %s560, %s1197
        %v1199 = vld [vmem:[%s1198] sm:$0xff]
        %v1200 = vpack.c.bf16 %v1199, %v1199
        %v1201 = vld [vmem:[%s1] sm:$0xf]
        %v1202 = vld [vmem:[%s1 + $0x4] sm:$0xf]
        %v1203 = vld [vmem:[%s1 + $0x8] sm:$0xf]
        %v1204 = vld [vmem:[%s1 + $0xc] sm:$0xf]
        %v1205 = vld [vmem:[%s5] sm:$0x1]
        %v1207 = vlaneseq
        %v1208 = vshrl.u32 %v1207, 7
        %v1209 = vsub.s32 0, %v1208
        %v1210 = vrot.slane %v1205, %v1209
        %v1216 = vunpack.c.l.b16 %v1201
        %v1217 = vunpack.c.l.b16 %v1202
        %v1218 = vunpack.c.l.b16 %v1203
        %v1219 = vunpack.c.l.b16 %v1204
        %v1220 = vpack.c.b16 %v1217, %v1216
        %v1221 = vpack.c.b16 %v1219, %v1218
        %vm1224 = vcmask 261120
        %v1226 = vsel %vm1224, %v1200, 0
        %1228 = vmatprep.subr.bf16.mxu0 0
        %1229 = vmatpush1.bf16.msra.mxu0 0
        %1230 = vmatprep.subr.bf16.mxu0 0
        %1231 = vmatpush1.bf16.msra.mxu0 0
        %1232 = vmatprep.subr.bf16.mxu0 0
        %1233 = vmatpush1.bf16.msra.mxu0 0
        %1234 = vmatprep.subr.bf16.mxu0 0
        %1235 = vmatpush1.bf16.msra.mxu0 0
        %1236 = vmatprep.subr.bf16.mxu0 0
        %1237 = vmatpush1.bf16.msra.mxu0 0
        %1238 = vmatprep.subr.bf16.mxu0 0
        %1239 = vmatpush1.bf16.msra.mxu0 0
        %1240 = vmatprep.subr.bf16.mxu0 0
        %1241 = vmatpush1.bf16.msra.mxu0 %v1221
        %1242 = vmatprep.subr.bf16.mxu0 0
        %1243 = vmatpush1.bf16.msra.mxu0 %v1220
        %1244 = vmatprep.subr.bf16.mxu0 0
        %1245 = vmatpush2.bf16.msra.mxu0 0
        %1246 = vmatprep.subr.bf16.mxu0 0
        %1247 = vmatpush2.bf16.msra.mxu0 0
        %1248 = vmatprep.subr.bf16.mxu0 0
        %1249 = vmatpush2.bf16.msra.mxu0 0
        %1250 = vmatprep.subr.bf16.mxu0 0
        %1251 = vmatpush2.bf16.msra.mxu0 0
        %1252 = vmatprep.subr.bf16.mxu0 0
        %1253 = vmatpush2.bf16.msra.mxu0 0
        %1254 = vmatprep.subr.bf16.mxu0 0
        %1255 = vmatpush2.bf16.msra.mxu0 0
        %1256 = vmatprep.subr.bf16.mxu0 0
        %1257 = vmatpush2.bf16.msra.mxu0 0
        %1258 = vmatprep.subr.bf16.mxu0 0
        %1259 = vmatpush2.bf16.msra.mxu0 0
        %1260 = vmatprep.mubr.bf16.mxu0 0
        %1261 = vmatmul.mubr.bf16.gmra.mxu0 %v1226
        %v1262 = vpop.f32.mrf.mxu0
        %v1263 = vadd.f32 %v1210, %v1262
        %v1264 = vpop.f32.mrf.mxu0
        %v1265 = vpop.f32.mrf.mxu0
        %v1266 = vpop.f32.mrf.mxu0
        %1267 = vdwg.mxu0
        %v1268 = vmul.f32 %v1263, 0.35355338
        %v1269 = vpack.c.bf16 %v1268, %v1268
        %v1270 = vld [vmem:[#allocation2] sm:$0xf]
        %vm1271 = vcmask 64512
        %v1273 = vsel %vm1271, %v1269, 0
        %vm1275 = vcmask 1043456
        %v1277 = vsel %vm1275, %v1270, 0
        %1279 = vmatprep.subr.bf16.mxu0 0
        %1280 = vmatpush1.bf16.msra.mxu0 0
        %1281 = vmatprep.subr.bf16.mxu0 0
        %1282 = vmatpush1.bf16.msra.mxu0 0
        %1283 = vmatprep.subr.bf16.mxu0 0
        %1284 = vmatpush1.bf16.msra.mxu0 0
        %1285 = vmatprep.subr.bf16.mxu0 0
        %1286 = vmatpush1.bf16.msra.mxu0 0
        %1287 = vmatprep.subr.bf16.mxu0 0
        %1288 = vmatpush1.bf16.msra.mxu0 0
        %1289 = vmatprep.subr.bf16.mxu0 0
        %1290 = vmatpush1.bf16.msra.mxu0 0
        %1291 = vmatprep.subr.bf16.mxu0 0
        %1292 = vmatpush1.bf16.msra.mxu0 0
        %1293 = vmatprep.subr.bf16.mxu0 0
        %1294 = vmatpush1.bf16.msra.mxu0 %v1277
        %1295 = vmatprep.subr.bf16.mxu0 0
        %1296 = vmatpush2.bf16.msra.mxu0 0
        %1297 = vmatprep.subr.bf16.mxu0 0
        %1298 = vmatpush2.bf16.msra.mxu0 0
        %1299 = vmatprep.subr.bf16.mxu0 0
        %1300 = vmatpush2.bf16.msra.mxu0 0
        %1301 = vmatprep.subr.bf16.mxu0 0
        %1302 = vmatpush2.bf16.msra.mxu0 0
        %1303 = vmatprep.subr.bf16.mxu0 0
        %1304 = vmatpush2.bf16.msra.mxu0 0
        %1305 = vmatprep.subr.bf16.mxu0 0
        %1306 = vmatpush2.bf16.msra.mxu0 0
        %1307 = vmatprep.subr.bf16.mxu0 0
        %1308 = vmatpush2.bf16.msra.mxu0 0
        %1309 = vmatprep.subr.bf16.mxu0 0
        %1310 = vmatpush2.bf16.msra.mxu0 0
        %1311 = vmatprep.mubr.bf16.mxu0 0
        %1312 = vmatmul.mubr.bf16.gmra.mxu0 %v1273
        %v1313 = vpop.f32.mrf.mxu0
        %v1314 = vadd.f32 0.0, %v1313
        %v1315 = vpop.f32.mrf.mxu0
        %v1316 = vpop.f32.mrf.mxu0
        %v1317 = vpop.f32.mrf.mxu0
        %1318 = vdwg.mxu0
        %vm1319 = vcmask 130048
        %v1320 = vsel %vm1319, %v1314, -inf
        %1321 = vmax.xlane.f32.xlu0 %v1320
        %v1322 = vpop.xlane.xlu0 %1321
        %v1323 = vsub.f32 %v1314, %v1322
        %v1324 = vmul.f32 %v1323, 1.442695
        %v1325 = vpow.pop %v1324
        %v1326 = vsel %vm1319, %v1325, 0.0
        %1327 = vadd.xlane.f32.xlu0 %v1326
        %v1328 = vpop.xlane.xlu0 %1327
        %v1329 = vpack.c.bf16 %v1325, %v1325
        %v1330 = vld [vmem:[#allocation3] sm:$0xf]
        %v1331 = vld [vmem:[#allocation3 + $0x4] sm:$0xf]
        %v1334 = vunpack.c.l.b16 %v1330
        %v1335 = vunpack.c.l.b16 %v1331
        %v1336 = vpack.c.b16 %v1335, %v1334
        %v1339 = vsel %vm1319, %v1329, 0
        %1341 = vmatprep.subr.bf16.mxu0 0
        %1342 = vmatpush1.bf16.msra.mxu0 0
        %1343 = vmatprep.subr.bf16.mxu0 0
        %1344 = vmatpush1.bf16.msra.mxu0 0
        %1345 = vmatprep.subr.bf16.mxu0 0
        %1346 = vmatpush1.bf16.msra.mxu0 0
        %1347 = vmatprep.subr.bf16.mxu0 0
        %1348 = vmatpush1.bf16.msra.mxu0 0
        %1349 = vmatprep.subr.bf16.mxu0 0
        %1350 = vmatpush1.bf16.msra.mxu0 0
        %1351 = vmatprep.subr.bf16.mxu0 0
        %1352 = vmatpush1.bf16.msra.mxu0 0
        %1353 = vmatprep.subr.bf16.mxu0 0
        %1354 = vmatpush1.bf16.msra.mxu0 0
        %1355 = vmatprep.subr.bf16.mxu0 0
        %1356 = vmatpush1.bf16.msra.mxu0 %v1336
        %1357 = vmatprep.subr.bf16.mxu0 0
        %1358 = vmatpush2.bf16.msra.mxu0 0
        %1359 = vmatprep.subr.bf16.mxu0 0
        %1360 = vmatpush2.bf16.msra.mxu0 0
        %1361 = vmatprep.subr.bf16.mxu0 0
        %1362 = vmatpush2.bf16.msra.mxu0 0
        %1363 = vmatprep.subr.bf16.mxu0 0
        %1364 = vmatpush2.bf16.msra.mxu0 0
        %1365 = vmatprep.subr.bf16.mxu0 0
        %1366 = vmatpush2.bf16.msra.mxu0 0
        %1367 = vmatprep.subr.bf16.mxu0 0
        %1368 = vmatpush2.bf16.msra.mxu0 0
        %1369 = vmatprep.subr.bf16.mxu0 0
        %1370 = vmatpush2.bf16.msra.mxu0 0
        %1371 = vmatprep.subr.bf16.mxu0 0
        %1372 = vmatpush2.bf16.msra.mxu0 0
        %1373 = vmatprep.mubr.bf16.mxu0 0
        %1374 = vmatmul.mubr.bf16.gmra.mxu0 %v1339
        %v1375 = vpop.f32.mrf.mxu0
        %v1376 = vadd.f32 0.0, %v1375
        %v1377 = vpop.f32.mrf.mxu0
        %v1378 = vpop.f32.mrf.mxu0
        %v1379 = vpop.f32.mrf.mxu0
        %1380 = vdwg.mxu0
        %v1381 = vrcp.pop %v1328
        %v1382 = vmul.f32 %v1376, %v1381
        %v1383 = vpack.c.bf16 %v1382, %v1382
        %v1384 = vld [vmem:[%s4] sm:$0xf]
        %s1385 = scalar_lea.vmem %s1, 16
        %v1386 = vld [vmem:[%s1385] sm:$0xf]
        %v1387 = vld [vmem:[%s1385 + $0x4] sm:$0xf]
        %v1388 = vld [vmem:[%s1385 + $0x8] sm:$0xf]
        %v1389 = vld [vmem:[%s1385 + $0xc] sm:$0xf]
        %s1390 = scalar_lea.vmem %s5, 1
        %v1391 = vld [vmem:[%s1390] sm:$0x1]
        %v1393 = vlaneseq
        %v1394 = vshrl.u32 %v1393, 7
        %v1395 = vsub.s32 0, %v1394
        %v1396 = vrot.slane %v1391, %v1395
        %v1402 = vunpack.c.l.b16 %v1386
        %v1403 = vunpack.c.l.b16 %v1387
        %v1404 = vunpack.c.l.b16 %v1388
        %v1405 = vunpack.c.l.b16 %v1389
        %v1406 = vpack.c.b16 %v1403, %v1402
        %v1407 = vpack.c.b16 %v1405, %v1404
        %1410 = vmatprep.subr.bf16.mxu0 0
        %1411 = vmatpush1.bf16.msra.mxu0 0
        %1412 = vmatprep.subr.bf16.mxu0 0
        %1413 = vmatpush1.bf16.msra.mxu0 0
        %1414 = vmatprep.subr.bf16.mxu0 0
        %1415 = vmatpush1.bf16.msra.mxu0 0
        %1416 = vmatprep.subr.bf16.mxu0 0
        %1417 = vmatpush1.bf16.msra.mxu0 0
        %1418 = vmatprep.subr.bf16.mxu0 0
        %1419 = vmatpush1.bf16.msra.mxu0 0
        %1420 = vmatprep.subr.bf16.mxu0 0
        %1421 = vmatpush1.bf16.msra.mxu0 0
        %1422 = vmatprep.subr.bf16.mxu0 0
        %1423 = vmatpush1.bf16.msra.mxu0 %v1407
        %1424 = vmatprep.subr.bf16.mxu0 0
        %1425 = vmatpush1.bf16.msra.mxu0 %v1406
        %1426 = vmatprep.subr.bf16.mxu0 0
        %1427 = vmatpush2.bf16.msra.mxu0 0
        %1428 = vmatprep.subr.bf16.mxu0 0
        %1429 = vmatpush2.bf16.msra.mxu0 0
        %1430 = vmatprep.subr.bf16.mxu0 0
        %1431 = vmatpush2.bf16.msra.mxu0 0
        %1432 = vmatprep.subr.bf16.mxu0 0
        %1433 = vmatpush2.bf16.msra.mxu0 0
        %1434 = vmatprep.subr.bf16.mxu0 0
        %1435 = vmatpush2.bf16.msra.mxu0 0
        %1436 = vmatprep.subr.bf16.mxu0 0
        %1437 = vmatpush2.bf16.msra.mxu0 0
        %1438 = vmatprep.subr.bf16.mxu0 0
        %1439 = vmatpush2.bf16.msra.mxu0 0
        %1440 = vmatprep.subr.bf16.mxu0 0
        %1441 = vmatpush2.bf16.msra.mxu0 0
        %1442 = vmatprep.mubr.bf16.mxu0 0
        %1443 = vmatmul.mubr.bf16.gmra.mxu0 %v1226
        %v1444 = vpop.f32.mrf.mxu0
        %v1445 = vadd.f32 %v1396, %v1444
        %v1446 = vpop.f32.mrf.mxu0
        %v1447 = vpop.f32.mrf.mxu0
        %v1448 = vpop.f32.mrf.mxu0
        %1449 = vdwg.mxu0
        %v1450 = vmul.f32 %v1445, 0.35355338
        %v1451 = vpack.c.bf16 %v1450, %v1450
        %s1452 = scalar_lea.vmem [#allocation2], 4
        %v1453 = vld [vmem:[%s1452] sm:$0xf]
        %v1455 = vsel %vm1271, %v1451, 0
        %v1458 = vsel %vm1275, %v1453, 0
        %1460 = vmatprep.subr.bf16.mxu0 0
        %1461 = vmatpush1.bf16.msra.mxu0 0
        %1462 = vmatprep.subr.bf16.mxu0 0
        %1463 = vmatpush1.bf16.msra.mxu0 0
        %1464 = vmatprep.subr.bf16.mxu0 0
        %1465 = vmatpush1.bf16.msra.mxu0 0
        %1466 = vmatprep.subr.bf16.mxu0 0
        %1467 = vmatpush1.bf16.msra.mxu0 0
        %1468 = vmatprep.subr.bf16.mxu0 0
        %1469 = vmatpush1.bf16.msra.mxu0 0
        %1470 = vmatprep.subr.bf16.mxu0 0
        %1471 = vmatpush1.bf16.msra.mxu0 0
        %1472 = vmatprep.subr.bf16.mxu0 0
        %1473 = vmatpush1.bf16.msra.mxu0 0
        %1474 = vmatprep.subr.bf16.mxu0 0
        %1475 = vmatpush1.bf16.msra.mxu0 %v1458
        %1476 = vmatprep.subr.bf16.mxu0 0
        %1477 = vmatpush2.bf16.msra.mxu0 0
        %1478 = vmatprep.subr.bf16.mxu0 0
        %1479 = vmatpush2.bf16.msra.mxu0 0
        %1480 = vmatprep.subr.bf16.mxu0 0
        %1481 = vmatpush2.bf16.msra.mxu0 0
        %1482 = vmatprep.subr.bf16.mxu0 0
        %1483 = vmatpush2.bf16.msra.mxu0 0
        %1484 = vmatprep.subr.bf16.mxu0 0
        %1485 = vmatpush2.bf16.msra.mxu0 0
        %1486 = vmatprep.subr.bf16.mxu0 0
        %1487 = vmatpush2.bf16.msra.mxu0 0
        %1488 = vmatprep.subr.bf16.mxu0 0
        %1489 = vmatpush2.bf16.msra.mxu0 0
        %1490 = vmatprep.subr.bf16.mxu0 0
        %1491 = vmatpush2.bf16.msra.mxu0 0
        %1492 = vmatprep.mubr.bf16.mxu0 0
        %1493 = vmatmul.mubr.bf16.gmra.mxu0 %v1455
        %v1494 = vpop.f32.mrf.mxu0
        %v1495 = vadd.f32 0.0, %v1494
        %v1496 = vpop.f32.mrf.mxu0
        %v1497 = vpop.f32.mrf.mxu0
        %v1498 = vpop.f32.mrf.mxu0
        %1499 = vdwg.mxu0
        %v1500 = vsel %vm1319, %v1495, -inf
        %1501 = vmax.xlane.f32.xlu0 %v1500
        %v1502 = vpop.xlane.xlu0 %1501
        %v1503 = vsub.f32 %v1495, %v1502
        %v1504 = vmul.f32 %v1503, 1.442695
        %v1505 = vpow.pop %v1504
        %v1506 = vsel %vm1319, %v1505, 0.0
        %1507 = vadd.xlane.f32.xlu0 %v1506
        %v1508 = vpop.xlane.xlu0 %1507
        %v1509 = vpack.c.bf16 %v1505, %v1505
        %s1510 = scalar_lea.vmem [#allocation3], 8
        %v1511 = vld [vmem:[%s1510] sm:$0xf]
        %v1512 = vld [vmem:[%s1510 + $0x4] sm:$0xf]
        %v1515 = vunpack.c.l.b16 %v1511
        %v1516 = vunpack.c.l.b16 %v1512
        %v1517 = vpack.c.b16 %v1516, %v1515
        %v1520 = vsel %vm1319, %v1509, 0
        %1522 = vmatprep.subr.bf16.mxu0 0
        %1523 = vmatpush1.bf16.msra.mxu0 0
        %1524 = vmatprep.subr.bf16.mxu0 0
        %1525 = vmatpush1.bf16.msra.mxu0 0
        %1526 = vmatprep.subr.bf16.mxu0 0
        %1527 = vmatpush1.bf16.msra.mxu0 0
        %1528 = vmatprep.subr.bf16.mxu0 0
        %1529 = vmatpush1.bf16.msra.mxu0 0
        %1530 = vmatprep.subr.bf16.mxu0 0
        %1531 = vmatpush1.bf16.msra.mxu0 0
        %1532 = vmatprep.subr.bf16.mxu0 0
        %1533 = vmatpush1.bf16.msra.mxu0 0
        %1534 = vmatprep.subr.bf16.mxu0 0
        %1535 = vmatpush1.bf16.msra.mxu0 0
        %1536 = vmatprep.subr.bf16.mxu0 0
        %1537 = vmatpush1.bf16.msra.mxu0 %v1517
        %1538 = vmatprep.subr.bf16.mxu0 0
        %1539 = vmatpush2.bf16.msra.mxu0 0
        %1540 = vmatprep.subr.bf16.mxu0 0
        %1541 = vmatpush2.bf16.msra.mxu0 0
        %1542 = vmatprep.subr.bf16.mxu0 0
        %1543 = vmatpush2.bf16.msra.mxu0 0
        %1544 = vmatprep.subr.bf16.mxu0 0
        %1545 = vmatpush2.bf16.msra.mxu0 0
        %1546 = vmatprep.subr.bf16.mxu0 0
        %1547 = vmatpush2.bf16.msra.mxu0 0
        %1548 = vmatprep.subr.bf16.mxu0 0
        %1549 = vmatpush2.bf16.msra.mxu0 0
        %1550 = vmatprep.subr.bf16.mxu0 0
        %1551 = vmatpush2.bf16.msra.mxu0 0
        %1552 = vmatprep.subr.bf16.mxu0 0
        %1553 = vmatpush2.bf16.msra.mxu0 0
        %1554 = vmatprep.mubr.bf16.mxu0 0
        %1555 = vmatmul.mubr.bf16.gmra.mxu0 %v1520
        %v1556 = vpop.f32.mrf.mxu0
        %v1557 = vadd.f32 0.0, %v1556
        %v1558 = vpop.f32.mrf.mxu0
        %v1559 = vpop.f32.mrf.mxu0
        %v1560 = vpop.f32.mrf.mxu0
        %1561 = vdwg.mxu0
        %v1562 = vrcp.pop %v1508
        %v1563 = vmul.f32 %v1557, %v1562
        %v1564 = vpack.c.bf16 %v1563, %v1563
        %s1565 = scalar_lea.vmem %s4, 4
        %v1566 = vld [vmem:[%s1565] sm:$0xf]
        %v1568 = vsel %vm1271, %v1564, 0
        %v1571 = vsel %vm1275, %v1566, 0
        %1573 = vmatprep.subr.bf16.mxu0 0
        %1574 = vmatpush1.bf16.msra.mxu0 0
        %1575 = vmatprep.subr.bf16.mxu0 0
        %1576 = vmatpush1.bf16.msra.mxu0 0
        %1577 = vmatprep.subr.bf16.mxu0 0
        %1578 = vmatpush1.bf16.msra.mxu0 0
        %1579 = vmatprep.subr.bf16.mxu0 0
        %1580 = vmatpush1.bf16.msra.mxu0 0
        %1581 = vmatprep.subr.bf16.mxu0 0
        %1582 = vmatpush1.bf16.msra.mxu0 0
        %1583 = vmatprep.subr.bf16.mxu0 0
        %1584 = vmatpush1.bf16.msra.mxu0 0
        %1585 = vmatprep.subr.bf16.mxu0 0
        %1586 = vmatpush1.bf16.msra.mxu0 0
        %1587 = vmatprep.subr.bf16.mxu0 0
        %1588 = vmatpush1.bf16.msra.mxu0 %v1571
        %1589 = vmatprep.subr.bf16.mxu0 0
        %1590 = vmatpush2.bf16.msra.mxu0 0
        %1591 = vmatprep.subr.bf16.mxu0 0
        %1592 = vmatpush2.bf16.msra.mxu0 0
        %1593 = vmatprep.subr.bf16.mxu0 0
        %1594 = vmatpush2.bf16.msra.mxu0 0
        %1595 = vmatprep.subr.bf16.mxu0 0
        %1596 = vmatpush2.bf16.msra.mxu0 0
        %1597 = vmatprep.subr.bf16.mxu0 0
        %1598 = vmatpush2.bf16.msra.mxu0 0
        %1599 = vmatprep.subr.bf16.mxu0 0
        %1600 = vmatpush2.bf16.msra.mxu0 0
        %1601 = vmatprep.subr.bf16.mxu0 0
        %1602 = vmatpush2.bf16.msra.mxu0 0
        %1603 = vmatprep.subr.bf16.mxu0 0
        %1604 = vmatpush2.bf16.msra.mxu0 0
        %1605 = vmatprep.mubr.bf16.mxu0 0
        %1606 = vmatmul.mubr.bf16.gmra.mxu0 %v1568
        %v1607 = vpop.f32.mrf.mxu0
        %v1608 = vadd.f32 0.0, %v1607
        %v1609 = vpop.f32.mrf.mxu0
        %v1610 = vpop.f32.mrf.mxu0
        %v1611 = vpop.f32.mrf.mxu0
        %1612 = vdwg.mxu0
        %v1614 = vsel %vm1271, %v1383, 0
        %v1617 = vsel %vm1275, %v1384, 0
        %1619 = vmatprep.subr.bf16.mxu0 0
        %1620 = vmatpush1.bf16.msra.mxu0 0
        %1621 = vmatprep.subr.bf16.mxu0 0
        %1622 = vmatpush1.bf16.msra.mxu0 0
        %1623 = vmatprep.subr.bf16.mxu0 0
        %1624 = vmatpush1.bf16.msra.mxu0 0
        %1625 = vmatprep.subr.bf16.mxu0 0
        %1626 = vmatpush1.bf16.msra.mxu0 0
        %1627 = vmatprep.subr.bf16.mxu0 0
        %1628 = vmatpush1.bf16.msra.mxu0 0
        %1629 = vmatprep.subr.bf16.mxu0 0
        %1630 = vmatpush1.bf16.msra.mxu0 0
        %1631 = vmatprep.subr.bf16.mxu0 0
        %1632 = vmatpush1.bf16.msra.mxu0 0
        %1633 = vmatprep.subr.bf16.mxu0 0
        %1634 = vmatpush1.bf16.msra.mxu0 %v1617
        %1635 = vmatprep.subr.bf16.mxu0 0
        %1636 = vmatpush2.bf16.msra.mxu0 0
        %1637 = vmatprep.subr.bf16.mxu0 0
        %1638 = vmatpush2.bf16.msra.mxu0 0
        %1639 = vmatprep.subr.bf16.mxu0 0
        %1640 = vmatpush2.bf16.msra.mxu0 0
        %1641 = vmatprep.subr.bf16.mxu0 0
        %1642 = vmatpush2.bf16.msra.mxu0 0
        %1643 = vmatprep.subr.bf16.mxu0 0
        %1644 = vmatpush2.bf16.msra.mxu0 0
        %1645 = vmatprep.subr.bf16.mxu0 0
        %1646 = vmatpush2.bf16.msra.mxu0 0
        %1647 = vmatprep.subr.bf16.mxu0 0
        %1648 = vmatpush2.bf16.msra.mxu0 0
        %1649 = vmatprep.subr.bf16.mxu0 0
        %1650 = vmatpush2.bf16.msra.mxu0 0
        %1651 = vmatprep.mubr.bf16.mxu0 0
        %1652 = vmatmul.mubr.bf16.gmra.mxu0 %v1614
        %v1653 = vpop.f32.mrf.mxu0
        %v1654 = vadd.f32 %v1608, %v1653
        %v1655 = vpop.f32.mrf.mxu0
        %v1656 = vpop.f32.mrf.mxu0
        %v1657 = vpop.f32.mrf.mxu0
        %1658 = vdwg.mxu0
        %s1659 = scalar_lea.vmem %s1, 32
        %v1660 = vld [vmem:[%s1659] sm:$0xf]
        %v1661 = vld [vmem:[%s1659 + $0x4] sm:$0xf]
        %v1662 = vld [vmem:[%s1659 + $0x8] sm:$0xf]
        %v1663 = vld [vmem:[%s1659 + $0xc] sm:$0xf]
        %s1664 = scalar_lea.vmem %s5, 2
        %v1665 = vld [vmem:[%s1664] sm:$0x1]
        %v1667 = vlaneseq
        %v1668 = vshrl.u32 %v1667, 7
        %v1669 = vsub.s32 0, %v1668
        %v1670 = vrot.slane %v1665, %v1669
        %v1676 = vunpack.c.l.b16 %v1660
        %v1677 = vunpack.c.l.b16 %v1661
        %v1678 = vunpack.c.l.b16 %v1662
        %v1679 = vunpack.c.l.b16 %v1663
        %v1680 = vpack.c.b16 %v1677, %v1676
        %v1681 = vpack.c.b16 %v1679, %v1678
        %1684 = vmatprep.subr.bf16.mxu0 0
        %1685 = vmatpush1.bf16.msra.mxu0 0
        %1686 = vmatprep.subr.bf16.mxu0 0
        %1687 = vmatpush1.bf16.msra.mxu0 0
        %1688 = vmatprep.subr.bf16.mxu0 0
        %1689 = vmatpush1.bf16.msra.mxu0 0
        %1690 = vmatprep.subr.bf16.mxu0 0
        %1691 = vmatpush1.bf16.msra.mxu0 0
        %1692 = vmatprep.subr.bf16.mxu0 0
        %1693 = vmatpush1.bf16.msra.mxu0 0
        %1694 = vmatprep.subr.bf16.mxu0 0
        %1695 = vmatpush1.bf16.msra.mxu0 0
        %1696 = vmatprep.subr.bf16.mxu0 0
        %1697 = vmatpush1.bf16.msra.mxu0 %v1681
        %1698 = vmatprep.subr.bf16.mxu0 0
        %1699 = vmatpush1.bf16.msra.mxu0 %v1680
        %1700 = vmatprep.subr.bf16.mxu0 0
        %1701 = vmatpush2.bf16.msra.mxu0 0
        %1702 = vmatprep.subr.bf16.mxu0 0
        %1703 = vmatpush2.bf16.msra.mxu0 0
        %1704 = vmatprep.subr.bf16.mxu0 0
        %1705 = vmatpush2.bf16.msra.mxu0 0
        %1706 = vmatprep.subr.bf16.mxu0 0
        %1707 = vmatpush2.bf16.msra.mxu0 0
        %1708 = vmatprep.subr.bf16.mxu0 0
        %1709 = vmatpush2.bf16.msra.mxu0 0
        %1710 = vmatprep.subr.bf16.mxu0 0
        %1711 = vmatpush2.bf16.msra.mxu0 0
        %1712 = vmatprep.subr.bf16.mxu0 0
        %1713 = vmatpush2.bf16.msra.mxu0 0
        %1714 = vmatprep.subr.bf16.mxu0 0
        %1715 = vmatpush2.bf16.msra.mxu0 0
        %1716 = vmatprep.mubr.bf16.mxu0 0
        %1717 = vmatmul.mubr.bf16.gmra.mxu0 %v1226
        %v1718 = vpop.f32.mrf.mxu0
        %v1719 = vadd.f32 %v1670, %v1718
        %v1720 = vpop.f32.mrf.mxu0
        %v1721 = vpop.f32.mrf.mxu0
        %v1722 = vpop.f32.mrf.mxu0
        %1723 = vdwg.mxu0
        %v1724 = vmul.f32 %v1719, 0.35355338
        %v1725 = vpack.c.bf16 %v1724, %v1724
        %s1726 = scalar_lea.vmem [#allocation2], 8
        %v1727 = vld [vmem:[%s1726] sm:$0xf]
        %v1729 = vsel %vm1271, %v1725, 0
        %v1732 = vsel %vm1275, %v1727, 0
        %1734 = vmatprep.subr.bf16.mxu0 0
        %1735 = vmatpush1.bf16.msra.mxu0 0
        %1736 = vmatprep.subr.bf16.mxu0 0
        %1737 = vmatpush1.bf16.msra.mxu0 0
        %1738 = vmatprep.subr.bf16.mxu0 0
        %1739 = vmatpush1.bf16.msra.mxu0 0
        %1740 = vmatprep.subr.bf16.mxu0 0
        %1741 = vmatpush1.bf16.msra.mxu0 0
        %1742 = vmatprep.subr.bf16.mxu0 0
        %1743 = vmatpush1.bf16.msra.mxu0 0
        %1744 = vmatprep.subr.bf16.mxu0 0
        %1745 = vmatpush1.bf16.msra.mxu0 0
        %1746 = vmatprep.subr.bf16.mxu0 0
        %1747 = vmatpush1.bf16.msra.mxu0 0
        %1748 = vmatprep.subr.bf16.mxu0 0
        %1749 = vmatpush1.bf16.msra.mxu0 %v1732
        %1750 = vmatprep.subr.bf16.mxu0 0
        %1751 = vmatpush2.bf16.msra.mxu0 0
        %1752 = vmatprep.subr.bf16.mxu0 0
        %1753 = vmatpush2.bf16.msra.mxu0 0
        %1754 = vmatprep.subr.bf16.mxu0 0
        %1755 = vmatpush2.bf16.msra.mxu0 0
        %1756 = vmatprep.subr.bf16.mxu0 0
        %1757 = vmatpush2.bf16.msra.mxu0 0
        %1758 = vmatprep.subr.bf16.mxu0 0
        %1759 = vmatpush2.bf16.msra.mxu0 0
        %1760 = vmatprep.subr.bf16.mxu0 0
        %1761 = vmatpush2.bf16.msra.mxu0 0
        %1762 = vmatprep.subr.bf16.mxu0 0
        %1763 = vmatpush2.bf16.msra.mxu0 0
        %1764 = vmatprep.subr.bf16.mxu0 0
        %1765 = vmatpush2.bf16.msra.mxu0 0
        %1766 = vmatprep.mubr.bf16.mxu0 0
        %1767 = vmatmul.mubr.bf16.gmra.mxu0 %v1729
        %v1768 = vpop.f32.mrf.mxu0
        %v1769 = vadd.f32 0.0, %v1768
        %v1770 = vpop.f32.mrf.mxu0
        %v1771 = vpop.f32.mrf.mxu0
        %v1772 = vpop.f32.mrf.mxu0
        %1773 = vdwg.mxu0
        %v1774 = vsel %vm1319, %v1769, -inf
        %1775 = vmax.xlane.f32.xlu0 %v1774
        %v1776 = vpop.xlane.xlu0 %1775
        %v1777 = vsub.f32 %v1769, %v1776
        %v1778 = vmul.f32 %v1777, 1.442695
        %v1779 = vpow.pop %v1778
        %v1780 = vsel %vm1319, %v1779, 0.0
        %1781 = vadd.xlane.f32.xlu0 %v1780
        %v1782 = vpop.xlane.xlu0 %1781
        %v1783 = vpack.c.bf16 %v1779, %v1779
        %s1784 = scalar_lea.vmem [#allocation3], 16
        %v1785 = vld [vmem:[%s1784] sm:$0xf]
        %v1786 = vld [vmem:[%s1784 + $0x4] sm:$0xf]
        %v1789 = vunpack.c.l.b16 %v1785
        %v1790 = vunpack.c.l.b16 %v1786
        %v1791 = vpack.c.b16 %v1790, %v1789
        %v1794 = vsel %vm1319, %v1783, 0
        %1796 = vmatprep.subr.bf16.mxu0 0
        %1797 = vmatpush1.bf16.msra.mxu0 0
        %1798 = vmatprep.subr.bf16.mxu0 0
        %1799 = vmatpush1.bf16.msra.mxu0 0
        %1800 = vmatprep.subr.bf16.mxu0 0
        %1801 = vmatpush1.bf16.msra.mxu0 0
        %1802 = vmatprep.subr.bf16.mxu0 0
        %1803 = vmatpush1.bf16.msra.mxu0 0
        %1804 = vmatprep.subr.bf16.mxu0 0
        %1805 = vmatpush1.bf16.msra.mxu0 0
        %1806 = vmatprep.subr.bf16.mxu0 0
        %1807 = vmatpush1.bf16.msra.mxu0 0
        %1808 = vmatprep.subr.bf16.mxu0 0
        %1809 = vmatpush1.bf16.msra.mxu0 0
        %1810 = vmatprep.subr.bf16.mxu0 0
        %1811 = vmatpush1.bf16.msra.mxu0 %v1791
        %1812 = vmatprep.subr.bf16.mxu0 0
        %1813 = vmatpush2.bf16.msra.mxu0 0
        %1814 = vmatprep.subr.bf16.mxu0 0
        %1815 = vmatpush2.bf16.msra.mxu0 0
        %1816 = vmatprep.subr.bf16.mxu0 0
        %1817 = vmatpush2.bf16.msra.mxu0 0
        %1818 = vmatprep.subr.bf16.mxu0 0
        %1819 = vmatpush2.bf16.msra.mxu0 0
        %1820 = vmatprep.subr.bf16.mxu0 0
        %1821 = vmatpush2.bf16.msra.mxu0 0
        %1822 = vmatprep.subr.bf16.mxu0 0
        %1823 = vmatpush2.bf16.msra.mxu0 0
        %1824 = vmatprep.subr.bf16.mxu0 0
        %1825 = vmatpush2.bf16.msra.mxu0 0
        %1826 = vmatprep.subr.bf16.mxu0 0
        %1827 = vmatpush2.bf16.msra.mxu0 0
        %1828 = vmatprep.mubr.bf16.mxu0 0
        %1829 = vmatmul.mubr.bf16.gmra.mxu0 %v1794
        %v1830 = vpop.f32.mrf.mxu0
        %v1831 = vadd.f32 0.0, %v1830
        %v1832 = vpop.f32.mrf.mxu0
        %v1833 = vpop.f32.mrf.mxu0
        %v1834 = vpop.f32.mrf.mxu0
        %1835 = vdwg.mxu0
        %v1836 = vrcp.pop %v1782
        %v1837 = vmul.f32 %v1831, %v1836
        %v1838 = vpack.c.bf16 %v1837, %v1837
        %s1839 = scalar_lea.vmem %s4, 8
        %v1840 = vld [vmem:[%s1839] sm:$0xf]
        %v1842 = vsel %vm1271, %v1838, 0
        %v1845 = vsel %vm1275, %v1840, 0
        %1847 = vmatprep.subr.bf16.mxu0 0
        %1848 = vmatpush1.bf16.msra.mxu0 0
        %1849 = vmatprep.subr.bf16.mxu0 0
        %1850 = vmatpush1.bf16.msra.mxu0 0
        %1851 = vmatprep.subr.bf16.mxu0 0
        %1852 = vmatpush1.bf16.msra.mxu0 0
        %1853 = vmatprep.subr.bf16.mxu0 0
        %1854 = vmatpush1.bf16.msra.mxu0 0
        %1855 = vmatprep.subr.bf16.mxu0 0
        %1856 = vmatpush1.bf16.msra.mxu0 0
        %1857 = vmatprep.subr.bf16.mxu0 0
        %1858 = vmatpush1.bf16.msra.mxu0 0
        %1859 = vmatprep.subr.bf16.mxu0 0
        %1860 = vmatpush1.bf16.msra.mxu0 0
        %1861 = vmatprep.subr.bf16.mxu0 0
        %1862 = vmatpush1.bf16.msra.mxu0 %v1845
        %1863 = vmatprep.subr.bf16.mxu0 0
        %1864 = vmatpush2.bf16.msra.mxu0 0
        %1865 = vmatprep.subr.bf16.mxu0 0
        %1866 = vmatpush2.bf16.msra.mxu0 0
        %1867 = vmatprep.subr.bf16.mxu0 0
        %1868 = vmatpush2.bf16.msra.mxu0 0
        %1869 = vmatprep.subr.bf16.mxu0 0
        %1870 = vmatpush2.bf16.msra.mxu0 0
        %1871 = vmatprep.subr.bf16.mxu0 0
        %1872 = vmatpush2.bf16.msra.mxu0 0
        %1873 = vmatprep.subr.bf16.mxu0 0
        %1874 = vmatpush2.bf16.msra.mxu0 0
        %1875 = vmatprep.subr.bf16.mxu0 0
        %1876 = vmatpush2.bf16.msra.mxu0 0
        %1877 = vmatprep.subr.bf16.mxu0 0
        %1878 = vmatpush2.bf16.msra.mxu0 0
        %1879 = vmatprep.mubr.bf16.mxu0 0
        %1880 = vmatmul.mubr.bf16.gmra.mxu0 %v1842
        %v1881 = vpop.f32.mrf.mxu0
        %v1882 = vadd.f32 0.0, %v1881
        %v1883 = vpop.f32.mrf.mxu0
        %v1884 = vpop.f32.mrf.mxu0
        %v1885 = vpop.f32.mrf.mxu0
        %1886 = vdwg.mxu0
        %v1887 = vadd.f32 %v1654, %v1882
        %s1888 = scalar_lea.vmem %s1, 48
        %v1889 = vld [vmem:[%s1888] sm:$0xf]
        %v1890 = vld [vmem:[%s1888 + $0x4] sm:$0xf]
        %v1891 = vld [vmem:[%s1888 + $0x8] sm:$0xf]
        %v1892 = vld [vmem:[%s1888 + $0xc] sm:$0xf]
        %s1893 = scalar_lea.vmem %s5, 3
        %v1894 = vld [vmem:[%s1893] sm:$0x1]
        %v1896 = vlaneseq
        %v1897 = vshrl.u32 %v1896, 7
        %v1898 = vsub.s32 0, %v1897
        %v1899 = vrot.slane %v1894, %v1898
        %v1905 = vunpack.c.l.b16 %v1889
        %v1906 = vunpack.c.l.b16 %v1890
        %v1907 = vunpack.c.l.b16 %v1891
        %v1908 = vunpack.c.l.b16 %v1892
        %v1909 = vpack.c.b16 %v1906, %v1905
        %v1910 = vpack.c.b16 %v1908, %v1907
        %1913 = vmatprep.subr.bf16.mxu0 0
        %1914 = vmatpush1.bf16.msra.mxu0 0
        %1915 = vmatprep.subr.bf16.mxu0 0
        %1916 = vmatpush1.bf16.msra.mxu0 0
        %1917 = vmatprep.subr.bf16.mxu0 0
        %1918 = vmatpush1.bf16.msra.mxu0 0
        %1919 = vmatprep.subr.bf16.mxu0 0
        %1920 = vmatpush1.bf16.msra.mxu0 0
        %1921 = vmatprep.subr.bf16.mxu0 0
        %1922 = vmatpush1.bf16.msra.mxu0 0
        %1923 = vmatprep.subr.bf16.mxu0 0
        %1924 = vmatpush1.bf16.msra.mxu0 0
        %1925 = vmatprep.subr.bf16.mxu0 0
        %1926 = vmatpush1.bf16.msra.mxu0 %v1910
        %1927 = vmatprep.subr.bf16.mxu0 0
        %1928 = vmatpush1.bf16.msra.mxu0 %v1909
        %1929 = vmatprep.subr.bf16.mxu0 0
        %1930 = vmatpush2.bf16.msra.mxu0 0
        %1931 = vmatprep.subr.bf16.mxu0 0
        %1932 = vmatpush2.bf16.msra.mxu0 0
        %1933 = vmatprep.subr.bf16.mxu0 0
        %1934 = vmatpush2.bf16.msra.mxu0 0
        %1935 = vmatprep.subr.bf16.mxu0 0
        %1936 = vmatpush2.bf16.msra.mxu0 0
        %1937 = vmatprep.subr.bf16.mxu0 0
        %1938 = vmatpush2.bf16.msra.mxu0 0
        %1939 = vmatprep.subr.bf16.mxu0 0
        %1940 = vmatpush2.bf16.msra.mxu0 0
        %1941 = vmatprep.subr.bf16.mxu0 0
        %1942 = vmatpush2.bf16.msra.mxu0 0
        %1943 = vmatprep.subr.bf16.mxu0 0
        %1944 = vmatpush2.bf16.msra.mxu0 0
        %1945 = vmatprep.mubr.bf16.mxu0 0
        %1946 = vmatmul.mubr.bf16.gmra.mxu0 %v1226
        %v1947 = vpop.f32.mrf.mxu0
        %v1948 = vadd.f32 %v1899, %v1947
        %v1949 = vpop.f32.mrf.mxu0
        %v1950 = vpop.f32.mrf.mxu0
        %v1951 = vpop.f32.mrf.mxu0
        %1952 = vdwg.mxu0
        %v1953 = vmul.f32 %v1948, 0.35355338
        %v1954 = vpack.c.bf16 %v1953, %v1953
        %s1955 = scalar_lea.vmem [#allocation2], 12
        %v1956 = vld [vmem:[%s1955] sm:$0xf]
        %v1958 = vsel %vm1271, %v1954, 0
        %v1961 = vsel %vm1275, %v1956, 0
        %1963 = vmatprep.subr.bf16.mxu0 0
        %1964 = vmatpush1.bf16.msra.mxu0 0
        %1965 = vmatprep.subr.bf16.mxu0 0
        %1966 = vmatpush1.bf16.msra.mxu0 0
        %1967 = vmatprep.subr.bf16.mxu0 0
        %1968 = vmatpush1.bf16.msra.mxu0 0
        %1969 = vmatprep.subr.bf16.mxu0 0
        %1970 = vmatpush1.bf16.msra.mxu0 0
        %1971 = vmatprep.subr.bf16.mxu0 0
        %1972 = vmatpush1.bf16.msra.mxu0 0
        %1973 = vmatprep.subr.bf16.mxu0 0
        %1974 = vmatpush1.bf16.msra.mxu0 0
        %1975 = vmatprep.subr.bf16.mxu0 0
        %1976 = vmatpush1.bf16.msra.mxu0 0
        %1977 = vmatprep.subr.bf16.mxu0 0
        %1978 = vmatpush1.bf16.msra.mxu0 %v1961
        %1979 = vmatprep.subr.bf16.mxu0 0
        %1980 = vmatpush2.bf16.msra.mxu0 0
        %1981 = vmatprep.subr.bf16.mxu0 0
        %1982 = vmatpush2.bf16.msra.mxu0 0
        %1983 = vmatprep.subr.bf16.mxu0 0
        %1984 = vmatpush2.bf16.msra.mxu0 0
        %1985 = vmatprep.subr.bf16.mxu0 0
        %1986 = vmatpush2.bf16.msra.mxu0 0
        %1987 = vmatprep.subr.bf16.mxu0 0
        %1988 = vmatpush2.bf16.msra.mxu0 0
        %1989 = vmatprep.subr.bf16.mxu0 0
        %1990 = vmatpush2.bf16.msra.mxu0 0
        %1991 = vmatprep.subr.bf16.mxu0 0
        %1992 = vmatpush2.bf16.msra.mxu0 0
        %1993 = vmatprep.subr.bf16.mxu0 0
        %1994 = vmatpush2.bf16.msra.mxu0 0
        %1995 = vmatprep.mubr.bf16.mxu0 0
        %1996 = vmatmul.mubr.bf16.gmra.mxu0 %v1958
        %v1997 = vpop.f32.mrf.mxu0
        %v1998 = vadd.f32 0.0, %v1997
        %v1999 = vpop.f32.mrf.mxu0
        %v2000 = vpop.f32.mrf.mxu0
        %v2001 = vpop.f32.mrf.mxu0
        %2002 = vdwg.mxu0
        %v2003 = vsel %vm1319, %v1998, -inf
        %2004 = vmax.xlane.f32.xlu0 %v2003
        %v2005 = vpop.xlane.xlu0 %2004
        %v2006 = vsub.f32 %v1998, %v2005
        %v2007 = vmul.f32 %v2006, 1.442695
        %v2008 = vpow.pop %v2007
        %v2009 = vsel %vm1319, %v2008, 0.0
        %2010 = vadd.xlane.f32.xlu0 %v2009
        %v2011 = vpop.xlane.xlu0 %2010
        %v2012 = vpack.c.bf16 %v2008, %v2008
        %s2013 = scalar_lea.vmem [#allocation3], 24
        %v2014 = vld [vmem:[%s2013] sm:$0xf]
        %v2015 = vld [vmem:[%s2013 + $0x4] sm:$0xf]
        %v2018 = vunpack.c.l.b16 %v2014
        %v2019 = vunpack.c.l.b16 %v2015
        %v2020 = vpack.c.b16 %v2019, %v2018
        %v2023 = vsel %vm1319, %v2012, 0
        %2025 = vmatprep.subr.bf16.mxu0 0
        %2026 = vmatpush1.bf16.msra.mxu0 0
        %2027 = vmatprep.subr.bf16.mxu0 0
        %2028 = vmatpush1.bf16.msra.mxu0 0
        %2029 = vmatprep.subr.bf16.mxu0 0
        %2030 = vmatpush1.bf16.msra.mxu0 0
        %2031 = vmatprep.subr.bf16.mxu0 0
        %2032 = vmatpush1.bf16.msra.mxu0 0
        %2033 = vmatprep.subr.bf16.mxu0 0
        %2034 = vmatpush1.bf16.msra.mxu0 0
        %2035 = vmatprep.subr.bf16.mxu0 0
        %2036 = vmatpush1.bf16.msra.mxu0 0
        %2037 = vmatprep.subr.bf16.mxu0 0
        %2038 = vmatpush1.bf16.msra.mxu0 0
        %2039 = vmatprep.subr.bf16.mxu0 0
        %2040 = vmatpush1.bf16.msra.mxu0 %v2020
        %2041 = vmatprep.subr.bf16.mxu0 0
        %2042 = vmatpush2.bf16.msra.mxu0 0
        %2043 = vmatprep.subr.bf16.mxu0 0
        %2044 = vmatpush2.bf16.msra.mxu0 0
        %2045 = vmatprep.subr.bf16.mxu0 0
        %2046 = vmatpush2.bf16.msra.mxu0 0
        %2047 = vmatprep.subr.bf16.mxu0 0
        %2048 = vmatpush2.bf16.msra.mxu0 0
        %2049 = vmatprep.subr.bf16.mxu0 0
        %2050 = vmatpush2.bf16.msra.mxu0 0
        %2051 = vmatprep.subr.bf16.mxu0 0
        %2052 = vmatpush2.bf16.msra.mxu0 0
        %2053 = vmatprep.subr.bf16.mxu0 0
        %2054 = vmatpush2.bf16.msra.mxu0 0
        %2055 = vmatprep.subr.bf16.mxu0 0
        %2056 = vmatpush2.bf16.msra.mxu0 0
        %2057 = vmatprep.mubr.bf16.mxu0 0
        %2058 = vmatmul.mubr.bf16.gmra.mxu0 %v2023
        %v2059 = vpop.f32.mrf.mxu0
        %v2060 = vadd.f32 0.0, %v2059
        %v2061 = vpop.f32.mrf.mxu0
        %v2062 = vpop.f32.mrf.mxu0
        %v2063 = vpop.f32.mrf.mxu0
        %2064 = vdwg.mxu0
        %v2065 = vrcp.pop %v2011
        %v2066 = vmul.f32 %v2060, %v2065
        %v2067 = vpack.c.bf16 %v2066, %v2066
        %s2068 = scalar_lea.vmem %s4, 12
        %v2069 = vld [vmem:[%s2068] sm:$0xf]
        %v2071 = vsel %vm1271, %v2067, 0
        %v2074 = vsel %vm1275, %v2069, 0
        %2076 = vmatprep.subr.bf16.mxu0 0
        %2077 = vmatpush1.bf16.msra.mxu0 0
        %2078 = vmatprep.subr.bf16.mxu0 0
        %2079 = vmatpush1.bf16.msra.mxu0 0
        %2080 = vmatprep.subr.bf16.mxu0 0
        %2081 = vmatpush1.bf16.msra.mxu0 0
        %2082 = vmatprep.subr.bf16.mxu0 0
        %2083 = vmatpush1.bf16.msra.mxu0 0
        %2084 = vmatprep.subr.bf16.mxu0 0
        %2085 = vmatpush1.bf16.msra.mxu0 0
        %2086 = vmatprep.subr.bf16.mxu0 0
        %2087 = vmatpush1.bf16.msra.mxu0 0
        %2088 = vmatprep.subr.bf16.mxu0 0
        %2089 = vmatpush1.bf16.msra.mxu0 0
        %2090 = vmatprep.subr.bf16.mxu0 0
        %2091 = vmatpush1.bf16.msra.mxu0 %v2074
        %2092 = vmatprep.subr.bf16.mxu0 0
        %2093 = vmatpush2.bf16.msra.mxu0 0
        %2094 = vmatprep.subr.bf16.mxu0 0
        %2095 = vmatpush2.bf16.msra.mxu0 0
        %2096 = vmatprep.subr.bf16.mxu0 0
        %2097 = vmatpush2.bf16.msra.mxu0 0
        %2098 = vmatprep.subr.bf16.mxu0 0
        %2099 = vmatpush2.bf16.msra.mxu0 0
        %2100 = vmatprep.subr.bf16.mxu0 0
        %2101 = vmatpush2.bf16.msra.mxu0 0
        %2102 = vmatprep.subr.bf16.mxu0 0
        %2103 = vmatpush2.bf16.msra.mxu0 0
        %2104 = vmatprep.subr.bf16.mxu0 0
        %2105 = vmatpush2.bf16.msra.mxu0 0
        %2106 = vmatprep.subr.bf16.mxu0 0
        %2107 = vmatpush2.bf16.msra.mxu0 0
        %2108 = vmatprep.mubr.bf16.mxu0 0
        %2109 = vmatmul.mubr.bf16.gmra.mxu0 %v2071
        %v2110 = vpop.f32.mrf.mxu0
        %v2111 = vadd.f32 0.0, %v2110
        %v2112 = vpop.f32.mrf.mxu0
        %v2113 = vpop.f32.mrf.mxu0
        %v2114 = vpop.f32.mrf.mxu0
        %2115 = vdwg.mxu0
        %v2116 = vadd.f32 %v1887, %v2111
        %v2117 = vld [vmem:[%s8] sm:$0x1]
        %v2119 = vlaneseq
        %v2120 = vshrl.u32 %v2119, 7
        %v2121 = vsub.s32 0, %v2120
        %v2122 = vrot.slane %v2117, %v2121
        %v2124 = vadd.f32 %v2116, %v2122
        %v2125 = vadd.f32 %v1199, %v2124
        %v2126 = vld [vmem:[%s9] sm:$0x1]
        %v2127 = vld [vmem:[%s10] sm:$0x1]
        %v2128 = vsel %vm1224, %v2125, 0.0
        %2129 = vadd.xlane.f32.xlu0 %v2128
        %v2130 = vpop.xlane.xlu0 %2129
        %v2131 = vrcp.pop 32.0
        %v2132 = vmul.f32 %v2130, %v2131
        %v2133 = vsub.f32 %v2125, %v2132
        %v2134 = vmul.f32 %v2133, %v2133
        %v2135 = vsel %vm1224, %v2134, 0.0
        %2136 = vadd.xlane.f32.xlu0 %v2135
        %v2137 = vpop.xlane.xlu0 %2136
        %v2138 = vmul.f32 %v2137, %v2131
        %v2139 = vadd.f32 %v2138, 1e-05
        %v2140 = vrsqrt.pop %v2139
        %v2141 = vmul.f32 %v2133, %v2140
        %v2143 = vlaneseq
        %v2144 = vshrl.u32 %v2143, 7
        %v2145 = vsub.s32 0, %v2144
        %v2146 = vrot.slane %v2126, %v2145
        %v2148 = vmul.f32 %v2141, %v2146
        %v2150 = vlaneseq
        %v2151 = vshrl.u32 %v2150, 7
        %v2152 = vsub.s32 0, %v2151
        %v2153 = vrot.slane %v2127, %v2152
        %v2155 = vadd.f32 %v2148, %v2153
        %v2156 = vpack.c.bf16 %v2155, %v2155
        %v2157 = vld [vmem:[%s11] sm:$0xf]
        %v2158 = vld [vmem:[%s11 + $0x4] sm:$0xf]
        %v2159 = vld [vmem:[%s11 + $0x8] sm:$0xf]
        %v2160 = vld [vmem:[%s11 + $0xc] sm:$0xf]
        %v2161 = vld [vmem:[%s12] sm:$0x1]
        %v2163 = vlaneseq
        %v2164 = vshrl.u32 %v2163, 7
        %v2165 = vsub.s32 0, %v2164
        %v2166 = vrot.slane %v2161, %v2165
        %v2172 = vunpack.c.l.b16 %v2157
        %v2173 = vunpack.c.l.b16 %v2158
        %v2174 = vunpack.c.l.b16 %v2159
        %v2175 = vunpack.c.l.b16 %v2160
        %v2176 = vpack.c.b16 %v2173, %v2172
        %v2177 = vpack.c.b16 %v2175, %v2174
        %v2181 = vsel %vm1224, %v2156, 0
        %2183 = vmatprep.subr.bf16.mxu0 0
        %2184 = vmatpush1.bf16.msra.mxu0 0
        %2185 = vmatprep.subr.bf16.mxu0 0
        %2186 = vmatpush1.bf16.msra.mxu0 0
        %2187 = vmatprep.subr.bf16.mxu0 0
        %2188 = vmatpush1.bf16.msra.mxu0 0
        %2189 = vmatprep.subr.bf16.mxu0 0
        %2190 = vmatpush1.bf16.msra.mxu0 0
        %2191 = vmatprep.subr.bf16.mxu0 0
        %2192 = vmatpush1.bf16.msra.mxu0 0
        %2193 = vmatprep.subr.bf16.mxu0 0
        %2194 = vmatpush1.bf16.msra.mxu0 0
        %2195 = vmatprep.subr.bf16.mxu0 0
        %2196 = vmatpush1.bf16.msra.mxu0 %v2177
        %2197 = vmatprep.subr.bf16.mxu0 0
        %2198 = vmatpush1.bf16.msra.mxu0 %v2176
        %2199 = vmatprep.subr.bf16.mxu0 0
        %2200 = vmatpush2.bf16.msra.mxu0 0
        %2201 = vmatprep.subr.bf16.mxu0 0
        %2202 = vmatpush2.bf16.msra.mxu0 0
        %2203 = vmatprep.subr.bf16.mxu0 0
        %2204 = vmatpush2.bf16.msra.mxu0 0
        %2205 = vmatprep.subr.bf16.mxu0 0
        %2206 = vmatpush2.bf16.msra.mxu0 0
        %2207 = vmatprep.subr.bf16.mxu0 0
        %2208 = vmatpush2.bf16.msra.mxu0 0
        %2209 = vmatprep.subr.bf16.mxu0 0
        %2210 = vmatpush2.bf16.msra.mxu0 0
        %2211 = vmatprep.subr.bf16.mxu0 0
        %2212 = vmatpush2.bf16.msra.mxu0 0
        %2213 = vmatprep.subr.bf16.mxu0 0
        %2214 = vmatpush2.bf16.msra.mxu0 0
        %2215 = vmatprep.mubr.bf16.mxu0 0
        %2216 = vmatmul.mubr.bf16.gmra.mxu0 %v2181
        %v2217 = vpop.f32.mrf.mxu0
        %v2218 = vadd.f32 %v2166, %v2217
        %v2219 = vpop.f32.mrf.mxu0
        %v2220 = vpop.f32.mrf.mxu0
        %v2221 = vpop.f32.mrf.mxu0
        %2222 = vdwg.mxu0
        %v2223 = vmul.f32 %v2218, 0.5
        %v2224 = vmul.f32 %v2218, 0.70710677
        %v2225 = verf.f32.pop %v2224
        %v2226 = vadd.f32 %v2225, 1.0
        %v2227 = vmul.f32 %v2223, %v2226
        %v2228 = vpack.c.bf16 %v2227, %v2227
        %v2229 = vld [vmem:[%s13] sm:$0xf]
        %v2230 = vld [vmem:[%s13 + $0x4] sm:$0xf]
        %v2231 = vld [vmem:[%s13 + $0x8] sm:$0xf]
        %v2232 = vld [vmem:[%s13 + $0xc] sm:$0xf]
        %v2233 = vld [vmem:[%s13 + $0x10] sm:$0xf]
        %v2234 = vld [vmem:[%s13 + $0x14] sm:$0xf]
        %v2235 = vld [vmem:[%s13 + $0x18] sm:$0xf]
        %v2236 = vld [vmem:[%s13 + $0x1c] sm:$0xf]
        %v2237 = vld [vmem:[%s14] sm:$0x1]
        %v2239 = vlaneseq
        %v2240 = vshrl.u32 %v2239, 7
        %v2241 = vsub.s32 0, %v2240
        %v2242 = vrot.slane %v2237, %v2241
        %v2252 = vunpack.c.l.b16 %v2229
        %v2253 = vunpack.c.l.b16 %v2230
        %v2254 = vunpack.c.l.b16 %v2231
        %v2255 = vunpack.c.l.b16 %v2232
        %v2256 = vunpack.c.l.b16 %v2233
        %v2257 = vunpack.c.l.b16 %v2234
        %v2258 = vunpack.c.l.b16 %v2235
        %v2259 = vunpack.c.l.b16 %v2236
        %v2260 = vpack.c.b16 %v2253, %v2252
        %v2261 = vpack.c.b16 %v2255, %v2254
        %v2262 = vpack.c.b16 %v2257, %v2256
        %v2263 = vpack.c.b16 %v2259, %v2258
        %vm2268 = vcmask 523264
        %v2270 = vsel %vm2268, %v2228, 0
        %2272 = vmatprep.subr.bf16.mxu0 0
        %2273 = vmatpush1.bf16.msra.mxu0 0
        %2274 = vmatprep.subr.bf16.mxu0 0
        %2275 = vmatpush1.bf16.msra.mxu0 0
        %2276 = vmatprep.subr.bf16.mxu0 0
        %2277 = vmatpush1.bf16.msra.mxu0 0
        %2278 = vmatprep.subr.bf16.mxu0 0
        %2279 = vmatpush1.bf16.msra.mxu0 0
        %2280 = vmatprep.subr.bf16.mxu0 0
        %2281 = vmatpush1.bf16.msra.mxu0 %v2263
        %2282 = vmatprep.subr.bf16.mxu0 0
        %2283 = vmatpush1.bf16.msra.mxu0 %v2262
        %2284 = vmatprep.subr.bf16.mxu0 0
        %2285 = vmatpush1.bf16.msra.mxu0 %v2261
        %2286 = vmatprep.subr.bf16.mxu0 0
        %2287 = vmatpush1.bf16.msra.mxu0 %v2260
        %2288 = vmatprep.subr.bf16.mxu0 0
        %2289 = vmatpush2.bf16.msra.mxu0 0
        %2290 = vmatprep.subr.bf16.mxu0 0
        %2291 = vmatpush2.bf16.msra.mxu0 0
        %2292 = vmatprep.subr.bf16.mxu0 0
        %2293 = vmatpush2.bf16.msra.mxu0 0
        %2294 = vmatprep.subr.bf16.mxu0 0
        %2295 = vmatpush2.bf16.msra.mxu0 0
        %2296 = vmatprep.subr.bf16.mxu0 0
        %2297 = vmatpush2.bf16.msra.mxu0 0
        %2298 = vmatprep.subr.bf16.mxu0 0
        %2299 = vmatpush2.bf16.msra.mxu0 0
        %2300 = vmatprep.subr.bf16.mxu0 0
        %2301 = vmatpush2.bf16.msra.mxu0 0
        %2302 = vmatprep.subr.bf16.mxu0 0
        %2303 = vmatpush2.bf16.msra.mxu0 0
        %2304 = vmatprep.mubr.bf16.mxu0 0
        %2305 = vmatmul.mubr.bf16.gmra.mxu0 %v2270
        %v2306 = vpop.f32.mrf.mxu0
        %v2307 = vadd.f32 %v2242, %v2306
        %v2308 = vpop.f32.mrf.mxu0
        %v2309 = vpop.f32.mrf.mxu0
        %v2310 = vpop.f32.mrf.mxu0
        %2311 = vdwg.mxu0
        %v2312 = vadd.f32 %v2307, %v2155
        %v2313 = vld [vmem:[%s15] sm:$0x1]
        %v2314 = vld [vmem:[%s16] sm:$0x1]
        %v2315 = vsel %vm1224, %v2312, 0.0
        %2316 = vadd.xlane.f32.xlu0 %v2315
        %v2317 = vpop.xlane.xlu0 %2316
        %v2318 = vmul.f32 %v2317, %v2131
        %v2319 = vsub.f32 %v2312, %v2318
        %v2320 = vmul.f32 %v2319, %v2319
        %v2321 = vsel %vm1224, %v2320, 0.0
        %2322 = vadd.xlane.f32.xlu0 %v2321
        %v2323 = vpop.xlane.xlu0 %2322
        %v2324 = vmul.f32 %v2323, %v2131
        %v2325 = vadd.f32 %v2324, 1e-05
        %v2326 = vrsqrt.pop %v2325
        %v2327 = vmul.f32 %v2319, %v2326
        %v2329 = vlaneseq
        %v2330 = vshrl.u32 %v2329, 7
        %v2331 = vsub.s32 0, %v2330
        %v2332 = vrot.slane %v2313, %v2331
        %v2334 = vmul.f32 %v2327, %v2332
        %v2336 = vlaneseq
        %v2337 = vshrl.u32 %v2336, 7
        %v2338 = vsub.s32 0, %v2337
        %v2339 = vrot.slane %v2314, %v2338
        %v2341 = vadd.f32 %v2334, %v2339
        %2342 = vst.msk [vmem:[%s555] sm:$0xff] %vm1224, %v2341
        %s2343 = sand.u32 %s415, 1
        %s2344 = scalar_lea.sflag [#allocation5], %s2343
        %s2345 = sand.u32 %s415, 1
        %s2346 = smul.addr %s2345, 8
        %s2347 = scalar_lea.vmem [#allocation4], %s2346
        // Predicated region
        $region93: #{tpu_custom_call.1} parent=87 // pred_check
          %p2348 = pneg %p425
        $region94: #{tpu_custom_call.1} parent=87 // pred_check_branch
          %2350 = sbr.rel (%p2348) target = $region96
        $region95: #{tpu_custom_call.1} parent=87 // pred_region
          %s2352 = ssub.s32 128, 128
          %2353 = vsyncadd %s2344, %s2352
          %s2354 = smul.addr %s35, 2
          %s2355 = sadd.s32 %s36, %s2354
          %s2356 = smul.addr %s2355, 128
          %s2357 = scalar_lea.hbm %s17, %s2356
          %s2359 = sshll.u32 %s2347, 4
          %s2360 = int_to_ptr.vmem [resolvable:$true] %s2359
          %2362 = dma.vmem_to_hbm [thread:$0]  %s2360, 128, %s2357, %s2344
        $region96: #{tpu_custom_call.1} parent=87 // pred_fallthru
          _
      $region88: #{tpu_custom_call.1} parent=5 // pred_fallthru
        _
      %p2363 = scmp.le.s32.totalorder 2, %s26
      // Predicated region
      $region97: #{tpu_custom_call.1} parent=5 // pred_check
        %p2364 = pneg %p2363
      $region98: #{tpu_custom_call.1} parent=5 // pred_check_branch
        %2366 = sbr.rel (%p2364) target = $region100
      $region99: #{tpu_custom_call.1} parent=5 // pred_region
        %s2367 = ssub.s32 %s26, 2
        // Predicated region
        $region101: #{tpu_custom_call.1} parent=99 // pred_check
          %p2368 = pneg %p431
        $region102: #{tpu_custom_call.1} parent=99 // pred_check_branch
          %2370 = sbr.rel (%p2368) target = $region104
        $region103: #{tpu_custom_call.1} parent=99 // pred_region
          %s2371 = sand.u32 %s416, 1
          %s2372 = scalar_lea.sflag [#allocation5], %s2371
          %s2373 = sand.u32 %s416, 1
          %s2374 = smul.addr %s2373, 8
          %s2375 = scalar_lea.vmem [#allocation4], %s2374
          %2376 = dma.done %s2372, 128
        $region104: #{tpu_custom_call.1} parent=99 // pred_fallthru
          _
      $region100: #{tpu_custom_call.1} parent=5 // pred_fallthru
        _
    $region6: #{tpu_custom_call.1} parent=1 // loop_footer
      %s30 = sadd.s32 1, %s26
    $region7: #{tpu_custom_call.1} parent=1 // loop_footer_branch
      %25 = sbr.rel target = $region3
    $region8: #{tpu_custom_call.1} parent=1 // loop_exit
      _
    %2377 = vsyncpa [#allocation5], 1
    %s2378 = scalar_lea.sflag [#allocation5], 1
    %2379 = vsyncpa %s2378, 1

// kernel: tpu_custom_call.1
$region0: #{tpu_custom_call.1}
  #allocation0 [shape = 'u32[]', space=smem, size = 0x4, offset = 0x4, fixed_abs, tag = 'smem constant byte address 0x4 - core index']
  #allocation1 [shape = 'u32[144,128]{1,0:T(1,128)}', space=vmem, size = 0x12000, scoped, tag = 'internal scratch']
  #allocation2 [shape = 'bf16[4,8,16]{2,1,0:T(8,128)(2,1)}', space=vmem, size = 0x2000, scoped, tag = 'scratch operand']
  #allocation3 [shape = 'bf16[4,16,8]{2,1,0:T(8,128)(2,1)}', space=vmem, size = 0x4000, scoped, tag = 'scratch operand']
  %s0 = inlined_call_operand.vmem [shape: f32[2,16,32], index: 0, kind: input, shape index: {}]
  %s1 = inlined_call_operand.vmem [shape: bf16[4,32,8], index: 1, kind: input, shape index: {}]
  %s2 = inlined_call_operand.vmem [shape: bf16[4,32,8], index: 2, kind: input, shape index: {}]
  %s3 = inlined_call_operand.vmem [shape: bf16[4,32,8], index: 3, kind: input, shape index: {}]
  %s4 = inlined_call_operand.vmem [shape: bf16[4,8,32], index: 4, kind: input, shape index: {}]
  %s5 = inlined_call_operand.vmem [shape: f32[4,1,8], index: 5, kind: input, shape index: {}]
  %s6 = inlined_call_operand.vmem [shape: f32[4,8,1], index: 6, kind: input, shape index: {}]
  %s7 = inlined_call_operand.vmem [shape: f32[4,1,8], index: 7, kind: input, shape index: {}]
  %s8 = inlined_call_operand.vmem [shape: f32[1,32], index: 8, kind: input, shape index: {}]
  %s9 = inlined_call_operand.vmem [shape: f32[1,32], index: 9, kind: input, shape index: {}]
  %s10 = inlined_call_operand.vmem [shape: f32[1,32], index: 10, kind: input, shape index: {}]
  %s11 = inlined_call_operand.vmem [shape: bf16[32,64], index: 11, kind: input, shape index: {}]
  %s12 = inlined_call_operand.vmem [shape: f32[1,64], index: 12, kind: input, shape index: {}]
  %s13 = inlined_call_operand.vmem [shape: bf16[64,32], index: 13, kind: input, shape index: {}]
  %s14 = inlined_call_operand.vmem [shape: f32[1,32], index: 14, kind: input, shape index: {}]
  %s15 = inlined_call_operand.vmem [shape: f32[1,32], index: 15, kind: input, shape index: {}]
  %s16 = inlined_call_operand.vmem [shape: f32[1,32], index: 16, kind: input, shape index: {}]
  %s17 = inlined_call_operand.hbm [shape: f32[2,16,32], index: 17, kind: output, shape index: {}]
  %s18 = sld [smem:[#allocation0]]
  $region105: #{tpu_custom_call.1} parent=0
    _
  %s20 = ssub.s32 1, %s18
  %s21 = scalar_select 0, %s20, %s18
  $region1: #{tpu_custom_call.1} parent=0
    #allocation4 [shape = 'u8[8192]{0}', space=vmem, size = 0x2000, scoped, tag = 'output window, operand 0']
    #allocation5 [shape = 's32[2]{0}', space=sflag, size = 0x8, scoped, tag = 'scoped memory for tpu_custom_call.1']
    %22 = vsyncpa [#allocation5], 0
    %s23 = scalar_lea.sflag [#allocation5], 1
    %24 = vsyncpa %s23, 0
    loop: start=0, step=1, limit=6
    $region2: #{tpu_custom_call.1} parent=1 // loop_pre_header
      _
    $region3: #{tpu_custom_call.1} parent=1 // loop_header
      %s26 = sphi 0, %s30
      %p27 = scmp.ge.s32.totalorder %s26, 6
      %s33 = sphi 0, %s45
      %s34 = sphi 0, %s41
      %s35 = sphi 0, %s33
      %s36 = sphi 0, %s34
      %s37 = sphi 0, %s35
      %s38 = sphi 0, %s36
      %s48 = sphi 0, %s50
      %s51 = sphi 0, %s48
      %s52 = sphi 0, %s51
      %s68 = sphi 0, %s52
      %s72 = sphi 0, %s72
      %s74 = sphi 0, %s72
      %s75 = sphi 0, %s74
      %s89 = sphi 0, %s75
      %s93 = sphi 0, %s93
      %s95 = sphi 0, %s93
      %s96 = sphi 0, %s95
      %s110 = sphi 0, %s96
      %s114 = sphi 0, %s114
      %s116 = sphi 0, %s114
      %s117 = sphi 0, %s116
      %s131 = sphi 0, %s117
      %s135 = sphi 0, %s135
      %s137 = sphi 0, %s135
      %s138 = sphi 0, %s137
      %s152 = sphi 0, %s138
      %s156 = sphi 0, %s156
      %s158 = sphi 0, %s156
      %s159 = sphi 0, %s158
      %s173 = sphi 0, %s159
      %s177 = sphi 0, %s177
      %s179 = sphi 0, %s177
      %s180 = sphi 0, %s179
      %s194 = sphi 0, %s180
      %s198 = sphi 0, %s198
      %s200 = sphi 0, %s198
      %s201 = sphi 0, %s200
      %s215 = sphi 0, %s201
      %s219 = sphi 0, %s219
      %s221 = sphi 0, %s219
      %s222 = sphi 0, %s221
      %s236 = sphi 0, %s222
      %s240 = sphi 0, %s240
      %s242 = sphi 0, %s240
      %s243 = sphi 0, %s242
      %s257 = sphi 0, %s243
      %s261 = sphi 0, %s261
      %s263 = sphi 0, %s261
      %s264 = sphi 0, %s263
      %s278 = sphi 0, %s264
      %s282 = sphi 0, %s282
      %s284 = sphi 0, %s282
      %s285 = sphi 0, %s284
      %s299 = sphi 0, %s285
      %s303 = sphi 0, %s303
      %s305 = sphi 0, %s303
      %s306 = sphi 0, %s305
      %s320 = sphi 0, %s306
      %s324 = sphi 0, %s324
      %s326 = sphi 0, %s324
      %s327 = sphi 0, %s326
      %s341 = sphi 0, %s327
      %s345 = sphi 0, %s345
      %s347 = sphi 0, %s345
      %s348 = sphi 0, %s347
      %s362 = sphi 0, %s348
      %s366 = sphi 0, %s366
      %s368 = sphi 0, %s366
      %s369 = sphi 0, %s368
      %s383 = sphi 0, %s369
      %s387 = sphi 0, %s387
      %s389 = sphi 0, %s387
      %s390 = sphi 0, %s389
      %s404 = sphi 0, %s390
      %s412 = sphi 0, %s414
      %s415 = sphi 0, %s412
      %s416 = sphi 0, %s415
      %s432 = sphi 0, %s416
    $region4: #{tpu_custom_call.1} parent=1 // loop_header_branch
      %29 = sbr.rel (%p27) target = $region8
    $region5: #{tpu_custom_call.1} parent=1 // loop_body
      %s31 = ssub.s32 %s26, 1
      %s32 = ssub.s32 %s26, 2
      %s39 = sadd.s32 1, %s34
      %p40 = scmp.ge.s32.totalorder %s39, 2
      %s41 = scalar_select %p40, 0, %s39
      %s42 = sadd.s32 1, %s33
      %s43 = scalar_select %p40, %s42, %s33
      %p44 = scmp.ge.s32.totalorder %s43, 2
      %s45 = scalar_select %p44, 0, %s43
      %s46 = ssub.s32 %s33, %s45
      %p47 = scmp.eq.s32.totalorder %s46, 0
      %s49 = sadd.s32 %s48, 1
      %s50 = scalar_select %p47, %s48, %s49
      %p53 = pneg %p47
      %p54 = scmp.eq.s32.totalorder %s26, 3
      %p55 = por %p53, %p54
      %p56 = scmp.ne.s32.totalorder %s48, %s51
      %p57 = scmp.eq.s32.totalorder %s26, 0
      %p58 = por %p56, %p57
      %p59 = scmp.ne.s32.totalorder %s48, %s51
      %p60 = scmp.eq.s32.totalorder %s31, 3
      %p61 = por %p59, %p60
      %p62 = scmp.ne.s32.totalorder %s51, %s52
      %p63 = scmp.eq.s32.totalorder %s31, 0
      %p64 = por %p62, %p63
      %p65 = scmp.ne.s32.totalorder %s51, %s52
      %p66 = scmp.eq.s32.totalorder %s32, 3
      %p67 = por %p65, %p66
      %p69 = scmp.ne.s32.totalorder %s52, %s68
      %p70 = scmp.eq.s32.totalorder %s32, 0
      %p71 = por %p69, %p70
      %s73 = sadd.s32 %s72, 1
      %p76 = scmp.eq.s32.totalorder %s26, 3
      %p77 = scmp.ne.s32.totalorder %s72, %s74
      %p78 = scmp.eq.s32.totalorder %s26, 0
      %p79 = por %p77, %p78
      %p80 = scmp.ne.s32.totalorder %s72, %s74
      %p81 = scmp.eq.s32.totalorder %s31, 3
      %p82 = por %p80, %p81
      %p83 = scmp.ne.s32.totalorder %s74, %s75
      %p84 = scmp.eq.s32.totalorder %s31, 0
      %p85 = por %p83, %p84
      %p86 = scmp.ne.s32.totalorder %s74, %s75
      %p87 = scmp.eq.s32.totalorder %s32, 3
      %p88 = por %p86, %p87
      %p90 = scmp.ne.s32.totalorder %s75, %s89
      %p91 = scmp.eq.s32.totalorder %s32, 0
      %p92 = por %p90, %p91
      %s94 = sadd.s32 %s93, 1
      %p97 = scmp.eq.s32.totalorder %s26, 3
      %p98 = scmp.ne.s32.totalorder %s93, %s95
      %p99 = scmp.eq.s32.totalorder %s26, 0
      %p100 = por %p98, %p99
      %p101 = scmp.ne.s32.totalorder %s93, %s95
      %p102 = scmp.eq.s32.totalorder %s31, 3
      %p103 = por %p101, %p102
      %p104 = scmp.ne.s32.totalorder %s95, %s96
      %p105 = scmp.eq.s32.totalorder %s31, 0
      %p106 = por %p104, %p105
      %p107 = scmp.ne.s32.totalorder %s95, %s96
      %p108 = scmp.eq.s32.totalorder %s32, 3
      %p109 = por %p107, %p108
      %p111 = scmp.ne.s32.totalorder %s96, %s110
      %p112 = scmp.eq.s32.totalorder %s32, 0
      %p113 = por %p111, %p112
      %s115 = sadd.s32 %s114, 1
      %p118 = scmp.eq.s32.totalorder %s26, 3
      %p119 = scmp.ne.s32.totalorder %s114, %s116
      %p120 = scmp.eq.s32.totalorder %s26, 0
      %p121 = por %p119, %p120
      %p122 = scmp.ne.s32.totalorder %s114, %s116
      %p123 = scmp.eq.s32.totalorder %s31, 3
      %p124 = por %p122, %p123
      %p125 = scmp.ne.s32.totalorder %s116, %s117
      %p126 = scmp.eq.s32.totalorder %s31, 0
      %p127 = por %p125, %p126
      %p128 = scmp.ne.s32.totalorder %s116, %s117
      %p129 = scmp.eq.s32.totalorder %s32, 3
      %p130 = por %p128, %p129
      %p132 = scmp.ne.s32.totalorder %s117, %s131
      %p133 = scmp.eq.s32.totalorder %s32, 0
      %p134 = por %p132, %p133
      %s136 = sadd.s32 %s135, 1
      %p139 = scmp.eq.s32.totalorder %s26, 3
      %p140 = scmp.ne.s32.totalorder %s135, %s137
      %p141 = scmp.eq.s32.totalorder %s26, 0
      %p142 = por %p140, %p141
      %p143 = scmp.ne.s32.totalorder %s135, %s137
      %p144 = scmp.eq.s32.totalorder %s31, 3
      %p145 = por %p143, %p144
      %p146 = scmp.ne.s32.totalorder %s137, %s138
      %p147 = scmp.eq.s32.totalorder %s31, 0
      %p148 = por %p146, %p147
      %p149 = scmp.ne.s32.totalorder %s137, %s138
      %p150 = scmp.eq.s32.totalorder %s32, 3
      %p151 = por %p149, %p150
      %p153 = scmp.ne.s32.totalorder %s138, %s152
      %p154 = scmp.eq.s32.totalorder %s32, 0
      %p155 = por %p153, %p154
      %s157 = sadd.s32 %s156, 1
      %p160 = scmp.eq.s32.totalorder %s26, 3
      %p161 = scmp.ne.s32.totalorder %s156, %s158
      %p162 = scmp.eq.s32.totalorder %s26, 0
      %p163 = por %p161, %p162
      %p164 = scmp.ne.s32.totalorder %s156, %s158
      %p165 = scmp.eq.s32.totalorder %s31, 3
      %p166 = por %p164, %p165
      %p167 = scmp.ne.s32.totalorder %s158, %s159
      %p168 = scmp.eq.s32.totalorder %s31, 0
      %p169 = por %p167, %p168
      %p170 = scmp.ne.s32.totalorder %s158, %s159
      %p171 = scmp.eq.s32.totalorder %s32, 3
      %p172 = por %p170, %p171
      %p174 = scmp.ne.s32.totalorder %s159, %s173
      %p175 = scmp.eq.s32.totalorder %s32, 0
      %p176 = por %p174, %p175
      %s178 = sadd.s32 %s177, 1
      %p181 = scmp.eq.s32.totalorder %s26, 3
      %p182 = scmp.ne.s32.totalorder %s177, %s179
      %p183 = scmp.eq.s32.totalorder %s26, 0
      %p184 = por %p182, %p183
      %p185 = scmp.ne.s32.totalorder %s177, %s179
      %p186 = scmp.eq.s32.totalorder %s31, 3
      %p187 = por %p185, %p186
      %p188 = scmp.ne.s32.totalorder %s179, %s180
      %p189 = scmp.eq.s32.totalorder %s31, 0
      %p190 = por %p188, %p189
      %p191 = scmp.ne.s32.totalorder %s179, %s180
      %p192 = scmp.eq.s32.totalorder %s32, 3
      %p193 = por %p191, %p192
      %p195 = scmp.ne.s32.totalorder %s180, %s194
      %p196 = scmp.eq.s32.totalorder %s32, 0
      %p197 = por %p195, %p196
      %s199 = sadd.s32 %s198, 1
      %p202 = scmp.eq.s32.totalorder %s26, 3
      %p203 = scmp.ne.s32.totalorder %s198, %s200
      %p204 = scmp.eq.s32.totalorder %s26, 0
      %p205 = por %p203, %p204
      %p206 = scmp.ne.s32.totalorder %s198, %s200
      %p207 = scmp.eq.s32.totalorder %s31, 3
      %p208 = por %p206, %p207
      %p209 = scmp.ne.s32.totalorder %s200, %s201
      %p210 = scmp.eq.s32.totalorder %s31, 0
      %p211 = por %p209, %p210
      %p212 = scmp.ne.s32.totalorder %s200, %s201
      %p213 = scmp.eq.s32.totalorder %s32, 3
      %p214 = por %p212, %p213
      %p216 = scmp.ne.s32.totalorder %s201, %s215
      %p217 = scmp.eq.s32.totalorder %s32, 0
      %p218 = por %p216, %p217
      %s220 = sadd.s32 %s219, 1
      %p223 = scmp.eq.s32.totalorder %s26, 3
      %p224 = scmp.ne.s32.totalorder %s219, %s221
      %p225 = scmp.eq.s32.totalorder %s26, 0
      %p226 = por %p224, %p225
      %p227 = scmp.ne.s32.totalorder %s219, %s221
      %p228 = scmp.eq.s32.totalorder %s31, 3
      %p229 = por %p227, %p228
      %p230 = scmp.ne.s32.totalorder %s221, %s222
      %p231 = scmp.eq.s32.totalorder %s31, 0
      %p232 = por %p230, %p231
      %p233 = scmp.ne.s32.totalorder %s221, %s222
      %p234 = scmp.eq.s32.totalorder %s32, 3
      %p235 = por %p233, %p234
      %p237 = scmp.ne.s32.totalorder %s222, %s236
      %p238 = scmp.eq.s32.totalorder %s32, 0
      %p239 = por %p237, %p238
      %s241 = sadd.s32 %s240, 1
      %p244 = scmp.eq.s32.totalorder %s26, 3
      %p245 = scmp.ne.s32.totalorder %s240, %s242
      %p246 = scmp.eq.s32.totalorder %s26, 0
      %p247 = por %p245, %p246
      %p248 = scmp.ne.s32.totalorder %s240, %s242
      %p249 = scmp.eq.s32.totalorder %s31, 3
      %p250 = por %p248, %p249
      %p251 = scmp.ne.s32.totalorder %s242, %s243
      %p252 = scmp.eq.s32.totalorder %s31, 0
      %p253 = por %p251, %p252
      %p254 = scmp.ne.s32.totalorder %s242, %s243
      %p255 = scmp.eq.s32.totalorder %s32, 3
      %p256 = por %p254, %p255
      %p258 = scmp.ne.s32.totalorder %s243, %s257
      %p259 = scmp.eq.s32.totalorder %s32, 0
      %p260 = por %p258, %p259
      %s262 = sadd.s32 %s261, 1
      %p265 = scmp.eq.s32.totalorder %s26, 3
      %p266 = scmp.ne.s32.totalorder %s261, %s263
      %p267 = scmp.eq.s32.totalorder %s26, 0
      %p268 = por %p266, %p267
      %p269 = scmp.ne.s32.totalorder %s261, %s263
      %p270 = scmp.eq.s32.totalorder %s31, 3
      %p271 = por %p269, %p270
      %p272 = scmp.ne.s32.totalorder %s263, %s264
      %p273 = scmp.eq.s32.totalorder %s31, 0
      %p274 = por %p272, %p273
      %p275 = scmp.ne.s32.totalorder %s263, %s264
      %p276 = scmp.eq.s32.totalorder %s32, 3
      %p277 = por %p275, %p276
      %p279 = scmp.ne.s32.totalorder %s264, %s278
      %p280 = scmp.eq.s32.totalorder %s32, 0
      %p281 = por %p279, %p280
      %s283 = sadd.s32 %s282, 1
      %p286 = scmp.eq.s32.totalorder %s26, 3
      %p287 = scmp.ne.s32.totalorder %s282, %s284
      %p288 = scmp.eq.s32.totalorder %s26, 0
      %p289 = por %p287, %p288
      %p290 = scmp.ne.s32.totalorder %s282, %s284
      %p291 = scmp.eq.s32.totalorder %s31, 3
      %p292 = por %p290, %p291
      %p293 = scmp.ne.s32.totalorder %s284, %s285
      %p294 = scmp.eq.s32.totalorder %s31, 0
      %p295 = por %p293, %p294
      %p296 = scmp.ne.s32.totalorder %s284, %s285
      %p297 = scmp.eq.s32.totalorder %s32, 3
      %p298 = por %p296, %p297
      %p300 = scmp.ne.s32.totalorder %s285, %s299
      %p301 = scmp.eq.s32.totalorder %s32, 0
      %p302 = por %p300, %p301
      %s304 = sadd.s32 %s303, 1
      %p307 = scmp.eq.s32.totalorder %s26, 3
      %p308 = scmp.ne.s32.totalorder %s303, %s305
      %p309 = scmp.eq.s32.totalorder %s26, 0
      %p310 = por %p308, %p309
      %p311 = scmp.ne.s32.totalorder %s303, %s305
      %p312 = scmp.eq.s32.totalorder %s31, 3
      %p313 = por %p311, %p312
      %p314 = scmp.ne.s32.totalorder %s305, %s306
      %p315 = scmp.eq.s32.totalorder %s31, 0
      %p316 = por %p314, %p315
      %p317 = scmp.ne.s32.totalorder %s305, %s306
      %p318 = scmp.eq.s32.totalorder %s32, 3
      %p319 = por %p317, %p318
      %p321 = scmp.ne.s32.totalorder %s306, %s320
      %p322 = scmp.eq.s32.totalorder %s32, 0
      %p323 = por %p321, %p322
      %s325 = sadd.s32 %s324, 1
      %p328 = scmp.eq.s32.totalorder %s26, 3
      %p329 = scmp.ne.s32.totalorder %s324, %s326
      %p330 = scmp.eq.s32.totalorder %s26, 0
      %p331 = por %p329, %p330
      %p332 = scmp.ne.s32.totalorder %s324, %s326
      %p333 = scmp.eq.s32.totalorder %s31, 3
      %p334 = por %p332, %p333
      %p335 = scmp.ne.s32.totalorder %s326, %s327
      %p336 = scmp.eq.s32.totalorder %s31, 0
      %p337 = por %p335, %p336
      %p338 = scmp.ne.s32.totalorder %s326, %s327
      %p339 = scmp.eq.s32.totalorder %s32, 3
      %p340 = por %p338, %p339
      %p342 = scmp.ne.s32.totalorder %s327, %s341
      %p343 = scmp.eq.s32.totalorder %s32, 0
      %p344 = por %p342, %p343
      %s346 = sadd.s32 %s345, 1
      %p349 = scmp.eq.s32.totalorder %s26, 3
      %p350 = scmp.ne.s32.totalorder %s345, %s347
      %p351 = scmp.eq.s32.totalorder %s26, 0
      %p352 = por %p350, %p351
      %p353 = scmp.ne.s32.totalorder %s345, %s347
      %p354 = scmp.eq.s32.totalorder %s31, 3
      %p355 = por %p353, %p354
      %p356 = scmp.ne.s32.totalorder %s347, %s348
      %p357 = scmp.eq.s32.totalorder %s31, 0
      %p358 = por %p356, %p357
      %p359 = scmp.ne.s32.totalorder %s347, %s348
      %p360 = scmp.eq.s32.totalorder %s32, 3
      %p361 = por %p359, %p360
      %p363 = scmp.ne.s32.totalorder %s348, %s362
      %p364 = scmp.eq.s32.totalorder %s32, 0
      %p365 = por %p363, %p364
      %s367 = sadd.s32 %s366, 1
      %p370 = scmp.eq.s32.totalorder %s26, 3
      %p371 = scmp.ne.s32.totalorder %s366, %s368
      %p372 = scmp.eq.s32.totalorder %s26, 0
      %p373 = por %p371, %p372
      %p374 = scmp.ne.s32.totalorder %s366, %s368
      %p375 = scmp.eq.s32.totalorder %s31, 3
      %p376 = por %p374, %p375
      %p377 = scmp.ne.s32.totalorder %s368, %s369
      %p378 = scmp.eq.s32.totalorder %s31, 0
      %p379 = por %p377, %p378
      %p380 = scmp.ne.s32.totalorder %s368, %s369
      %p381 = scmp.eq.s32.totalorder %s32, 3
      %p382 = por %p380, %p381
      %p384 = scmp.ne.s32.totalorder %s369, %s383
      %p385 = scmp.eq.s32.totalorder %s32, 0
      %p386 = por %p384, %p385
      %s388 = sadd.s32 %s387, 1
      %p391 = scmp.eq.s32.totalorder %s26, 3
      %p392 = scmp.ne.s32.totalorder %s387, %s389
      %p393 = scmp.eq.s32.totalorder %s26, 0
      %p394 = por %p392, %p393
      %p395 = scmp.ne.s32.totalorder %s387, %s389
      %p396 = scmp.eq.s32.totalorder %s31, 3
      %p397 = por %p395, %p396
      %p398 = scmp.ne.s32.totalorder %s389, %s390
      %p399 = scmp.eq.s32.totalorder %s31, 0
      %p400 = por %p398, %p399
      %p401 = scmp.ne.s32.totalorder %s389, %s390
      %p402 = scmp.eq.s32.totalorder %s32, 3
      %p403 = por %p401, %p402
      %p405 = scmp.ne.s32.totalorder %s390, %s404
      %p406 = scmp.eq.s32.totalorder %s32, 0
      %p407 = por %p405, %p406
      %s408 = ssub.s32 %s33, %s45
      %s409 = ssub.s32 %s34, %s41
      %s410 = sor.u32 %s408, %s409
      %p411 = scmp.eq.s32.totalorder %s410, 0
      %s413 = sadd.s32 %s412, 1
      %s414 = scalar_select %p411, %s412, %s413
      %p417 = pneg %p411
      %p418 = scmp.eq.s32.totalorder %s26, 3
      %p419 = por %p417, %p418
      %p420 = scmp.ne.s32.totalorder %s412, %s415
      %p421 = scmp.eq.s32.totalorder %s26, 0
      %p422 = por %p420, %p421
      %p423 = scmp.ne.s32.totalorder %s412, %s415
      %p424 = scmp.eq.s32.totalorder %s31, 3
      %p425 = por %p423, %p424
      %p426 = scmp.ne.s32.totalorder %s415, %s416
      %p427 = scmp.eq.s32.totalorder %s31, 0
      %p428 = por %p426, %p427
      %p429 = scmp.ne.s32.totalorder %s415, %s416
      %p430 = scmp.eq.s32.totalorder %s32, 3
      %p431 = por %p429, %p430
      %p433 = scmp.ne.s32.totalorder %s416, %s432
      %p434 = scmp.eq.s32.totalorder %s32, 0
      %p435 = por %p433, %p434
      %p436 = scmp.le.s32.totalorder 1, %s26
      %p437 = scmp.lt.s32.totalorder %s26, 5
      %p438 = pnand %p436, %p437
      %p439 = pneg %p438
      // Predicated region
      $region9: #{tpu_custom_call.1} parent=5 // pred_check
        _
      $region10: #{tpu_custom_call.1} parent=5 // pred_check_branch
        %441 = sbr.rel (%p438) target = $region12
      $region11: #{tpu_custom_call.1} parent=5 // pred_region
        %s442 = ssub.s32 %s26, 1
        // Predicated region
        $region13: #{tpu_custom_call.1} parent=11 // pred_check
          %p443 = pneg %p85
        $region14: #{tpu_custom_call.1} parent=11 // pred_check_branch
          %445 = sbr.rel (%p443) target = $region16
        $region15: #{tpu_custom_call.1} parent=11 // pred_region
          _
        $region16: #{tpu_custom_call.1} parent=11 // pred_fallthru
          _
        // Predicated region
        $region17: #{tpu_custom_call.1} parent=11 // pred_check
          %p446 = pneg %p106
        $region18: #{tpu_custom_call.1} parent=11 // pred_check_branch
          %448 = sbr.rel (%p446) target = $region20
        $region19: #{tpu_custom_call.1} parent=11 // pred_region
          _
        $region20: #{tpu_custom_call.1} parent=11 // pred_fallthru
          _
        // Predicated region
        $region21: #{tpu_custom_call.1} parent=11 // pred_check
          %p449 = pneg %p127
        $region22: #{tpu_custom_call.1} parent=11 // pred_check_branch
          %451 = sbr.rel (%p449) target = $region24
        $region23: #{tpu_custom_call.1} parent=11 // pred_region
          _
        $region24: #{tpu_custom_call.1} parent=11 // pred_fallthru
          _
        // Predicated region
        $region25: #{tpu_custom_call.1} parent=11 // pred_check
          %p452 = pneg %p148
        $region26: #{tpu_custom_call.1} parent=11 // pred_check_branch
          %454 = sbr.rel (%p452) target = $region28
        $region27: #{tpu_custom_call.1} parent=11 // pred_region
          _
        $region28: #{tpu_custom_call.1} parent=11 // pred_fallthru
          _
        // Predicated region
        $region29: #{tpu_custom_call.1} parent=11 // pred_check
          %p455 = pneg %p169
        $region30: #{tpu_custom_call.1} parent=11 // pred_check_branch
          %457 = sbr.rel (%p455) target = $region32
        $region31: #{tpu_custom_call.1} parent=11 // pred_region
          _
        $region32: #{tpu_custom_call.1} parent=11 // pred_fallthru
          _
        // Predicated region
        $region33: #{tpu_custom_call.1} parent=11 // pred_check
          %p458 = pneg %p190
        $region34: #{tpu_custom_call.1} parent=11 // pred_check_branch
          %460 = sbr.rel (%p458) target = $region36
        $region35: #{tpu_custom_call.1} parent=11 // pred_region
          _
        $region36: #{tpu_custom_call.1} parent=11 // pred_fallthru
          _
        // Predicated region
        $region37: #{tpu_custom_call.1} parent=11 // pred_check
          %p461 = pneg %p211
        $region38: #{tpu_custom_call.1} parent=11 // pred_check_branch
          %463 = sbr.rel (%p461) target = $region40
        $region39: #{tpu_custom_call.1} parent=11 // pred_region
          _
        $region40: #{tpu_custom_call.1} parent=11 // pred_fallthru
          _
        // Predicated region
        $region41: #{tpu_custom_call.1} parent=11 // pred_check
          %p464 = pneg %p232
        $region42: #{tpu_custom_call.1} parent=11 // pred_check_branch
          %466 = sbr.rel (%p464) target = $region44
        $region43: #{tpu_custom_call.1} parent=11 // pred_region
          _
        $region44: #{tpu_custom_call.1} parent=11 // pred_fallthru
          _
        // Predicated region
        $region45: #{tpu_custom_call.1} parent=11 // pred_check
          %p467 = pneg %p253
        $region46: #{tpu_custom_call.1} parent=11 // pred_check_branch
          %469 = sbr.rel (%p467) target = $region48
        $region47: #{tpu_custom_call.1} parent=11 // pred_region
          _
        $region48: #{tpu_custom_call.1} parent=11 // pred_fallthru
          _
        // Predicated region
        $region49: #{tpu_custom_call.1} parent=11 // pred_check
          %p470 = pneg %p274
        $region50: #{tpu_custom_call.1} parent=11 // pred_check_branch
          %472 = sbr.rel (%p470) target = $region52
        $region51: #{tpu_custom_call.1} parent=11 // pred_region
          _
        $region52: #{tpu_custom_call.1} parent=11 // pred_fallthru
          _
        // Predicated region
        $region53: #{tpu_custom_call.1} parent=11 // pred_check
          %p473 = pneg %p295
        $region54: #{tpu_custom_call.1} parent=11 // pred_check_branch
          %475 = sbr.rel (%p473) target = $region56
        $region55: #{tpu_custom_call.1} parent=11 // pred_region
          _
        $region56: #{tpu_custom_call.1} parent=11 // pred_fallthru
          _
        // Predicated region
        $region57: #{tpu_custom_call.1} parent=11 // pred_check
          %p476 = pneg %p316
        $region58: #{tpu_custom_call.1} parent=11 // pred_check_branch
          %478 = sbr.rel (%p476) target = $region60
        $region59: #{tpu_custom_call.1} parent=11 // pred_region
          _
        $region60: #{tpu_custom_call.1} parent=11 // pred_fallthru
          _
        // Predicated region
        $region61: #{tpu_custom_call.1} parent=11 // pred_check
          %p479 = pneg %p337
        $region62: #{tpu_custom_call.1} parent=11 // pred_check_branch
          %481 = sbr.rel (%p479) target = $region64
        $region63: #{tpu_custom_call.1} parent=11 // pred_region
          _
        $region64: #{tpu_custom_call.1} parent=11 // pred_fallthru
          _
        // Predicated region
        $region65: #{tpu_custom_call.1} parent=11 // pred_check
          %p482 = pneg %p358
        $region66: #{tpu_custom_call.1} parent=11 // pred_check_branch
          %484 = sbr.rel (%p482) target = $region68
        $region67: #{tpu_custom_call.1} parent=11 // pred_region
          _
        $region68: #{tpu_custom_call.1} parent=11 // pred_fallthru
          _
        // Predicated region
        $region69: #{tpu_custom_call.1} parent=11 // pred_check
          %p485 = pneg %p379
        $region70: #{tpu_custom_call.1} parent=11 // pred_check_branch
          %487 = sbr.rel (%p485) target = $region72
        $region71: #{tpu_custom_call.1} parent=11 // pred_region
          _
        $region72: #{tpu_custom_call.1} parent=11 // pred_fallthru
          _
        // Predicated region
        $region73: #{tpu_custom_call.1} parent=11 // pred_check
          %p488 = pneg %p400
        $region74: #{tpu_custom_call.1} parent=11 // pred_check_branch
          %490 = sbr.rel (%p488) target = $region76
        $region75: #{tpu_custom_call.1} parent=11 // pred_region
          _
        $region76: #{tpu_custom_call.1} parent=11 // pred_fallthru
          _
      $region12: #{tpu_custom_call.1} parent=5 // pred_fallthru
        _
      %p491 = scmp.lt.s32.totalorder %s26, 4
      // Predicated region
      $region77: #{tpu_custom_call.1} parent=5 // pred_check
        %p492 = pneg %p491
      $region78: #{tpu_custom_call.1} parent=5 // pred_check_branch
        %494 = sbr.rel (%p492) target = $region80
      $region79: #{tpu_custom_call.1} parent=5 // pred_region
        // Predicated region
        $region81: #{tpu_custom_call.1} parent=79 // pred_check
          %p495 = pneg %p58
        $region82: #{tpu_custom_call.1} parent=79 // pred_check_branch
          %497 = sbr.rel (%p495) target = $region84
        $region83: #{tpu_custom_call.1} parent=79 // pred_region
          %p498 = scmp.lt.s32.totalorder %s33, 1
          %s499 = scalar_select %p498, %s33, 1
          %s500 = smul.addr %s499, 2
          %s501 = smul.addr %s500, 8
          %s502 = scalar_lea.vmem %s0, %s501
        $region84: #{tpu_custom_call.1} parent=79 // pred_fallthru
          _
      $region80: #{tpu_custom_call.1} parent=5 // pred_fallthru
        _
      %p503 = scmp.le.s32.totalorder 1, %s26
      %p504 = scmp.lt.s32.totalorder %s26, 5
      %p505 = pnand %p503, %p504
      %p506 = pneg %p505
      // Predicated region
      $region85: #{tpu_custom_call.1} parent=5 // pred_check
        _
      $region86: #{tpu_custom_call.1} parent=5 // pred_check_branch
        %508 = sbr.rel (%p505) target = $region88
      $region87: #{tpu_custom_call.1} parent=5 // pred_region
        %s509 = ssub.s32 %s26, 1
        %p510 = scmp.lt.s32.totalorder %s35, 1
        %s511 = scalar_select %p510, %s35, 1
        %s512 = smul.addr %s511, 2
        %s513 = smul.addr %s512, 8
        %s514 = scalar_lea.vmem %s0, %s513
        %p515 = pneg %p64
        %p516 = pneg %p61
        %p517 = pneg %p85
        %p518 = pneg %p82
        %p519 = pneg %p106
        %p520 = pneg %p103
        %p521 = pneg %p127
        %p522 = pneg %p124
        %p523 = pneg %p148
        %p524 = pneg %p145
        %p525 = pneg %p169
        %p526 = pneg %p166
        %p527 = pneg %p190
        %p528 = pneg %p187
        %p529 = pneg %p211
        %p530 = pneg %p208
        %p531 = pneg %p232
        %p532 = pneg %p229
        %p533 = pneg %p253
        %p534 = pneg %p250
        %p535 = pneg %p274
        %p536 = pneg %p271
        %p537 = pneg %p295
        %p538 = pneg %p292
        %p539 = pneg %p316
        %p540 = pneg %p313
        %p541 = pneg %p337
        %p542 = pneg %p334
        %p543 = pneg %p358
        %p544 = pneg %p355
        %p545 = pneg %p379
        %p546 = pneg %p376
        %p547 = pneg %p400
        %p548 = pneg %p397
        %p549 = pneg %p428
        %p550 = pneg %p425
        %s551 = sand.u32 %s415, 1
        %s552 = scalar_lea.sflag [#allocation5], %s551
        %s553 = sand.u32 %s415, 1
        %s554 = smul.addr %s553, 8
        %s555 = scalar_lea.vmem [#allocation4], %s554
        %p556 = scmp.lt.s32.totalorder %s35, 1
        %s557 = scalar_select %p556, %s35, 1
        %s558 = smul.addr %s557, 2
        %s559 = smul.addr %s558, 8
        %s560 = scalar_lea.vmem %s0, %s559
        %p562 = scmp.eq.s32.totalorder %s36, 0
        // Predicated region
        $region89: #{tpu_custom_call.1} parent=87 // pred_check
          %p563 = pneg %p562
        $region90: #{tpu_custom_call.1} parent=87 // pred_check_branch
          %565 = sbr.rel (%p563) target = $region92
        $region91: #{tpu_custom_call.1} parent=87 // pred_region
          %v566 = vld [vmem:[%s560] sm:$0xff]
          %v567 = vld [vmem:[%s560 + $0x8] sm:$0xff]
          %v568 = vpack.c.bf16 %v567, %v566
          %v569 = vld [vmem:[%s2] sm:$0xf]
          %v570 = vld [vmem:[%s2 + $0x4] sm:$0xf]
          %v571 = vld [vmem:[%s2 + $0x8] sm:$0xf]
          %v572 = vld [vmem:[%s2 + $0xc] sm:$0xf]
          %v573 = vld [vmem:[%s2 + $0x10] sm:$0xf]
          %v574 = vld [vmem:[%s2 + $0x14] sm:$0xf]
          %v575 = vld [vmem:[%s2 + $0x18] sm:$0xf]
          %v576 = vld [vmem:[%s2 + $0x1c] sm:$0xf]
          %v577 = vld [vmem:[%s2 + $0x20] sm:$0xf]
          %v578 = vld [vmem:[%s2 + $0x24] sm:$0xf]
          %v579 = vld [vmem:[%s2 + $0x28] sm:$0xf]
          %v580 = vld [vmem:[%s2 + $0x2c] sm:$0xf]
          %v581 = vld [vmem:[%s2 + $0x30] sm:$0xf]
          %v582 = vld [vmem:[%s2 + $0x34] sm:$0xf]
          %v583 = vld [vmem:[%s2 + $0x38] sm:$0xf]
          %v584 = vld [vmem:[%s2 + $0x3c] sm:$0xf]
          %v585 = vld [vmem:[%s3] sm:$0xf]
          %v586 = vld [vmem:[%s3 + $0x4] sm:$0xf]
          %v587 = vld [vmem:[%s3 + $0x8] sm:$0xf]
          %v588 = vld [vmem:[%s3 + $0xc] sm:$0xf]
          %v589 = vld [vmem:[%s3 + $0x10] sm:$0xf]
          %v590 = vld [vmem:[%s3 + $0x14] sm:$0xf]
          %v591 = vld [vmem:[%s3 + $0x18] sm:$0xf]
          %v592 = vld [vmem:[%s3 + $0x1c] sm:$0xf]
          %v593 = vld [vmem:[%s3 + $0x20] sm:$0xf]
          %v594 = vld [vmem:[%s3 + $0x24] sm:$0xf]
          %v595 = vld [vmem:[%s3 + $0x28] sm:$0xf]
          %v596 = vld [vmem:[%s3 + $0x2c] sm:$0xf]
          %v597 = vld [vmem:[%s3 + $0x30] sm:$0xf]
          %v598 = vld [vmem:[%s3 + $0x34] sm:$0xf]
          %v599 = vld [vmem:[%s3 + $0x38] sm:$0xf]
          %v600 = vld [vmem:[%s3 + $0x3c] sm:$0xf]
          %v617 = vunpack.c.l.b16 %v585
          %v618 = vunpack.c.l.b16 %v586
          %v619 = vunpack.c.l.b16 %v587
          %v620 = vunpack.c.l.b16 %v588
          %v621 = vunpack.c.l.b16 %v589
          %v622 = vunpack.c.l.b16 %v590
          %v623 = vunpack.c.l.b16 %v591
          %v624 = vunpack.c.l.b16 %v592
          %v625 = vunpack.c.l.b16 %v593
          %v626 = vunpack.c.l.b16 %v594
          %v627 = vunpack.c.l.b16 %v595
          %v628 = vunpack.c.l.b16 %v596
          %v629 = vunpack.c.l.b16 %v597
          %v630 = vunpack.c.l.b16 %v598
          %v631 = vunpack.c.l.b16 %v599
          %v632 = vunpack.c.l.b16 %v600
          %v633 = vpack.c.b16 %v618, %v617
          %v634 = vpack.c.b16 %v620, %v619
          %v635 = vpack.c.b16 %v622, %v621
          %v636 = vpack.c.b16 %v624, %v623
          %v637 = vpack.c.b16 %v626, %v625
          %v638 = vpack.c.b16 %v628, %v627
          %v639 = vpack.c.b16 %v630, %v629
          %v640 = vpack.c.b16 %v632, %v631
          %649 = vxpose.xlu0.c.b16.start [1/8] %v633, 128
          %650 = vxpose.xlu0.c.b16.cont [2/8] %v634, 128
          %651 = vxpose.xlu0.c.b16.cont [3/8] 0, 128
          %652 = vxpose.xlu0.c.b16.cont [4/8] 0, 128
          %653 = vxpose.xlu0.c.b16.cont [5/8] 0, 128
          %654 = vxpose.xlu0.c.b16.cont [6/8] 0, 128
          %655 = vxpose.xlu0.c.b16.cont [7/8] 0, 128
          %656 = vxpose.xlu0.c.b16.end [8/8] 0, 128
          %v657 = vpop.trf.xlu0
          %v658 = vpop.trf.xlu0
          %v659 = vpop.trf.xlu0
          %v660 = vpop.trf.xlu0
          %v661 = vpop.trf.xlu0
          %v662 = vpop.trf.xlu0
          %v663 = vpop.trf.xlu0
          %v664 = vpop.trf.xlu0
          %665 = vxpose.xlu0.c.b16.start [1/8] %v635, 128
          %666 = vxpose.xlu0.c.b16.cont [2/8] %v636, 128
          %667 = vxpose.xlu0.c.b16.cont [3/8] 0, 128
          %668 = vxpose.xlu0.c.b16.cont [4/8] 0, 128
          %669 = vxpose.xlu0.c.b16.cont [5/8] 0, 128
          %670 = vxpose.xlu0.c.b16.cont [6/8] 0, 128
          %671 = vxpose.xlu0.c.b16.cont [7/8] 0, 128
          %672 = vxpose.xlu0.c.b16.end [8/8] 0, 128
          %v673 = vpop.trf.xlu0
          %v674 = vpop.trf.xlu0
          %v675 = vpop.trf.xlu0
          %v676 = vpop.trf.xlu0
          %v677 = vpop.trf.xlu0
          %v678 = vpop.trf.xlu0
          %v679 = vpop.trf.xlu0
          %v680 = vpop.trf.xlu0
          %681 = vxpose.xlu0.c.b16.start [1/8] %v637, 128
          %682 = vxpose.xlu0.c.b16.cont [2/8] %v638, 128
          %683 = vxpose.xlu0.c.b16.cont [3/8] 0, 128
          %684 = vxpose.xlu0.c.b16.cont [4/8] 0, 128
          %685 = vxpose.xlu0.c.b16.cont [5/8] 0, 128
          %686 = vxpose.xlu0.c.b16.cont [6/8] 0, 128
          %687 = vxpose.xlu0.c.b16.cont [7/8] 0, 128
          %688 = vxpose.xlu0.c.b16.end [8/8] 0, 128
          %v689 = vpop.trf.xlu0
          %v690 = vpop.trf.xlu0
          %v691 = vpop.trf.xlu0
          %v692 = vpop.trf.xlu0
          %v693 = vpop.trf.xlu0
          %v694 = vpop.trf.xlu0
          %v695 = vpop.trf.xlu0
          %v696 = vpop.trf.xlu0
          %697 = vxpose.xlu0.c.b16.start [1/8] %v639, 128
          %698 = vxpose.xlu0.c.b16.cont [2/8] %v640, 128
          %699 = vxpose.xlu0.c.b16.cont [3/8] 0, 128
          %700 = vxpose.xlu0.c.b16.cont [4/8] 0, 128
          %701 = vxpose.xlu0.c.b16.cont [5/8] 0, 128
          %702 = vxpose.xlu0.c.b16.cont [6/8] 0, 128
          %703 = vxpose.xlu0.c.b16.cont [7/8] 0, 128
          %704 = vxpose.xlu0.c.b16.end [8/8] 0, 128
          %v705 = vpop.trf.xlu0
          %v706 = vpop.trf.xlu0
          %v707 = vpop.trf.xlu0
          %v708 = vpop.trf.xlu0
          %v709 = vpop.trf.xlu0
          %v710 = vpop.trf.xlu0
          %v711 = vpop.trf.xlu0
          %v712 = vpop.trf.xlu0
          %v717 = vunpack.c.l.b16 %v657
          %v718 = vunpack.c.l.b16 %v673
          %v719 = vunpack.c.l.b16 %v689
          %v720 = vunpack.c.l.b16 %v705
          %v721 = vpack.c.b16 %v718, %v717
          %v722 = vpack.c.b16 %v720, %v719
          %vm723 = vcmask 261120
          %v725 = vsel %vm723, %v721, 0
          %v728 = vsel %vm723, %v722, 0
          %v731 = vsel %vm723, %v568, 0
          %733 = vmatprep.subr.bf16.mxu0 0
          %734 = vmatpush1.bf16.xpose.msra.mxu0 0
          %735 = vmatprep.subr.bf16.mxu0 0
          %736 = vmatpush1.bf16.xpose.msra.mxu0 0
          %737 = vmatprep.subr.bf16.mxu0 0
          %738 = vmatpush1.bf16.xpose.msra.mxu0 0
          %739 = vmatprep.subr.bf16.mxu0 0
          %740 = vmatpush1.bf16.xpose.msra.mxu0 0
          %741 = vmatprep.subr.bf16.mxu0 0
          %742 = vmatpush1.bf16.xpose.msra.mxu0 0
          %743 = vmatprep.subr.bf16.mxu0 0
          %744 = vmatpush1.bf16.xpose.msra.mxu0 0
          %745 = vmatprep.subr.bf16.mxu0 0
          %746 = vmatpush1.bf16.xpose.msra.mxu0 0
          %747 = vmatprep.subr.bf16.mxu0 0
          %748 = vmatpush1.bf16.xpose.msra.mxu0 %v731
          %749 = vmatprep.subr.bf16.mxu0 0
          %750 = vmatpush2.bf16.xpose.msra.mxu0 0
          %751 = vmatprep.subr.bf16.mxu0 0
          %752 = vmatpush2.bf16.xpose.msra.mxu0 0
          %753 = vmatprep.subr.bf16.mxu0 0
          %754 = vmatpush2.bf16.xpose.msra.mxu0 0
          %755 = vmatprep.subr.bf16.mxu0 0
          %756 = vmatpush2.bf16.xpose.msra.mxu0 0
          %757 = vmatprep.subr.bf16.mxu0 0
          %758 = vmatpush2.bf16.xpose.msra.mxu0 0
          %759 = vmatprep.subr.bf16.mxu0 0
          %760 = vmatpush2.bf16.xpose.msra.mxu0 0
          %761 = vmatprep.subr.bf16.mxu0 0
          %762 = vmatpush2.bf16.xpose.msra.mxu0 0
          %763 = vmatprep.subr.bf16.mxu0 0
          %764 = vmatpush2.bf16.xpose.msra.mxu0 0
          %765 = vmatprep.mubr.bf16.mxu0 0
          %766 = vmatmul.mubr.bf16.gmra.mxu0 %v725
          %v767 = vpop.f32.mrf.mxu0
          %v768 = vadd.f32 0.0, %v767
          %v769 = vpop.f32.mrf.mxu0
          %v770 = vpop.f32.mrf.mxu0
          %v771 = vadd.f32 0.0, %v770
          %v772 = vpop.f32.mrf.mxu0
          %773 = vmatprep.mubr.bf16.mxu0 0
          %774 = vmatmul.mubr.bf16.gmra.mxu0 %v728
          %v775 = vpop.f32.mrf.mxu0
          %v776 = vadd.f32 0.0, %v775
          %v777 = vpop.f32.mrf.mxu0
          %v778 = vpop.f32.mrf.mxu0
          %v779 = vadd.f32 0.0, %v778
          %v780 = vpop.f32.mrf.mxu0
          %781 = vdwg.mxu0
          %782 = vxpose.xlu0.b32.start [1/16] %v768, 128
          %783 = vxpose.xlu0.b32.cont [2/16] 0.0, 128
          %784 = vxpose.xlu0.b32.cont [3/16] 0.0, 128
          %785 = vxpose.xlu0.b32.cont [4/16] 0.0, 128
          %786 = vxpose.xlu0.b32.cont [5/16] 0.0, 128
          %787 = vxpose.xlu0.b32.cont [6/16] 0.0, 128
          %788 = vxpose.xlu0.b32.cont [7/16] 0.0, 128
          %789 = vxpose.xlu0.b32.cont [8/16] 0.0, 128
          %790 = vxpose.xlu0.b32.cont [9/16] 0.0, 128
          %791 = vxpose.xlu0.b32.cont [10/16] 0.0, 128
          %792 = vxpose.xlu0.b32.cont [11/16] 0.0, 128
          %793 = vxpose.xlu0.b32.cont [12/16] 0.0, 128
          %794 = vxpose.xlu0.b32.cont [13/16] 0.0, 128
          %795 = vxpose.xlu0.b32.cont [14/16] 0.0, 128
          %796 = vxpose.xlu0.b32.cont [15/16] 0.0, 128
          %797 = vxpose.xlu0.b32.end [16/16] 0.0, 128
          %v798 = vpop.trf.xlu0
          %v799 = vpop.trf.xlu0
          %v800 = vpop.trf.xlu0
          %v801 = vpop.trf.xlu0
          %v802 = vpop.trf.xlu0
          %v803 = vpop.trf.xlu0
          %v804 = vpop.trf.xlu0
          %v805 = vpop.trf.xlu0
          %v806 = vpop.trf.xlu0
          %v807 = vpop.trf.xlu0
          %v808 = vpop.trf.xlu0
          %v809 = vpop.trf.xlu0
          %v810 = vpop.trf.xlu0
          %v811 = vpop.trf.xlu0
          %v812 = vpop.trf.xlu0
          %v813 = vpop.trf.xlu0
          %814 = vxpose.xlu0.b32.start [1/16] %v771, 128
          %815 = vxpose.xlu0.b32.cont [2/16] 0.0, 128
          %816 = vxpose.xlu0.b32.cont [3/16] 0.0, 128
          %817 = vxpose.xlu0.b32.cont [4/16] 0.0, 128
          %818 = vxpose.xlu0.b32.cont [5/16] 0.0, 128
          %819 = vxpose.xlu0.b32.cont [6/16] 0.0, 128
          %820 = vxpose.xlu0.b32.cont [7/16] 0.0, 128
          %821 = vxpose.xlu0.b32.cont [8/16] 0.0, 128
          %822 = vxpose.xlu0.b32.cont [9/16] 0.0, 128
          %823 = vxpose.xlu0.b32.cont [10/16] 0.0, 128
          %824 = vxpose.xlu0.b32.cont [11/16] 0.0, 128
          %825 = vxpose.xlu0.b32.cont [12/16] 0.0, 128
          %826 = vxpose.xlu0.b32.cont [13/16] 0.0, 128
          %827 = vxpose.xlu0.b32.cont [14/16] 0.0, 128
          %828 = vxpose.xlu0.b32.cont [15/16] 0.0, 128
          %829 = vxpose.xlu0.b32.end [16/16] 0.0, 128
          %v830 = vpop.trf.xlu0
          %v831 = vpop.trf.xlu0
          %v832 = vpop.trf.xlu0
          %v833 = vpop.trf.xlu0
          %v834 = vpop.trf.xlu0
          %v835 = vpop.trf.xlu0
          %v836 = vpop.trf.xlu0
          %v837 = vpop.trf.xlu0
          %v838 = vpop.trf.xlu0
          %v839 = vpop.trf.xlu0
          %v840 = vpop.trf.xlu0
          %v841 = vpop.trf.xlu0
          %v842 = vpop.trf.xlu0
          %v843 = vpop.trf.xlu0
          %v844 = vpop.trf.xlu0
          %v845 = vpop.trf.xlu0
          %846 = vxpose.xlu0.b32.start [1/16] %v776, 128
          %847 = vxpose.xlu0.b32.cont [2/16] 0.0, 128
          %848 = vxpose.xlu0.b32.cont [3/16] 0.0, 128
          %849 = vxpose.xlu0.b32.cont [4/16] 0.0, 128
          %850 = vxpose.xlu0.b32.cont [5/16] 0.0, 128
          %851 = vxpose.xlu0.b32.cont [6/16] 0.0, 128
          %852 = vxpose.xlu0.b32.cont [7/16] 0.0, 128
          %853 = vxpose.xlu0.b32.cont [8/16] 0.0, 128
          %854 = vxpose.xlu0.b32.cont [9/16] 0.0, 128
          %855 = vxpose.xlu0.b32.cont [10/16] 0.0, 128
          %856 = vxpose.xlu0.b32.cont [11/16] 0.0, 128
          %857 = vxpose.xlu0.b32.cont [12/16] 0.0, 128
          %858 = vxpose.xlu0.b32.cont [13/16] 0.0, 128
          %859 = vxpose.xlu0.b32.cont [14/16] 0.0, 128
          %860 = vxpose.xlu0.b32.cont [15/16] 0.0, 128
          %861 = vxpose.xlu0.b32.end [16/16] 0.0, 128
          %v862 = vpop.trf.xlu0
          %v863 = vpop.trf.xlu0
          %v864 = vpop.trf.xlu0
          %v865 = vpop.trf.xlu0
          %v866 = vpop.trf.xlu0
          %v867 = vpop.trf.xlu0
          %v868 = vpop.trf.xlu0
          %v869 = vpop.trf.xlu0
          %v870 = vpop.trf.xlu0
          %v871 = vpop.trf.xlu0
          %v872 = vpop.trf.xlu0
          %v873 = vpop.trf.xlu0
          %v874 = vpop.trf.xlu0
          %v875 = vpop.trf.xlu0
          %v876 = vpop.trf.xlu0
          %v877 = vpop.trf.xlu0
          %878 = vxpose.xlu0.b32.start [1/16] %v779, 128
          %879 = vxpose.xlu0.b32.cont [2/16] 0.0, 128
          %880 = vxpose.xlu0.b32.cont [3/16] 0.0, 128
          %881 = vxpose.xlu0.b32.cont [4/16] 0.0, 128
          %882 = vxpose.xlu0.b32.cont [5/16] 0.0, 128
          %883 = vxpose.xlu0.b32.cont [6/16] 0.0, 128
          %884 = vxpose.xlu0.b32.cont [7/16] 0.0, 128
          %885 = vxpose.xlu0.b32.cont [8/16] 0.0, 128
          %886 = vxpose.xlu0.b32.cont [9/16] 0.0, 128
          %887 = vxpose.xlu0.b32.cont [10/16] 0.0, 128
          %888 = vxpose.xlu0.b32.cont [11/16] 0.0, 128
          %889 = vxpose.xlu0.b32.cont [12/16] 0.0, 128
          %890 = vxpose.xlu0.b32.cont [13/16] 0.0, 128
          %891 = vxpose.xlu0.b32.cont [14/16] 0.0, 128
          %892 = vxpose.xlu0.b32.cont [15/16] 0.0, 128
          %893 = vxpose.xlu0.b32.end [16/16] 0.0, 128
          %v894 = vpop.trf.xlu0
          %v895 = vpop.trf.xlu0
          %v896 = vpop.trf.xlu0
          %v897 = vpop.trf.xlu0
          %v898 = vpop.trf.xlu0
          %v899 = vpop.trf.xlu0
          %v900 = vpop.trf.xlu0
          %v901 = vpop.trf.xlu0
          %v902 = vpop.trf.xlu0
          %v903 = vpop.trf.xlu0
          %v904 = vpop.trf.xlu0
          %v905 = vpop.trf.xlu0
          %v906 = vpop.trf.xlu0
          %v907 = vpop.trf.xlu0
          %v908 = vpop.trf.xlu0
          %v909 = vpop.trf.xlu0
          %v910 = vld [vmem:[%s6] sm:$0xff]
          %v911 = vld [vmem:[%s6 + $0x8] sm:$0xff]
          %v912 = vld [vmem:[%s6 + $0x10] sm:$0xff]
          %v913 = vld [vmem:[%s6 + $0x18] sm:$0xff]
          %915 = vset.pattern.permute.xlu0 0
          %916 = vperm.xlu0 %915, %v910
          %v917 = vpop.permute.xlu0 %916
          %920 = vset.pattern.permute.xlu0 0
          %921 = vperm.xlu0 %920, %v911
          %v922 = vpop.permute.xlu0 %921
          %925 = vset.pattern.permute.xlu0 0
          %926 = vperm.xlu0 %925, %v912
          %v927 = vpop.permute.xlu0 %926
          %930 = vset.pattern.permute.xlu0 0
          %931 = vperm.xlu0 %930, %v913
          %v932 = vpop.permute.xlu0 %931
          %v950 = vunpack.c.l.b16 %v569
          %v951 = vunpack.c.l.b16 %v570
          %v952 = vunpack.c.l.b16 %v571
          %v953 = vunpack.c.l.b16 %v572
          %v954 = vunpack.c.l.b16 %v573
          %v955 = vunpack.c.l.b16 %v574
          %v956 = vunpack.c.l.b16 %v575
          %v957 = vunpack.c.l.b16 %v576
          %v958 = vunpack.c.l.b16 %v577
          %v959 = vunpack.c.l.b16 %v578
          %v960 = vunpack.c.l.b16 %v579
          %v961 = vunpack.c.l.b16 %v580
          %v962 = vunpack.c.l.b16 %v581
          %v963 = vunpack.c.l.b16 %v582
          %v964 = vunpack.c.l.b16 %v583
          %v965 = vunpack.c.l.b16 %v584
          %v966 = vpack.c.b16 %v951, %v950
          %v967 = vpack.c.b16 %v953, %v952
          %v968 = vpack.c.b16 %v955, %v954
          %v969 = vpack.c.b16 %v957, %v956
          %v970 = vpack.c.b16 %v959, %v958
          %v971 = vpack.c.b16 %v961, %v960
          %v972 = vpack.c.b16 %v963, %v962
          %v973 = vpack.c.b16 %v965, %v964
          %982 = vxpose.xlu0.c.b16.start [1/8] %v966, 128
          %983 = vxpose.xlu0.c.b16.cont [2/8] %v967, 128
          %984 = vxpose.xlu0.c.b16.cont [3/8] 0, 128
          %985 = vxpose.xlu0.c.b16.cont [4/8] 0, 128
          %986 = vxpose.xlu0.c.b16.cont [5/8] 0, 128
          %987 = vxpose.xlu0.c.b16.cont [6/8] 0, 128
          %988 = vxpose.xlu0.c.b16.cont [7/8] 0, 128
          %989 = vxpose.xlu0.c.b16.end [8/8] 0, 128
          %v990 = vpop.trf.xlu0
          %v991 = vpop.trf.xlu0
          %v992 = vpop.trf.xlu0
          %v993 = vpop.trf.xlu0
          %v994 = vpop.trf.xlu0
          %v995 = vpop.trf.xlu0
          %v996 = vpop.trf.xlu0
          %v997 = vpop.trf.xlu0
          %998 = vxpose.xlu0.c.b16.start [1/8] %v968, 128
          %999 = vxpose.xlu0.c.b16.cont [2/8] %v969, 128
          %1000 = vxpose.xlu0.c.b16.cont [3/8] 0, 128
          %1001 = vxpose.xlu0.c.b16.cont [4/8] 0, 128
          %1002 = vxpose.xlu0.c.b16.cont [5/8] 0, 128
          %1003 = vxpose.xlu0.c.b16.cont [6/8] 0, 128
          %1004 = vxpose.xlu0.c.b16.cont [7/8] 0, 128
          %1005 = vxpose.xlu0.c.b16.end [8/8] 0, 128
          %v1006 = vpop.trf.xlu0
          %v1007 = vpop.trf.xlu0
          %v1008 = vpop.trf.xlu0
          %v1009 = vpop.trf.xlu0
          %v1010 = vpop.trf.xlu0
          %v1011 = vpop.trf.xlu0
          %v1012 = vpop.trf.xlu0
          %v1013 = vpop.trf.xlu0
          %1014 = vxpose.xlu0.c.b16.start [1/8] %v970, 128
          %1015 = vxpose.xlu0.c.b16.cont [2/8] %v971, 128
          %1016 = vxpose.xlu0.c.b16.cont [3/8] 0, 128
          %1017 = vxpose.xlu0.c.b16.cont [4/8] 0, 128
          %1018 = vxpose.xlu0.c.b16.cont [5/8] 0, 128
          %1019 = vxpose.xlu0.c.b16.cont [6/8] 0, 128
          %1020 = vxpose.xlu0.c.b16.cont [7/8] 0, 128
          %1021 = vxpose.xlu0.c.b16.end [8/8] 0, 128
          %v1022 = vpop.trf.xlu0
          %v1023 = vpop.trf.xlu0
          %v1024 = vpop.trf.xlu0
          %v1025 = vpop.trf.xlu0
          %v1026 = vpop.trf.xlu0
          %v1027 = vpop.trf.xlu0
          %v1028 = vpop.trf.xlu0
          %v1029 = vpop.trf.xlu0
          %1030 = vxpose.xlu0.c.b16.start [1/8] %v972, 128
          %1031 = vxpose.xlu0.c.b16.cont [2/8] %v973, 128
          %1032 = vxpose.xlu0.c.b16.cont [3/8] 0, 128
          %1033 = vxpose.xlu0.c.b16.cont [4/8] 0, 128
          %1034 = vxpose.xlu0.c.b16.cont [5/8] 0, 128
          %1035 = vxpose.xlu0.c.b16.cont [6/8] 0, 128
          %1036 = vxpose.xlu0.c.b16.cont [7/8] 0, 128
          %1037 = vxpose.xlu0.c.b16.end [8/8] 0, 128
          %v1038 = vpop.trf.xlu0
          %v1039 = vpop.trf.xlu0
          %v1040 = vpop.trf.xlu0
          %v1041 = vpop.trf.xlu0
          %v1042 = vpop.trf.xlu0
          %v1043 = vpop.trf.xlu0
          %v1044 = vpop.trf.xlu0
          %v1045 = vpop.trf.xlu0
          %v1050 = vunpack.c.l.b16 %v990
          %v1051 = vunpack.c.l.b16 %v1006
          %v1052 = vunpack.c.l.b16 %v1022
          %v1053 = vunpack.c.l.b16 %v1038
          %v1054 = vpack.c.b16 %v1051, %v1050
          %v1055 = vpack.c.b16 %v1053, %v1052
          %v1057 = vsel %vm723, %v1054, 0
          %v1060 = vsel %vm723, %v1055, 0
          %1062 = vmatprep.subr.bf16.mxu0 0
          %1063 = vmatpush1.bf16.xpose.msra.mxu0 0
          %1064 = vmatprep.subr.bf16.mxu0 0
          %1065 = vmatpush1.bf16.xpose.msra.mxu0 0
          %1066 = vmatprep.subr.bf16.mxu0 0
          %1067 = vmatpush1.bf16.xpose.msra.mxu0 0
          %1068 = vmatprep.subr.bf16.mxu0 0
          %1069 = vmatpush1.bf16.xpose.msra.mxu0 0
          %1070 = vmatprep.subr.bf16.mxu0 0
          %1071 = vmatpush1.bf16.xpose.msra.mxu0 0
          %1072 = vmatprep.subr.bf16.mxu0 0
          %1073 = vmatpush1.bf16.xpose.msra.mxu0 0
          %1074 = vmatprep.subr.bf16.mxu0 0
          %1075 = vmatpush1.bf16.xpose.msra.mxu0 0
          %1076 = vmatprep.subr.bf16.mxu0 0
          %1077 = vmatpush1.bf16.xpose.msra.mxu0 %v731
          %1078 = vmatprep.subr.bf16.mxu0 0
          %1079 = vmatpush2.bf16.xpose.msra.mxu0 0
          %1080 = vmatprep.subr.bf16.mxu0 0
          %1081 = vmatpush2.bf16.xpose.msra.mxu0 0
          %1082 = vmatprep.subr.bf16.mxu0 0
          %1083 = vmatpush2.bf16.xpose.msra.mxu0 0
          %1084 = vmatprep.subr.bf16.mxu0 0
          %1085 = vmatpush2.bf16.xpose.msra.mxu0 0
          %1086 = vmatprep.subr.bf16.mxu0 0
          %1087 = vmatpush2.bf16.xpose.msra.mxu0 0
          %1088 = vmatprep.subr.bf16.mxu0 0
          %1089 = vmatpush2.bf16.xpose.msra.mxu0 0
          %1090 = vmatprep.subr.bf16.mxu0 0
          %1091 = vmatpush2.bf16.xpose.msra.mxu0 0
          %1092 = vmatprep.subr.bf16.mxu0 0
          %1093 = vmatpush2.bf16.xpose.msra.mxu0 0
          %1094 = vmatprep.mubr.bf16.mxu0 0
          %1095 = vmatmul.mubr.bf16.gmra.mxu0 %v1057
          %v1096 = vpop.f32.mrf.mxu0
          %v1097 = vadd.f32 %v917, %v1096
          %v1098 = vpop.f32.mrf.mxu0
          %v1099 = vpop.f32.mrf.mxu0
          %v1100 = vadd.f32 %v922, %v1099
          %v1101 = vpop.f32.mrf.mxu0
          %1102 = vmatprep.mubr.bf16.mxu0 0
          %1103 = vmatmul.mubr.bf16.gmra.mxu0 %v1060
          %v1104 = vpop.f32.mrf.mxu0
          %v1105 = vadd.f32 %v927, %v1104
          %v1106 = vpop.f32.mrf.mxu0
          %v1107 = vpop.f32.mrf.mxu0
          %v1108 = vadd.f32 %v932, %v1107
          %v1109 = vpop.f32.mrf.mxu0
          %1110 = vdwg.mxu0
          %v1111 = vpack.c.bf16 %v1097, %v1097
          %v1112 = vpack.c.bf16 %v1100, %v1100
          %v1113 = vpack.c.bf16 %v1105, %v1105
          %v1114 = vpack.c.bf16 %v1108, %v1108
          %v1115 = vld [vmem:[%s7] sm:$0x1]
          %v1116 = vld [vmem:[%s7 + $0x1] sm:$0x1]
          %v1117 = vld [vmem:[%s7 + $0x2] sm:$0x1]
          %v1118 = vld [vmem:[%s7 + $0x3] sm:$0x1]
          %v1123 = vlaneseq
          %v1124 = vshrl.u32 %v1123, 7
          %v1125 = vsub.s32 0, %v1124
          %v1126 = vrot.slane %v1115, %v1125
          %v1127 = vlaneseq
          %v1128 = vshrl.u32 %v1127, 7
          %v1129 = vsub.s32 0, %v1128
          %v1130 = vrot.slane %v1116, %v1129
          %v1131 = vlaneseq
          %v1132 = vshrl.u32 %v1131, 7
          %v1133 = vsub.s32 0, %v1132
          %v1134 = vrot.slane %v1117, %v1133
          %v1135 = vlaneseq
          %v1136 = vshrl.u32 %v1135, 7
          %v1137 = vsub.s32 0, %v1136
          %v1138 = vrot.slane %v1118, %v1137
          %v1143 = vadd.f32 %v798, %v1126
          %v1144 = vadd.f32 %v799, %v1126
          %v1145 = vadd.f32 %v830, %v1130
          %v1146 = vadd.f32 %v831, %v1130
          %v1147 = vadd.f32 %v862, %v1134
          %v1148 = vadd.f32 %v863, %v1134
          %v1149 = vadd.f32 %v894, %v1138
          %v1150 = vadd.f32 %v895, %v1138
          %v1151 = vpack.c.bf16 %v1144, %v1143
          %v1152 = vpack.c.bf16 %v1146, %v1145
          %v1153 = vpack.c.bf16 %v1148, %v1147
          %v1154 = vpack.c.bf16 %v1150, %v1149
          %vm1155 = vcmask 125952
          %1156 = vst.msk [vmem:[#allocation2] sm:$0xf] %vm1155, %v1111
          %1157 = vst.msk [vmem:[#allocation2 + $0x4] sm:$0xf] %vm1155, %v1112
          %1158 = vst.msk [vmem:[#allocation2 + $0x8] sm:$0xf] %vm1155, %v1113
          %1159 = vst.msk [vmem:[#allocation2 + $0xc] sm:$0xf] %vm1155, %v1114
          %v1164 = vunpack.c.l.b16 %v1151
          %v1165 = vunpack.c.h.b16 %v1151
          %v1166 = vunpack.c.l.b16 %v1152
          %v1167 = vunpack.c.h.b16 %v1152
          %v1168 = vunpack.c.l.b16 %v1153
          %v1169 = vunpack.c.h.b16 %v1153
          %v1170 = vunpack.c.l.b16 %v1154
          %v1171 = vunpack.c.h.b16 %v1154
          %v1172 = vpack.c.b16 %v1164, %v1164
          %v1173 = vpack.c.b16 %v1165, %v1165
          %v1174 = vpack.c.b16 %v1166, %v1166
          %v1175 = vpack.c.b16 %v1167, %v1167
          %v1176 = vpack.c.b16 %v1168, %v1168
          %v1177 = vpack.c.b16 %v1169, %v1169
          %v1178 = vpack.c.b16 %v1170, %v1170
          %v1179 = vpack.c.b16 %v1171, %v1171
          %vm1188 = vcmask 60416
          %1189 = vst.msk [vmem:[#allocation3] sm:$0xf] %vm1188, %v1172
          %1190 = vst.msk [vmem:[#allocation3 + $0x4] sm:$0xf] %vm1188, %v1173
          %1191 = vst.msk [vmem:[#allocation3 + $0x8] sm:$0xf] %vm1188, %v1174
          %1192 = vst.msk [vmem:[#allocation3 + $0xc] sm:$0xf] %vm1188, %v1175
          %1193 = vst.msk [vmem:[#allocation3 + $0x10] sm:$0xf] %vm1188, %v1176
          %1194 = vst.msk [vmem:[#allocation3 + $0x14] sm:$0xf] %vm1188, %v1177
          %1195 = vst.msk [vmem:[#allocation3 + $0x18] sm:$0xf] %vm1188, %v1178
          %1196 = vst.msk [vmem:[#allocation3 + $0x1c] sm:$0xf] %vm1188, %v1179
        $region92: #{tpu_custom_call.1} parent=87 // pred_fallthru
          _
        %s1197 = smul.u32 %s36, 8
        %s1198 = scalar_lea.vmem %s560, %s1197
        %v1199 = vld [vmem:[%s1198] sm:$0xff]
        %v1200 = vpack.c.bf16 %v1199, %v1199
        %v1201 = vld [vmem:[%s1] sm:$0xf]
        %v1202 = vld [vmem:[%s1 + $0x4] sm:$0xf]
        %v1203 = vld [vmem:[%s1 + $0x8] sm:$0xf]
        %v1204 = vld [vmem:[%s1 + $0xc] sm:$0xf]
        %v1205 = vld [vmem:[%s5] sm:$0x1]
        %v1207 = vlaneseq
        %v1208 = vshrl.u32 %v1207, 7
        %v1209 = vsub.s32 0, %v1208
        %v1210 = vrot.slane %v1205, %v1209
        %v1216 = vunpack.c.l.b16 %v1201
        %v1217 = vunpack.c.l.b16 %v1202
        %v1218 = vunpack.c.l.b16 %v1203
        %v1219 = vunpack.c.l.b16 %v1204
        %v1220 = vpack.c.b16 %v1217, %v1216
        %v1221 = vpack.c.b16 %v1219, %v1218
        %vm1224 = vcmask 261120
        %v1226 = vsel %vm1224, %v1200, 0
        %1228 = vmatprep.subr.bf16.mxu0 0
        %1229 = vmatpush1.bf16.msra.mxu0 0
        %1230 = vmatprep.subr.bf16.mxu0 0
        %1231 = vmatpush1.bf16.msra.mxu0 0
        %1232 = vmatprep.subr.bf16.mxu0 0
        %1233 = vmatpush1.bf16.msra.mxu0 0
        %1234 = vmatprep.subr.bf16.mxu0 0
        %1235 = vmatpush1.bf16.msra.mxu0 0
        %1236 = vmatprep.subr.bf16.mxu0 0
        %1237 = vmatpush1.bf16.msra.mxu0 0
        %1238 = vmatprep.subr.bf16.mxu0 0
        %1239 = vmatpush1.bf16.msra.mxu0 0
        %1240 = vmatprep.subr.bf16.mxu0 0
        %1241 = vmatpush1.bf16.msra.mxu0 %v1221
        %1242 = vmatprep.subr.bf16.mxu0 0
        %1243 = vmatpush1.bf16.msra.mxu0 %v1220
        %1244 = vmatprep.subr.bf16.mxu0 0
        %1245 = vmatpush2.bf16.msra.mxu0 0
        %1246 = vmatprep.subr.bf16.mxu0 0
        %1247 = vmatpush2.bf16.msra.mxu0 0
        %1248 = vmatprep.subr.bf16.mxu0 0
        %1249 = vmatpush2.bf16.msra.mxu0 0
        %1250 = vmatprep.subr.bf16.mxu0 0
        %1251 = vmatpush2.bf16.msra.mxu0 0
        %1252 = vmatprep.subr.bf16.mxu0 0
        %1253 = vmatpush2.bf16.msra.mxu0 0
        %1254 = vmatprep.subr.bf16.mxu0 0
        %1255 = vmatpush2.bf16.msra.mxu0 0
        %1256 = vmatprep.subr.bf16.mxu0 0
        %1257 = vmatpush2.bf16.msra.mxu0 0
        %1258 = vmatprep.subr.bf16.mxu0 0
        %1259 = vmatpush2.bf16.msra.mxu0 0
        %1260 = vmatprep.mubr.bf16.mxu0 0
        %1261 = vmatmul.mubr.bf16.gmra.mxu0 %v1226
        %v1262 = vpop.f32.mrf.mxu0
        %v1263 = vadd.f32 %v1210, %v1262
        %v1264 = vpop.f32.mrf.mxu0
        %v1265 = vpop.f32.mrf.mxu0
        %v1266 = vpop.f32.mrf.mxu0
        %1267 = vdwg.mxu0
        %v1268 = vmul.f32 %v1263, 0.35355338
        %v1269 = vpack.c.bf16 %v1268, %v1268
        %v1270 = vld [vmem:[#allocation2] sm:$0xf]
        %vm1271 = vcmask 64512
        %v1273 = vsel %vm1271, %v1269, 0
        %vm1275 = vcmask 1043456
        %v1277 = vsel %vm1275, %v1270, 0
        %1279 = vmatprep.subr.bf16.mxu0 0
        %1280 = vmatpush1.bf16.msra.mxu0 0
        %1281 = vmatprep.subr.bf16.mxu0 0
        %1282 = vmatpush1.bf16.msra.mxu0 0
        %1283 = vmatprep.subr.bf16.mxu0 0
        %1284 = vmatpush1.bf16.msra.mxu0 0
        %1285 = vmatprep.subr.bf16.mxu0 0
        %1286 = vmatpush1.bf16.msra.mxu0 0
        %1287 = vmatprep.subr.bf16.mxu0 0
        %1288 = vmatpush1.bf16.msra.mxu0 0
        %1289 = vmatprep.subr.bf16.mxu0 0
        %1290 = vmatpush1.bf16.msra.mxu0 0
        %1291 = vmatprep.subr.bf16.mxu0 0
        %1292 = vmatpush1.bf16.msra.mxu0 0
        %1293 = vmatprep.subr.bf16.mxu0 0
        %1294 = vmatpush1.bf16.msra.mxu0 %v1277
        %1295 = vmatprep.subr.bf16.mxu0 0
        %1296 = vmatpush2.bf16.msra.mxu0 0
        %1297 = vmatprep.subr.bf16.mxu0 0
        %1298 = vmatpush2.bf16.msra.mxu0 0
        %1299 = vmatprep.subr.bf16.mxu0 0
        %1300 = vmatpush2.bf16.msra.mxu0 0
        %1301 = vmatprep.subr.bf16.mxu0 0
        %1302 = vmatpush2.bf16.msra.mxu0 0
        %1303 = vmatprep.subr.bf16.mxu0 0
        %1304 = vmatpush2.bf16.msra.mxu0 0
        %1305 = vmatprep.subr.bf16.mxu0 0
        %1306 = vmatpush2.bf16.msra.mxu0 0
        %1307 = vmatprep.subr.bf16.mxu0 0
        %1308 = vmatpush2.bf16.msra.mxu0 0
        %1309 = vmatprep.subr.bf16.mxu0 0
        %1310 = vmatpush2.bf16.msra.mxu0 0
        %1311 = vmatprep.mubr.bf16.mxu0 0
        %1312 = vmatmul.mubr.bf16.gmra.mxu0 %v1273
        %v1313 = vpop.f32.mrf.mxu0
        %v1314 = vadd.f32 0.0, %v1313
        %v1315 = vpop.f32.mrf.mxu0
        %v1316 = vpop.f32.mrf.mxu0
        %v1317 = vpop.f32.mrf.mxu0
        %1318 = vdwg.mxu0
        %vm1319 = vcmask 130048
        %v1320 = vsel %vm1319, %v1314, -inf
        %1321 = vmax.xlane.f32.xlu0 %v1320
        %v1322 = vpop.xlane.xlu0 %1321
        %v1323 = vsub.f32 %v1314, %v1322
        %v1324 = vmul.f32 %v1323, 1.442695
        %v1325 = vpow.pop %v1324
        %v1326 = vsel %vm1319, %v1325, 0.0
        %1327 = vadd.xlane.f32.xlu0 %v1326
        %v1328 = vpop.xlane.xlu0 %1327
        %v1329 = vpack.c.bf16 %v1325, %v1325
        %v1330 = vld [vmem:[#allocation3] sm:$0xf]
        %v1331 = vld [vmem:[#allocation3 + $0x4] sm:$0xf]
        %v1334 = vunpack.c.l.b16 %v1330
        %v1335 = vunpack.c.l.b16 %v1331
        %v1336 = vpack.c.b16 %v1335, %v1334
        %v1339 = vsel %vm1319, %v1329, 0
        %1341 = vmatprep.subr.bf16.mxu0 0
        %1342 = vmatpush1.bf16.msra.mxu0 0
        %1343 = vmatprep.subr.bf16.mxu0 0
        %1344 = vmatpush1.bf16.msra.mxu0 0
        %1345 = vmatprep.subr.bf16.mxu0 0
        %1346 = vmatpush1.bf16.msra.mxu0 0
        %1347 = vmatprep.subr.bf16.mxu0 0
        %1348 = vmatpush1.bf16.msra.mxu0 0
        %1349 = vmatprep.subr.bf16.mxu0 0
        %1350 = vmatpush1.bf16.msra.mxu0 0
        %1351 = vmatprep.subr.bf16.mxu0 0
        %1352 = vmatpush1.bf16.msra.mxu0 0
        %1353 = vmatprep.subr.bf16.mxu0 0
        %1354 = vmatpush1.bf16.msra.mxu0 0
        %1355 = vmatprep.subr.bf16.mxu0 0
        %1356 = vmatpush1.bf16.msra.mxu0 %v1336
        %1357 = vmatprep.subr.bf16.mxu0 0
        %1358 = vmatpush2.bf16.msra.mxu0 0
        %1359 = vmatprep.subr.bf16.mxu0 0
        %1360 = vmatpush2.bf16.msra.mxu0 0
        %1361 = vmatprep.subr.bf16.mxu0 0
        %1362 = vmatpush2.bf16.msra.mxu0 0
        %1363 = vmatprep.subr.bf16.mxu0 0
        %1364 = vmatpush2.bf16.msra.mxu0 0
        %1365 = vmatprep.subr.bf16.mxu0 0
        %1366 = vmatpush2.bf16.msra.mxu0 0
        %1367 = vmatprep.subr.bf16.mxu0 0
        %1368 = vmatpush2.bf16.msra.mxu0 0
        %1369 = vmatprep.subr.bf16.mxu0 0
        %1370 = vmatpush2.bf16.msra.mxu0 0
        %1371 = vmatprep.subr.bf16.mxu0 0
        %1372 = vmatpush2.bf16.msra.mxu0 0
        %1373 = vmatprep.mubr.bf16.mxu0 0
        %1374 = vmatmul.mubr.bf16.gmra.mxu0 %v1339
        %v1375 = vpop.f32.mrf.mxu0
        %v1376 = vadd.f32 0.0, %v1375
        %v1377 = vpop.f32.mrf.mxu0
        %v1378 = vpop.f32.mrf.mxu0
        %v1379 = vpop.f32.mrf.mxu0
        %1380 = vdwg.mxu0
        %v1381 = vrcp.pop %v1328
        %v1382 = vmul.f32 %v1376, %v1381
        %v1383 = vpack.c.bf16 %v1382, %v1382
        %v1384 = vld [vmem:[%s4] sm:$0xf]
        %s1385 = scalar_lea.vmem %s1, 16
        %v1386 = vld [vmem:[%s1385] sm:$0xf]
        %v1387 = vld [vmem:[%s1385 + $0x4] sm:$0xf]
        %v1388 = vld [vmem:[%s1385 + $0x8] sm:$0xf]
        %v1389 = vld [vmem:[%s1385 + $0xc] sm:$0xf]
        %s1390 = scalar_lea.vmem %s5, 1
        %v1391 = vld [vmem:[%s1390] sm:$0x1]
        %v1393 = vlaneseq
        %v1394 = vshrl.u32 %v1393, 7
        %v1395 = vsub.s32 0, %v1394
        %v1396 = vrot.slane %v1391, %v1395
        %v1402 = vunpack.c.l.b16 %v1386
        %v1403 = vunpack.c.l.b16 %v1387
        %v1404 = vunpack.c.l.b16 %v1388
        %v1405 = vunpack.c.l.b16 %v1389
        %v1406 = vpack.c.b16 %v1403, %v1402
        %v1407 = vpack.c.b16 %v1405, %v1404
        %1410 = vmatprep.subr.bf16.mxu0 0
        %1411 = vmatpush1.bf16.msra.mxu0 0
        %1412 = vmatprep.subr.bf16.mxu0 0
        %1413 = vmatpush1.bf16.msra.mxu0 0
        %1414 = vmatprep.subr.bf16.mxu0 0
        %1415 = vmatpush1.bf16.msra.mxu0 0
        %1416 = vmatprep.subr.bf16.mxu0 0
        %1417 = vmatpush1.bf16.msra.mxu0 0
        %1418 = vmatprep.subr.bf16.mxu0 0
        %1419 = vmatpush1.bf16.msra.mxu0 0
        %1420 = vmatprep.subr.bf16.mxu0 0
        %1421 = vmatpush1.bf16.msra.mxu0 0
        %1422 = vmatprep.subr.bf16.mxu0 0
        %1423 = vmatpush1.bf16.msra.mxu0 %v1407
        %1424 = vmatprep.subr.bf16.mxu0 0
        %1425 = vmatpush1.bf16.msra.mxu0 %v1406
        %1426 = vmatprep.subr.bf16.mxu0 0
        %1427 = vmatpush2.bf16.msra.mxu0 0
        %1428 = vmatprep.subr.bf16.mxu0 0
        %1429 = vmatpush2.bf16.msra.mxu0 0
        %1430 = vmatprep.subr.bf16.mxu0 0
        %1431 = vmatpush2.bf16.msra.mxu0 0
        %1432 = vmatprep.subr.bf16.mxu0 0
        %1433 = vmatpush2.bf16.msra.mxu0 0
        %1434 = vmatprep.subr.bf16.mxu0 0
        %1435 = vmatpush2.bf16.msra.mxu0 0
        %1436 = vmatprep.subr.bf16.mxu0 0
        %1437 = vmatpush2.bf16.msra.mxu0 0
        %1438 = vmatprep.subr.bf16.mxu0 0
        %1439 = vmatpush2.bf16.msra.mxu0 0
        %1440 = vmatprep.subr.bf16.mxu0 0
        %1441 = vmatpush2.bf16.msra.mxu0 0
        %1442 = vmatprep.mubr.bf16.mxu0 0
        %1443 = vmatmul.mubr.bf16.gmra.mxu0 %v1226
        %v1444 = vpop.f32.mrf.mxu0
        %v1445 = vadd.f32 %v1396, %v1444
        %v1446 = vpop.f32.mrf.mxu0
        %v1447 = vpop.f32.mrf.mxu0
        %v1448 = vpop.f32.mrf.mxu0
        %1449 = vdwg.mxu0
        %v1450 = vmul.f32 %v1445, 0.35355338
        %v1451 = vpack.c.bf16 %v1450, %v1450
        %s1452 = scalar_lea.vmem [#allocation2], 4
        %v1453 = vld [vmem:[%s1452] sm:$0xf]
        %v1455 = vsel %vm1271, %v1451, 0
        %v1458 = vsel %vm1275, %v1453, 0
        %1460 = vmatprep.subr.bf16.mxu0 0
        %1461 = vmatpush1.bf16.msra.mxu0 0
        %1462 = vmatprep.subr.bf16.mxu0 0
        %1463 = vmatpush1.bf16.msra.mxu0 0
        %1464 = vmatprep.subr.bf16.mxu0 0
        %1465 = vmatpush1.bf16.msra.mxu0 0
        %1466 = vmatprep.subr.bf16.mxu0 0
        %1467 = vmatpush1.bf16.msra.mxu0 0
        %1468 = vmatprep.subr.bf16.mxu0 0
        %1469 = vmatpush1.bf16.msra.mxu0 0
        %1470 = vmatprep.subr.bf16.mxu0 0
        %1471 = vmatpush1.bf16.msra.mxu0 0
        %1472 = vmatprep.subr.bf16.mxu0 0
        %1473 = vmatpush1.bf16.msra.mxu0 0
        %1474 = vmatprep.subr.bf16.mxu0 0
        %1475 = vmatpush1.bf16.msra.mxu0 %v1458
        %1476 = vmatprep.subr.bf16.mxu0 0
        %1477 = vmatpush2.bf16.msra.mxu0 0
        %1478 = vmatprep.subr.bf16.mxu0 0
        %1479 = vmatpush2.bf16.msra.mxu0 0
        %1480 = vmatprep.subr.bf16.mxu0 0
        %1481 = vmatpush2.bf16.msra.mxu0 0
        %1482 = vmatprep.subr.bf16.mxu0 0
        %1483 = vmatpush2.bf16.msra.mxu0 0
        %1484 = vmatprep.subr.bf16.mxu0 0
        %1485 = vmatpush2.bf16.msra.mxu0 0
        %1486 = vmatprep.subr.bf16.mxu0 0
        %1487 = vmatpush2.bf16.msra.mxu0 0
        %1488 = vmatprep.subr.bf16.mxu0 0
        %1489 = vmatpush2.bf16.msra.mxu0 0
        %1490 = vmatprep.subr.bf16.mxu0 0
        %1491 = vmatpush2.bf16.msra.mxu0 0
        %1492 = vmatprep.mubr.bf16.mxu0 0
        %1493 = vmatmul.mubr.bf16.gmra.mxu0 %v1455
        %v1494 = vpop.f32.mrf.mxu0
        %v1495 = vadd.f32 0.0, %v1494
        %v1496 = vpop.f32.mrf.mxu0
        %v1497 = vpop.f32.mrf.mxu0
        %v1498 = vpop.f32.mrf.mxu0
        %1499 = vdwg.mxu0
        %v1500 = vsel %vm1319, %v1495, -inf
        %1501 = vmax.xlane.f32.xlu0 %v1500
        %v1502 = vpop.xlane.xlu0 %1501
        %v1503 = vsub.f32 %v1495, %v1502
        %v1504 = vmul.f32 %v1503, 1.442695
        %v1505 = vpow.pop %v1504
        %v1506 = vsel %vm1319, %v1505, 0.0
        %1507 = vadd.xlane.f32.xlu0 %v1506
        %v1508 = vpop.xlane.xlu0 %1507
        %v1509 = vpack.c.bf16 %v1505, %v1505
        %s1510 = scalar_lea.vmem [#allocation3], 8
        %v1511 = vld [vmem:[%s1510] sm:$0xf]
        %v1512 = vld [vmem:[%s1510 + $0x4] sm:$0xf]
        %v1515 = vunpack.c.l.b16 %v1511
        %v1516 = vunpack.c.l.b16 %v1512
        %v1517 = vpack.c.b16 %v1516, %v1515
        %v1520 = vsel %vm1319, %v1509, 0
        %1522 = vmatprep.subr.bf16.mxu0 0
        %1523 = vmatpush1.bf16.msra.mxu0 0
        %1524 = vmatprep.subr.bf16.mxu0 0
        %1525 = vmatpush1.bf16.msra.mxu0 0
        %1526 = vmatprep.subr.bf16.mxu0 0
        %1527 = vmatpush1.bf16.msra.mxu0 0
        %1528 = vmatprep.subr.bf16.mxu0 0
        %1529 = vmatpush1.bf16.msra.mxu0 0
        %1530 = vmatprep.subr.bf16.mxu0 0
        %1531 = vmatpush1.bf16.msra.mxu0 0
        %1532 = vmatprep.subr.bf16.mxu0 0
        %1533 = vmatpush1.bf16.msra.mxu0 0
        %1534 = vmatprep.subr.bf16.mxu0 0
        %1535 = vmatpush1.bf16.msra.mxu0 0
        %1536 = vmatprep.subr.bf16.mxu0 0
        %1537 = vmatpush1.bf16.msra.mxu0 %v1517
        %1538 = vmatprep.subr.bf16.mxu0 0
        %1539 = vmatpush2.bf16.msra.mxu0 0
        %1540 = vmatprep.subr.bf16.mxu0 0
        %1541 = vmatpush2.bf16.msra.mxu0 0
        %1542 = vmatprep.subr.bf16.mxu0 0
        %1543 = vmatpush2.bf16.msra.mxu0 0
        %1544 = vmatprep.subr.bf16.mxu0 0
        %1545 = vmatpush2.bf16.msra.mxu0 0
        %1546 = vmatprep.subr.bf16.mxu0 0
        %1547 = vmatpush2.bf16.msra.mxu0 0
        %1548 = vmatprep.subr.bf16.mxu0 0
        %1549 = vmatpush2.bf16.msra.mxu0 0
        %1550 = vmatprep.subr.bf16.mxu0 0
        %1551 = vmatpush2.bf16.msra.mxu0 0
        %1552 = vmatprep.subr.bf16.mxu0 0
        %1553 = vmatpush2.bf16.msra.mxu0 0
        %1554 = vmatprep.mubr.bf16.mxu0 0
        %1555 = vmatmul.mubr.bf16.gmra.mxu0 %v1520
        %v1556 = vpop.f32.mrf.mxu0
        %v1557 = vadd.f32 0.0, %v1556
        %v1558 = vpop.f32.mrf.mxu0
        %v1559 = vpop.f32.mrf.mxu0
        %v1560 = vpop.f32.mrf.mxu0
        %1561 = vdwg.mxu0
        %v1562 = vrcp.pop %v1508
        %v1563 = vmul.f32 %v1557, %v1562
        %v1564 = vpack.c.bf16 %v1563, %v1563
        %s1565 = scalar_lea.vmem %s4, 4
        %v1566 = vld [vmem:[%s1565] sm:$0xf]
        %v1568 = vsel %vm1271, %v1564, 0
        %v1571 = vsel %vm1275, %v1566, 0
        %1573 = vmatprep.subr.bf16.mxu0 0
        %1574 = vmatpush1.bf16.msra.mxu0 0
        %1575 = vmatprep.subr.bf16.mxu0 0
        %1576 = vmatpush1.bf16.msra.mxu0 0
        %1577 = vmatprep.subr.bf16.mxu0 0
        %1578 = vmatpush1.bf16.msra.mxu0 0
        %1579 = vmatprep.subr.bf16.mxu0 0
        %1580 = vmatpush1.bf16.msra.mxu0 0
        %1581 = vmatprep.subr.bf16.mxu0 0
        %1582 = vmatpush1.bf16.msra.mxu0 0
        %1583 = vmatprep.subr.bf16.mxu0 0
        %1584 = vmatpush1.bf16.msra.mxu0 0
        %1585 = vmatprep.subr.bf16.mxu0 0
        %1586 = vmatpush1.bf16.msra.mxu0 0
        %1587 = vmatprep.subr.bf16.mxu0 0
        %1588 = vmatpush1.bf16.msra.mxu0 %v1571
        %1589 = vmatprep.subr.bf16.mxu0 0
        %1590 = vmatpush2.bf16.msra.mxu0 0
        %1591 = vmatprep.subr.bf16.mxu0 0
        %1592 = vmatpush2.bf16.msra.mxu0 0
        %1593 = vmatprep.subr.bf16.mxu0 0
        %1594 = vmatpush2.bf16.msra.mxu0 0
        %1595 = vmatprep.subr.bf16.mxu0 0
        %1596 = vmatpush2.bf16.msra.mxu0 0
        %1597 = vmatprep.subr.bf16.mxu0 0
        %1598 = vmatpush2.bf16.msra.mxu0 0
        %1599 = vmatprep.subr.bf16.mxu0 0
        %1600 = vmatpush2.bf16.msra.mxu0 0
        %1601 = vmatprep.subr.bf16.mxu0 0
        %1602 = vmatpush2.bf16.msra.mxu0 0
        %1603 = vmatprep.subr.bf16.mxu0 0
        %1604 = vmatpush2.bf16.msra.mxu0 0
        %1605 = vmatprep.mubr.bf16.mxu0 0
        %1606 = vmatmul.mubr.bf16.gmra.mxu0 %v1568
        %v1607 = vpop.f32.mrf.mxu0
        %v1608 = vadd.f32 0.0, %v1607
        %v1609 = vpop.f32.mrf.mxu0
        %v1610 = vpop.f32.mrf.mxu0
        %v1611 = vpop.f32.mrf.mxu0
        %1612 = vdwg.mxu0
        %v1614 = vsel %vm1271, %v1383, 0
        %v1617 = vsel %vm1275, %v1384, 0
        %1619 = vmatprep.subr.bf16.mxu0 0
        %1620 = vmatpush1.bf16.msra.mxu0 0
        %1621 = vmatprep.subr.bf16.mxu0 0
        %1622 = vmatpush1.bf16.msra.mxu0 0
        %1623 = vmatprep.subr.bf16.mxu0 0
        %1624 = vmatpush1.bf16.msra.mxu0 0
        %1625 = vmatprep.subr.bf16.mxu0 0
        %1626 = vmatpush1.bf16.msra.mxu0 0
        %1627 = vmatprep.subr.bf16.mxu0 0
        %1628 = vmatpush1.bf16.msra.mxu0 0
        %1629 = vmatprep.subr.bf16.mxu0 0
        %1630 = vmatpush1.bf16.msra.mxu0 0
        %1631 = vmatprep.subr.bf16.mxu0 0
        %1632 = vmatpush1.bf16.msra.mxu0 0
        %1633 = vmatprep.subr.bf16.mxu0 0
        %1634 = vmatpush1.bf16.msra.mxu0 %v1617
        %1635 = vmatprep.subr.bf16.mxu0 0
        %1636 = vmatpush2.bf16.msra.mxu0 0
        %1637 = vmatprep.subr.bf16.mxu0 0
        %1638 = vmatpush2.bf16.msra.mxu0 0
        %1639 = vmatprep.subr.bf16.mxu0 0
        %1640 = vmatpush2.bf16.msra.mxu0 0
        %1641 = vmatprep.subr.bf16.mxu0 0
        %1642 = vmatpush2.bf16.msra.mxu0 0
        %1643 = vmatprep.subr.bf16.mxu0 0
        %1644 = vmatpush2.bf16.msra.mxu0 0
        %1645 = vmatprep.subr.bf16.mxu0 0
        %1646 = vmatpush2.bf16.msra.mxu0 0
        %1647 = vmatprep.subr.bf16.mxu0 0
        %1648 = vmatpush2.bf16.msra.mxu0 0
        %1649 = vmatprep.subr.bf16.mxu0 0
        %1650 = vmatpush2.bf16.msra.mxu0 0
        %1651 = vmatprep.mubr.bf16.mxu0 0
        %1652 = vmatmul.mubr.bf16.gmra.mxu0 %v1614
        %v1653 = vpop.f32.mrf.mxu0
        %v1654 = vadd.f32 %v1608, %v1653
        %v1655 = vpop.f32.mrf.mxu0
        %v1656 = vpop.f32.mrf.mxu0
        %v1657 = vpop.f32.mrf.mxu0
        %1658 = vdwg.mxu0
        %s1659 = scalar_lea.vmem %s1, 32
        %v1660 = vld [vmem:[%s1659] sm:$0xf]
        %v1661 = vld [vmem:[%s1659 + $0x4] sm:$0xf]
        %v1662 = vld [vmem:[%s1659 + $0x8] sm:$0xf]
        %v1663 = vld [vmem:[%s1659 + $0xc] sm:$0xf]
        %s1664 = scalar_lea.vmem %s5, 2
        %v1665 = vld [vmem:[%s1664] sm:$0x1]
        %v1667 = vlaneseq
        %v1668 = vshrl.u32 %v1667, 7
        %v1669 = vsub.s32 0, %v1668
        %v1670 = vrot.slane %v1665, %v1669
        %v1676 = vunpack.c.l.b16 %v1660
        %v1677 = vunpack.c.l.b16 %v1661
        %v1678 = vunpack.c.l.b16 %v1662
        %v1679 = vunpack.c.l.b16 %v1663
        %v1680 = vpack.c.b16 %v1677, %v1676
        %v1681 = vpack.c.b16 %v1679, %v1678
        %1684 = vmatprep.subr.bf16.mxu0 0
        %1685 = vmatpush1.bf16.msra.mxu0 0
        %1686 = vmatprep.subr.bf16.mxu0 0
        %1687 = vmatpush1.bf16.msra.mxu0 0
        %1688 = vmatprep.subr.bf16.mxu0 0
        %1689 = vmatpush1.bf16.msra.mxu0 0
        %1690 = vmatprep.subr.bf16.mxu0 0
        %1691 = vmatpush1.bf16.msra.mxu0 0
        %1692 = vmatprep.subr.bf16.mxu0 0
        %1693 = vmatpush1.bf16.msra.mxu0 0
        %1694 = vmatprep.subr.bf16.mxu0 0
        %1695 = vmatpush1.bf16.msra.mxu0 0
        %1696 = vmatprep.subr.bf16.mxu0 0
        %1697 = vmatpush1.bf16.msra.mxu0 %v1681
        %1698 = vmatprep.subr.bf16.mxu0 0
        %1699 = vmatpush1.bf16.msra.mxu0 %v1680
        %1700 = vmatprep.subr.bf16.mxu0 0
        %1701 = vmatpush2.bf16.msra.mxu0 0
        %1702 = vmatprep.subr.bf16.mxu0 0
        %1703 = vmatpush2.bf16.msra.mxu0 0
        %1704 = vmatprep.subr.bf16.mxu0 0
        %1705 = vmatpush2.bf16.msra.mxu0 0
        %1706 = vmatprep.subr.bf16.mxu0 0
        %1707 = vmatpush2.bf16.msra.mxu0 0
        %1708 = vmatprep.subr.bf16.mxu0 0
        %1709 = vmatpush2.bf16.msra.mxu0 0
        %1710 = vmatprep.subr.bf16.mxu0 0
        %1711 = vmatpush2.bf16.msra.mxu0 0
        %1712 = vmatprep.subr.bf16.mxu0 0
        %1713 = vmatpush2.bf16.msra.mxu0 0
        %1714 = vmatprep.subr.bf16.mxu0 0
        %1715 = vmatpush2.bf16.msra.mxu0 0
        %1716 = vmatprep.mubr.bf16.mxu0 0
        %1717 = vmatmul.mubr.bf16.gmra.mxu0 %v1226
        %v1718 = vpop.f32.mrf.mxu0
        %v1719 = vadd.f32 %v1670, %v1718
        %v1720 = vpop.f32.mrf.mxu0
        %v1721 = vpop.f32.mrf.mxu0
        %v1722 = vpop.f32.mrf.mxu0
        %1723 = vdwg.mxu0
        %v1724 = vmul.f32 %v1719, 0.35355338
        %v1725 = vpack.c.bf16 %v1724, %v1724
        %s1726 = scalar_lea.vmem [#allocation2], 8
        %v1727 = vld [vmem:[%s1726] sm:$0xf]
        %v1729 = vsel %vm1271, %v1725, 0
        %v1732 = vsel %vm1275, %v1727, 0
        %1734 = vmatprep.subr.bf16.mxu0 0
        %1735 = vmatpush1.bf16.msra.mxu0 0
        %1736 = vmatprep.subr.bf16.mxu0 0
        %1737 = vmatpush1.bf16.msra.mxu0 0
        %1738 = vmatprep.subr.bf16.mxu0 0
        %1739 = vmatpush1.bf16.msra.mxu0 0
        %1740 = vmatprep.subr.bf16.mxu0 0
        %1741 = vmatpush1.bf16.msra.mxu0 0
        %1742 = vmatprep.subr.bf16.mxu0 0
        %1743 = vmatpush1.bf16.msra.mxu0 0
        %1744 = vmatprep.subr.bf16.mxu0 0
        %1745 = vmatpush1.bf16.msra.mxu0 0
        %1746 = vmatprep.subr.bf16.mxu0 0
        %1747 = vmatpush1.bf16.msra.mxu0 0
        %1748 = vmatprep.subr.bf16.mxu0 0
        %1749 = vmatpush1.bf16.msra.mxu0 %v1732
        %1750 = vmatprep.subr.bf16.mxu0 0
        %1751 = vmatpush2.bf16.msra.mxu0 0
        %1752 = vmatprep.subr.bf16.mxu0 0
        %1753 = vmatpush2.bf16.msra.mxu0 0
        %1754 = vmatprep.subr.bf16.mxu0 0
        %1755 = vmatpush2.bf16.msra.mxu0 0
        %1756 = vmatprep.subr.bf16.mxu0 0
        %1757 = vmatpush2.bf16.msra.mxu0 0
        %1758 = vmatprep.subr.bf16.mxu0 0
        %1759 = vmatpush2.bf16.msra.mxu0 0
        %1760 = vmatprep.subr.bf16.mxu0 0
        %1761 = vmatpush2.bf16.msra.mxu0 0
        %1762 = vmatprep.subr.bf16.mxu0 0
        %1763 = vmatpush2.bf16.msra.mxu0 0
        %1764 = vmatprep.subr.bf16.mxu0 0
        %1765 = vmatpush2.bf16.msra.mxu0 0
        %1766 = vmatprep.mubr.bf16.mxu0 0
        %1767 = vmatmul.mubr.bf16.gmra.mxu0 %v1729
        %v1768 = vpop.f32.mrf.mxu0
        %v1769 = vadd.f32 0.0, %v1768
        %v1770 = vpop.f32.mrf.mxu0
        %v1771 = vpop.f32.mrf.mxu0
        %v1772 = vpop.f32.mrf.mxu0
        %1773 = vdwg.mxu0
        %v1774 = vsel %vm1319, %v1769, -inf
        %1775 = vmax.xlane.f32.xlu0 %v1774
        %v1776 = vpop.xlane.xlu0 %1775
        %v1777 = vsub.f32 %v1769, %v1776
        %v1778 = vmul.f32 %v1777, 1.442695
        %v1779 = vpow.pop %v1778
        %v1780 = vsel %vm1319, %v1779, 0.0
        %1781 = vadd.xlane.f32.xlu0 %v1780
        %v1782 = vpop.xlane.xlu0 %1781
        %v1783 = vpack.c.bf16 %v1779, %v1779
        %s1784 = scalar_lea.vmem [#allocation3], 16
        %v1785 = vld [vmem:[%s1784] sm:$0xf]
        %v1786 = vld [vmem:[%s1784 + $0x4] sm:$0xf]
        %v1789 = vunpack.c.l.b16 %v1785
        %v1790 = vunpack.c.l.b16 %v1786
        %v1791 = vpack.c.b16 %v1790, %v1789
        %v1794 = vsel %vm1319, %v1783, 0
        %1796 = vmatprep.subr.bf16.mxu0 0
        %1797 = vmatpush1.bf16.msra.mxu0 0
        %1798 = vmatprep.subr.bf16.mxu0 0
        %1799 = vmatpush1.bf16.msra.mxu0 0
        %1800 = vmatprep.subr.bf16.mxu0 0
        %1801 = vmatpush1.bf16.msra.mxu0 0
        %1802 = vmatprep.subr.bf16.mxu0 0
        %1803 = vmatpush1.bf16.msra.mxu0 0
        %1804 = vmatprep.subr.bf16.mxu0 0
        %1805 = vmatpush1.bf16.msra.mxu0 0
        %1806 = vmatprep.subr.bf16.mxu0 0
        %1807 = vmatpush1.bf16.msra.mxu0 0
        %1808 = vmatprep.subr.bf16.mxu0 0
        %1809 = vmatpush1.bf16.msra.mxu0 0
        %1810 = vmatprep.subr.bf16.mxu0 0
        %1811 = vmatpush1.bf16.msra.mxu0 %v1791
        %1812 = vmatprep.subr.bf16.mxu0 0
        %1813 = vmatpush2.bf16.msra.mxu0 0
        %1814 = vmatprep.subr.bf16.mxu0 0
        %1815 = vmatpush2.bf16.msra.mxu0 0
        %1816 = vmatprep.subr.bf16.mxu0 0
        %1817 = vmatpush2.bf16.msra.mxu0 0
        %1818 = vmatprep.subr.bf16.mxu0 0
        %1819 = vmatpush2.bf16.msra.mxu0 0
        %1820 = vmatprep.subr.bf16.mxu0 0
        %1821 = vmatpush2.bf16.msra.mxu0 0
        %1822 = vmatprep.subr.bf16.mxu0 0
        %1823 = vmatpush2.bf16.msra.mxu0 0
        %1824 = vmatprep.subr.bf16.mxu0 0
        %1825 = vmatpush2.bf16.msra.mxu0 0
        %1826 = vmatprep.subr.bf16.mxu0 0
        %1827 = vmatpush2.bf16.msra.mxu0 0
        %1828 = vmatprep.mubr.bf16.mxu0 0
        %1829 = vmatmul.mubr.bf16.gmra.mxu0 %v1794
        %v1830 = vpop.f32.mrf.mxu0
        %v1831 = vadd.f32 0.0, %v1830
        %v1832 = vpop.f32.mrf.mxu0
        %v1833 = vpop.f32.mrf.mxu0
        %v1834 = vpop.f32.mrf.mxu0
        %1835 = vdwg.mxu0
        %v1836 = vrcp.pop %v1782
        %v1837 = vmul.f32 %v1831, %v1836
        %v1838 = vpack.c.bf16 %v1837, %v1837
        %s1839 = scalar_lea.vmem %s4, 8
        %v1840 = vld [vmem:[%s1839] sm:$0xf]
        %v1842 = vsel %vm1271, %v1838, 0
        %v1845 = vsel %vm1275, %v1840, 0
        %1847 = vmatprep.subr.bf16.mxu0 0
        %1848 = vmatpush1.bf16.msra.mxu0 0
        %1849 = vmatprep.subr.bf16.mxu0 0
        %1850 = vmatpush1.bf16.msra.mxu0 0
        %1851 = vmatprep.subr.bf16.mxu0 0
        %1852 = vmatpush1.bf16.msra.mxu0 0
        %1853 = vmatprep.subr.bf16.mxu0 0
        %1854 = vmatpush1.bf16.msra.mxu0 0
        %1855 = vmatprep.subr.bf16.mxu0 0
        %1856 = vmatpush1.bf16.msra.mxu0 0
        %1857 = vmatprep.subr.bf16.mxu0 0
        %1858 = vmatpush1.bf16.msra.mxu0 0
        %1859 = vmatprep.subr.bf16.mxu0 0
        %1860 = vmatpush1.bf16.msra.mxu0 0
        %1861 = vmatprep.subr.bf16.mxu0 0
        %1862 = vmatpush1.bf16.msra.mxu0 %v1845
        %1863 = vmatprep.subr.bf16.mxu0 0
        %1864 = vmatpush2.bf16.msra.mxu0 0
        %1865 = vmatprep.subr.bf16.mxu0 0
        %1866 = vmatpush2.bf16.msra.mxu0 0
        %1867 = vmatprep.subr.bf16.mxu0 0
        %1868 = vmatpush2.bf16.msra.mxu0 0
        %1869 = vmatprep.subr.bf16.mxu0 0
        %1870 = vmatpush2.bf16.msra.mxu0 0
        %1871 = vmatprep.subr.bf16.mxu0 0
        %1872 = vmatpush2.bf16.msra.mxu0 0
        %1873 = vmatprep.subr.bf16.mxu0 0
        %1874 = vmatpush2.bf16.msra.mxu0 0
        %1875 = vmatprep.subr.bf16.mxu0 0
        %1876 = vmatpush2.bf16.msra.mxu0 0
        %1877 = vmatprep.subr.bf16.mxu0 0
        %1878 = vmatpush2.bf16.msra.mxu0 0
        %1879 = vmatprep.mubr.bf16.mxu0 0
        %1880 = vmatmul.mubr.bf16.gmra.mxu0 %v1842
        %v1881 = vpop.f32.mrf.mxu0
        %v1882 = vadd.f32 0.0, %v1881
        %v1883 = vpop.f32.mrf.mxu0
        %v1884 = vpop.f32.mrf.mxu0
        %v1885 = vpop.f32.mrf.mxu0
        %1886 = vdwg.mxu0
        %v1887 = vadd.f32 %v1654, %v1882
        %s1888 = scalar_lea.vmem %s1, 48
        %v1889 = vld [vmem:[%s1888] sm:$0xf]
        %v1890 = vld [vmem:[%s1888 + $0x4] sm:$0xf]
        %v1891 = vld [vmem:[%s1888 + $0x8] sm:$0xf]
        %v1892 = vld [vmem:[%s1888 + $0xc] sm:$0xf]
        %s1893 = scalar_lea.vmem %s5, 3
        %v1894 = vld [vmem:[%s1893] sm:$0x1]
        %v1896 = vlaneseq
        %v1897 = vshrl.u32 %v1896, 7
        %v1898 = vsub.s32 0, %v1897
        %v1899 = vrot.slane %v1894, %v1898
        %v1905 = vunpack.c.l.b16 %v1889
        %v1906 = vunpack.c.l.b16 %v1890
        %v1907 = vunpack.c.l.b16 %v1891
        %v1908 = vunpack.c.l.b16 %v1892
        %v1909 = vpack.c.b16 %v1906, %v1905
        %v1910 = vpack.c.b16 %v1908, %v1907
        %1913 = vmatprep.subr.bf16.mxu0 0
        %1914 = vmatpush1.bf16.msra.mxu0 0
        %1915 = vmatprep.subr.bf16.mxu0 0
        %1916 = vmatpush1.bf16.msra.mxu0 0
        %1917 = vmatprep.subr.bf16.mxu0 0
        %1918 = vmatpush1.bf16.msra.mxu0 0
        %1919 = vmatprep.subr.bf16.mxu0 0
        %1920 = vmatpush1.bf16.msra.mxu0 0
        %1921 = vmatprep.subr.bf16.mxu0 0
        %1922 = vmatpush1.bf16.msra.mxu0 0
        %1923 = vmatprep.subr.bf16.mxu0 0
        %1924 = vmatpush1.bf16.msra.mxu0 0
        %1925 = vmatprep.subr.bf16.mxu0 0
        %1926 = vmatpush1.bf16.msra.mxu0 %v1910
        %1927 = vmatprep.subr.bf16.mxu0 0
        %1928 = vmatpush1.bf16.msra.mxu0 %v1909
        %1929 = vmatprep.subr.bf16.mxu0 0
        %1930 = vmatpush2.bf16.msra.mxu0 0
        %1931 = vmatprep.subr.bf16.mxu0 0
        %1932 = vmatpush2.bf16.msra.mxu0 0
        %1933 = vmatprep.subr.bf16.mxu0 0
        %1934 = vmatpush2.bf16.msra.mxu0 0
        %1935 = vmatprep.subr.bf16.mxu0 0
        %1936 = vmatpush2.bf16.msra.mxu0 0
        %1937 = vmatprep.subr.bf16.mxu0 0
        %1938 = vmatpush2.bf16.msra.mxu0 0
        %1939 = vmatprep.subr.bf16.mxu0 0
        %1940 = vmatpush2.bf16.msra.mxu0 0
        %1941 = vmatprep.subr.bf16.mxu0 0
        %1942 = vmatpush2.bf16.msra.mxu0 0
        %1943 = vmatprep.subr.bf16.mxu0 0
        %1944 = vmatpush2.bf16.msra.mxu0 0
        %1945 = vmatprep.mubr.bf16.mxu0 0
        %1946 = vmatmul.mubr.bf16.gmra.mxu0 %v1226
        %v1947 = vpop.f32.mrf.mxu0
        %v1948 = vadd.f32 %v1899, %v1947
        %v1949 = vpop.f32.mrf.mxu0
        %v1950 = vpop.f32.mrf.mxu0
        %v1951 = vpop.f32.mrf.mxu0
        %1952 = vdwg.mxu0
        %v1953 = vmul.f32 %v1948, 0.35355338
        %v1954 = vpack.c.bf16 %v1953, %v1953
        %s1955 = scalar_lea.vmem [#allocation2], 12
        %v1956 = vld [vmem:[%s1955] sm:$0xf]
        %v1958 = vsel %vm1271, %v1954, 0
        %v1961 = vsel %vm1275, %v1956, 0
        %1963 = vmatprep.subr.bf16.mxu0 0
        %1964 = vmatpush1.bf16.msra.mxu0 0
        %1965 = vmatprep.subr.bf16.mxu0 0
        %1966 = vmatpush1.bf16.msra.mxu0 0
        %1967 = vmatprep.subr.bf16.mxu0 0
        %1968 = vmatpush1.bf16.msra.mxu0 0
        %1969 = vmatprep.subr.bf16.mxu0 0
        %1970 = vmatpush1.bf16.msra.mxu0 0
        %1971 = vmatprep.subr.bf16.mxu0 0
        %1972 = vmatpush1.bf16.msra.mxu0 0
        %1973 = vmatprep.subr.bf16.mxu0 0
        %1974 = vmatpush1.bf16.msra.mxu0 0
        %1975 = vmatprep.subr.bf16.mxu0 0
        %1976 = vmatpush1.bf16.msra.mxu0 0
        %1977 = vmatprep.subr.bf16.mxu0 0
        %1978 = vmatpush1.bf16.msra.mxu0 %v1961
        %1979 = vmatprep.subr.bf16.mxu0 0
        %1980 = vmatpush2.bf16.msra.mxu0 0
        %1981 = vmatprep.subr.bf16.mxu0 0
        %1982 = vmatpush2.bf16.msra.mxu0 0
        %1983 = vmatprep.subr.bf16.mxu0 0
        %1984 = vmatpush2.bf16.msra.mxu0 0
        %1985 = vmatprep.subr.bf16.mxu0 0
        %1986 = vmatpush2.bf16.msra.mxu0 0
        %1987 = vmatprep.subr.bf16.mxu0 0
        %1988 = vmatpush2.bf16.msra.mxu0 0
        %1989 = vmatprep.subr.bf16.mxu0 0
        %1990 = vmatpush2.bf16.msra.mxu0 0
        %1991 = vmatprep.subr.bf16.mxu0 0
        %1992 = vmatpush2.bf16.msra.mxu0 0
        %1993 = vmatprep.subr.bf16.mxu0 0
        %1994 = vmatpush2.bf16.msra.mxu0 0
        %1995 = vmatprep.mubr.bf16.mxu0 0
        %1996 = vmatmul.mubr.bf16.gmra.mxu0 %v1958
        %v1997 = vpop.f32.mrf.mxu0
        %v1998 = vadd.f32 0.0, %v1997
        %v1999 = vpop.f32.mrf.mxu0
        %v2000 = vpop.f32.mrf.mxu0
        %v2001 = vpop.f32.mrf.mxu0
        %2002 = vdwg.mxu0
        %v2003 = vsel %vm1319, %v1998, -inf
        %2004 = vmax.xlane.f32.xlu0 %v2003
        %v2005 = vpop.xlane.xlu0 %2004
        %v2006 = vsub.f32 %v1998, %v2005
        %v2007 = vmul.f32 %v2006, 1.442695
        %v2008 = vpow.pop %v2007
        %v2009 = vsel %vm1319, %v2008, 0.0
        %2010 = vadd.xlane.f32.xlu0 %v2009
        %v2011 = vpop.xlane.xlu0 %2010
        %v2012 = vpack.c.bf16 %v2008, %v2008
        %s2013 = scalar_lea.vmem [#allocation3], 24
        %v2014 = vld [vmem:[%s2013] sm:$0xf]
        %v2015 = vld [vmem:[%s2013 + $0x4] sm:$0xf]
        %v2018 = vunpack.c.l.b16 %v2014
        %v2019 = vunpack.c.l.b16 %v2015
        %v2020 = vpack.c.b16 %v2019, %v2018
        %v2023 = vsel %vm1319, %v2012, 0
        %2025 = vmatprep.subr.bf16.mxu0 0
        %2026 = vmatpush1.bf16.msra.mxu0 0
        %2027 = vmatprep.subr.bf16.mxu0 0
        %2028 = vmatpush1.bf16.msra.mxu0 0
        %2029 = vmatprep.subr.bf16.mxu0 0
        %2030 = vmatpush1.bf16.msra.mxu0 0
        %2031 = vmatprep.subr.bf16.mxu0 0
        %2032 = vmatpush1.bf16.msra.mxu0 0
        %2033 = vmatprep.subr.bf16.mxu0 0
        %2034 = vmatpush1.bf16.msra.mxu0 0
        %2035 = vmatprep.subr.bf16.mxu0 0
        %2036 = vmatpush1.bf16.msra.mxu0 0
        %2037 = vmatprep.subr.bf16.mxu0 0
        %2038 = vmatpush1.bf16.msra.mxu0 0
        %2039 = vmatprep.subr.bf16.mxu0 0
        %2040 = vmatpush1.bf16.msra.mxu0 %v2020
        %2041 = vmatprep.subr.bf16.mxu0 0
        %2042 = vmatpush2.bf16.msra.mxu0 0
        %2043 = vmatprep.subr.bf16.mxu0 0
        %2044 = vmatpush2.bf16.msra.mxu0 0
        %2045 = vmatprep.subr.bf16.mxu0 0
        %2046 = vmatpush2.bf16.msra.mxu0 0
        %2047 = vmatprep.subr.bf16.mxu0 0
        %2048 = vmatpush2.bf16.msra.mxu0 0
        %2049 = vmatprep.subr.bf16.mxu0 0
        %2050 = vmatpush2.bf16.msra.mxu0 0
        %2051 = vmatprep.subr.bf16.mxu0 0
        %2052 = vmatpush2.bf16.msra.mxu0 0
        %2053 = vmatprep.subr.bf16.mxu0 0
        %2054 = vmatpush2.bf16.msra.mxu0 0
        %2055 = vmatprep.subr.bf16.mxu0 0
        %2056 = vmatpush2.bf16.msra.mxu0 0
        %2057 = vmatprep.mubr.bf16.mxu0 0
        %2058 = vmatmul.mubr.bf16.gmra.mxu0 %v2023
        %v2059 = vpop.f32.mrf.mxu0
        %v2060 = vadd.f32 0.0, %v2059
        %v2061 = vpop.f32.mrf.mxu0
        %v2062 = vpop.f32.mrf.mxu0
        %v2063 = vpop.f32.mrf.mxu0
        %2064 = vdwg.mxu0
        %v2065 = vrcp.pop %v2011
        %v2066 = vmul.f32 %v2060, %v2065
        %v2067 = vpack.c.bf16 %v2066, %v2066
        %s2068 = scalar_lea.vmem %s4, 12
        %v2069 = vld [vmem:[%s2068] sm:$0xf]
        %v2071 = vsel %vm1271, %v2067, 0
        %v2074 = vsel %vm1275, %v2069, 0
        %2076 = vmatprep.subr.bf16.mxu0 0
        %2077 = vmatpush1.bf16.msra.mxu0 0
        %2078 = vmatprep.subr.bf16.mxu0 0
        %2079 = vmatpush1.bf16.msra.mxu0 0
        %2080 = vmatprep.subr.bf16.mxu0 0
        %2081 = vmatpush1.bf16.msra.mxu0 0
        %2082 = vmatprep.subr.bf16.mxu0 0
        %2083 = vmatpush1.bf16.msra.mxu0 0
        %2084 = vmatprep.subr.bf16.mxu0 0
        %2085 = vmatpush1.bf16.msra.mxu0 0
        %2086 = vmatprep.subr.bf16.mxu0 0
        %2087 = vmatpush1.bf16.msra.mxu0 0
        %2088 = vmatprep.subr.bf16.mxu0 0
        %2089 = vmatpush1.bf16.msra.mxu0 0
        %2090 = vmatprep.subr.bf16.mxu0 0
        %2091 = vmatpush1.bf16.msra.mxu0 %v2074
        %2092 = vmatprep.subr.bf16.mxu0 0
        %2093 = vmatpush2.bf16.msra.mxu0 0
        %2094 = vmatprep.subr.bf16.mxu0 0
        %2095 = vmatpush2.bf16.msra.mxu0 0
        %2096 = vmatprep.subr.bf16.mxu0 0
        %2097 = vmatpush2.bf16.msra.mxu0 0
        %2098 = vmatprep.subr.bf16.mxu0 0
        %2099 = vmatpush2.bf16.msra.mxu0 0
        %2100 = vmatprep.subr.bf16.mxu0 0
        %2101 = vmatpush2.bf16.msra.mxu0 0
        %2102 = vmatprep.subr.bf16.mxu0 0
        %2103 = vmatpush2.bf16.msra.mxu0 0
        %2104 = vmatprep.subr.bf16.mxu0 0
        %2105 = vmatpush2.bf16.msra.mxu0 0
        %2106 = vmatprep.subr.bf16.mxu0 0
        %2107 = vmatpush2.bf16.msra.mxu0 0
        %2108 = vmatprep.mubr.bf16.mxu0 0
        %2109 = vmatmul.mubr.bf16.gmra.mxu0 %v2071
        %v2110 = vpop.f32.mrf.mxu0
        %v2111 = vadd.f32 0.0, %v2110
        %v2112 = vpop.f32.mrf.mxu0
        %v2113 = vpop.f32.mrf.mxu0
        %v2114 = vpop.f32.mrf.mxu0
        %2115 = vdwg.mxu0
        %v2116 = vadd.f32 %v1887, %v2111
        %v2117 = vld [vmem:[%s8] sm:$0x1]
        %v2119 = vlaneseq
        %v2120 = vshrl.u32 %v2119, 7
        %v2121 = vsub.s32 0, %v2120
        %v2122 = vrot.slane %v2117, %v2121
        %v2124 = vadd.f32 %v2116, %v2122
        %v2125 = vadd.f32 %v1199, %v2124
        %v2126 = vld [vmem:[%s9] sm:$0x1]
        %v2127 = vld [vmem:[%s10] sm:$0x1]
        %v2128 = vsel %vm1224, %v2125, 0.0
        %2129 = vadd.xlane.f32.xlu0 %v2128
        %v2130 = vpop.xlane.xlu0 %2129
        %v2131 = vrcp.pop 32.0
        %v2132 = vmul.f32 %v2130, %v2131
        %v2133 = vsub.f32 %v2125, %v2132
        %v2134 = vmul.f32 %v2133, %v2133
        %v2135 = vsel %vm1224, %v2134, 0.0
        %2136 = vadd.xlane.f32.xlu0 %v2135
        %v2137 = vpop.xlane.xlu0 %2136
        %v2138 = vmul.f32 %v2137, %v2131
        %v2139 = vadd.f32 %v2138, 1e-05
        %v2140 = vrsqrt.pop %v2139
        %v2141 = vmul.f32 %v2133, %v2140
        %v2143 = vlaneseq
        %v2144 = vshrl.u32 %v2143, 7
        %v2145 = vsub.s32 0, %v2144
        %v2146 = vrot.slane %v2126, %v2145
        %v2148 = vmul.f32 %v2141, %v2146
        %v2150 = vlaneseq
        %v2151 = vshrl.u32 %v2150, 7
        %v2152 = vsub.s32 0, %v2151
        %v2153 = vrot.slane %v2127, %v2152
        %v2155 = vadd.f32 %v2148, %v2153
        %v2156 = vpack.c.bf16 %v2155, %v2155
        %v2157 = vld [vmem:[%s11] sm:$0xf]
        %v2158 = vld [vmem:[%s11 + $0x4] sm:$0xf]
        %v2159 = vld [vmem:[%s11 + $0x8] sm:$0xf]
        %v2160 = vld [vmem:[%s11 + $0xc] sm:$0xf]
        %v2161 = vld [vmem:[%s12] sm:$0x1]
        %v2163 = vlaneseq
        %v2164 = vshrl.u32 %v2163, 7
        %v2165 = vsub.s32 0, %v2164
        %v2166 = vrot.slane %v2161, %v2165
        %v2172 = vunpack.c.l.b16 %v2157
        %v2173 = vunpack.c.l.b16 %v2158
        %v2174 = vunpack.c.l.b16 %v2159
        %v2175 = vunpack.c.l.b16 %v2160
        %v2176 = vpack.c.b16 %v2173, %v2172
        %v2177 = vpack.c.b16 %v2175, %v2174
        %v2181 = vsel %vm1224, %v2156, 0
        %2183 = vmatprep.subr.bf16.mxu0 0
        %2184 = vmatpush1.bf16.msra.mxu0 0
        %2185 = vmatprep.subr.bf16.mxu0 0
        %2186 = vmatpush1.bf16.msra.mxu0 0
        %2187 = vmatprep.subr.bf16.mxu0 0
        %2188 = vmatpush1.bf16.msra.mxu0 0
        %2189 = vmatprep.subr.bf16.mxu0 0
        %2190 = vmatpush1.bf16.msra.mxu0 0
        %2191 = vmatprep.subr.bf16.mxu0 0
        %2192 = vmatpush1.bf16.msra.mxu0 0
        %2193 = vmatprep.subr.bf16.mxu0 0
        %2194 = vmatpush1.bf16.msra.mxu0 0
        %2195 = vmatprep.subr.bf16.mxu0 0
        %2196 = vmatpush1.bf16.msra.mxu0 %v2177
        %2197 = vmatprep.subr.bf16.mxu0 0
        %2198 = vmatpush1.bf16.msra.mxu0 %v2176
        %2199 = vmatprep.subr.bf16.mxu0 0
        %2200 = vmatpush2.bf16.msra.mxu0 0
        %2201 = vmatprep.subr.bf16.mxu0 0
        %2202 = vmatpush2.bf16.msra.mxu0 0
        %2203 = vmatprep.subr.bf16.mxu0 0
        %2204 = vmatpush2.bf16.msra.mxu0 0
        %2205 = vmatprep.subr.bf16.mxu0 0
        %2206 = vmatpush2.bf16.msra.mxu0 0
        %2207 = vmatprep.subr.bf16.mxu0 0
        %2208 = vmatpush2.bf16.msra.mxu0 0
        %2209 = vmatprep.subr.bf16.mxu0 0
        %2210 = vmatpush2.bf16.msra.mxu0 0
        %2211 = vmatprep.subr.bf16.mxu0 0
        %2212 = vmatpush2.bf16.msra.mxu0 0
        %2213 = vmatprep.subr.bf16.mxu0 0
        %2214 = vmatpush2.bf16.msra.mxu0 0
        %2215 = vmatprep.mubr.bf16.mxu0 0
        %2216 = vmatmul.mubr.bf16.gmra.mxu0 %v2181
        %v2217 = vpop.f32.mrf.mxu0
        %v2218 = vadd.f32 %v2166, %v2217
        %v2219 = vpop.f32.mrf.mxu0
        %v2220 = vpop.f32.mrf.mxu0
        %v2221 = vpop.f32.mrf.mxu0
        %2222 = vdwg.mxu0
        %v2223 = vmul.f32 %v2218, 0.5
        %v2224 = vmul.f32 %v2218, 0.70710677
        %v2225 = verf.f32.pop %v2224
        %v2226 = vadd.f32 %v2225, 1.0
        %v2227 = vmul.f32 %v2223, %v2226
        %v2228 = vpack.c.bf16 %v2227, %v2227
        %v2229 = vld [vmem:[%s13] sm:$0xf]
        %v2230 = vld [vmem:[%s13 + $0x4] sm:$0xf]
        %v2231 = vld [vmem:[%s13 + $0x8] sm:$0xf]
        %v2232 = vld [vmem:[%s13 + $0xc] sm:$0xf]
        %v2233 = vld [vmem:[%s13 + $0x10] sm:$0xf]
        %v2234 = vld [vmem:[%s13 + $0x14] sm:$0xf]
        %v2235 = vld [vmem:[%s13 + $0x18] sm:$0xf]
        %v2236 = vld [vmem:[%s13 + $0x1c] sm:$0xf]
        %v2237 = vld [vmem:[%s14] sm:$0x1]
        %v2239 = vlaneseq
        %v2240 = vshrl.u32 %v2239, 7
        %v2241 = vsub.s32 0, %v2240
        %v2242 = vrot.slane %v2237, %v2241
        %v2252 = vunpack.c.l.b16 %v2229
        %v2253 = vunpack.c.l.b16 %v2230
        %v2254 = vunpack.c.l.b16 %v2231
        %v2255 = vunpack.c.l.b16 %v2232
        %v2256 = vunpack.c.l.b16 %v2233
        %v2257 = vunpack.c.l.b16 %v2234
        %v2258 = vunpack.c.l.b16 %v2235
        %v2259 = vunpack.c.l.b16 %v2236
        %v2260 = vpack.c.b16 %v2253, %v2252
        %v2261 = vpack.c.b16 %v2255, %v2254
        %v2262 = vpack.c.b16 %v2257, %v2256
        %v2263 = vpack.c.b16 %v2259, %v2258
        %vm2268 = vcmask 523264
        %v2270 = vsel %vm2268, %v2228, 0
        %2272 = vmatprep.subr.bf16.mxu0 0
        %2273 = vmatpush1.bf16.msra.mxu0 0
        %2274 = vmatprep.subr.bf16.mxu0 0
        %2275 = vmatpush1.bf16.msra.mxu0 0
        %2276 = vmatprep.subr.bf16.mxu0 0
        %2277 = vmatpush1.bf16.msra.mxu0 0
        %2278 = vmatprep.subr.bf16.mxu0 0
        %2279 = vmatpush1.bf16.msra.mxu0 0
        %2280 = vmatprep.subr.bf16.mxu0 0
        %2281 = vmatpush1.bf16.msra.mxu0 %v2263
        %2282 = vmatprep.subr.bf16.mxu0 0
        %2283 = vmatpush1.bf16.msra.mxu0 %v2262
        %2284 = vmatprep.subr.bf16.mxu0 0
        %2285 = vmatpush1.bf16.msra.mxu0 %v2261
        %2286 = vmatprep.subr.bf16.mxu0 0
        %2287 = vmatpush1.bf16.msra.mxu0 %v2260
        %2288 = vmatprep.subr.bf16.mxu0 0
        %2289 = vmatpush2.bf16.msra.mxu0 0
        %2290 = vmatprep.subr.bf16.mxu0 0
        %2291 = vmatpush2.bf16.msra.mxu0 0
        %2292 = vmatprep.subr.bf16.mxu0 0
        %2293 = vmatpush2.bf16.msra.mxu0 0
        %2294 = vmatprep.subr.bf16.mxu0 0
        %2295 = vmatpush2.bf16.msra.mxu0 0
        %2296 = vmatprep.subr.bf16.mxu0 0
        %2297 = vmatpush2.bf16.msra.mxu0 0
        %2298 = vmatprep.subr.bf16.mxu0 0
        %2299 = vmatpush2.bf16.msra.mxu0 0
        %2300 = vmatprep.subr.bf16.mxu0 0
        %2301 = vmatpush2.bf16.msra.mxu0 0
        %2302 = vmatprep.subr.bf16.mxu0 0
        %2303 = vmatpush2.bf16.msra.mxu0 0
        %2304 = vmatprep.mubr.bf16.mxu0 0
        %2305 = vmatmul.mubr.bf16.gmra.mxu0 %v2270
        %v2306 = vpop.f32.mrf.mxu0
        %v2307 = vadd.f32 %v2242, %v2306
        %v2308 = vpop.f32.mrf.mxu0
        %v2309 = vpop.f32.mrf.mxu0
        %v2310 = vpop.f32.mrf.mxu0
        %2311 = vdwg.mxu0
        %v2312 = vadd.f32 %v2307, %v2155
        %v2313 = vld [vmem:[%s15] sm:$0x1]
        %v2314 = vld [vmem:[%s16] sm:$0x1]
        %v2315 = vsel %vm1224, %v2312, 0.0
        %2316 = vadd.xlane.f32.xlu0 %v2315
        %v2317 = vpop.xlane.xlu0 %2316
        %v2318 = vmul.f32 %v2317, %v2131
        %v2319 = vsub.f32 %v2312, %v2318
        %v2320 = vmul.f32 %v2319, %v2319
        %v2321 = vsel %vm1224, %v2320, 0.0
        %2322 = vadd.xlane.f32.xlu0 %v2321
        %v2323 = vpop.xlane.xlu0 %2322
        %v2324 = vmul.f32 %v2323, %v2131
        %v2325 = vadd.f32 %v2324, 1e-05
        %v2326 = vrsqrt.pop %v2325
        %v2327 = vmul.f32 %v2319, %v2326
        %v2329 = vlaneseq
        %v2330 = vshrl.u32 %v2329, 7
        %v2331 = vsub.s32 0, %v2330
        %v2332 = vrot.slane %v2313, %v2331
        %v2334 = vmul.f32 %v2327, %v2332
        %v2336 = vlaneseq
        %v2337 = vshrl.u32 %v2336, 7
        %v2338 = vsub.s32 0, %v2337
        %v2339 = vrot.slane %v2314, %v2338
        %v2341 = vadd.f32 %v2334, %v2339
        %2342 = vst.msk [vmem:[%s555] sm:$0xff] %vm1224, %v2341
        %s2343 = sand.u32 %s415, 1
        %s2344 = scalar_lea.sflag [#allocation5], %s2343
        %s2345 = sand.u32 %s415, 1
        %s2346 = smul.addr %s2345, 8
        %s2347 = scalar_lea.vmem [#allocation4], %s2346
        // Predicated region
        $region93: #{tpu_custom_call.1} parent=87 // pred_check
          %p2348 = pneg %p425
        $region94: #{tpu_custom_call.1} parent=87 // pred_check_branch
          %2350 = sbr.rel (%p2348) target = $region96
        $region95: #{tpu_custom_call.1} parent=87 // pred_region
          %s2352 = ssub.s32 128, 128
          %2353 = vsyncadd %s2344, %s2352
          %s2354 = smul.addr %s35, 2
          %s2355 = sadd.s32 %s36, %s2354
          %s2356 = smul.addr %s2355, 128
          %s2357 = scalar_lea.hbm %s17, %s2356
          %s2359 = sshll.u32 %s2347, 4
          %s2360 = int_to_ptr.vmem [resolvable:$true] %s2359
          %2362 = dma.vmem_to_hbm [thread:$0]  %s2360, 128, %s2357, %s2344
        $region96: #{tpu_custom_call.1} parent=87 // pred_fallthru
          _
      $region88: #{tpu_custom_call.1} parent=5 // pred_fallthru
        _
      %p2363 = scmp.le.s32.totalorder 2, %s26
      // Predicated region
      $region97: #{tpu_custom_call.1} parent=5 // pred_check
        %p2364 = pneg %p2363
      $region98: #{tpu_custom_call.1} parent=5 // pred_check_branch
        %2366 = sbr.rel (%p2364) target = $region100
      $region99: #{tpu_custom_call.1} parent=5 // pred_region
        %s2367 = ssub.s32 %s26, 2
        // Predicated region
        $region101: #{tpu_custom_call.1} parent=99 // pred_check
          %p2368 = pneg %p431
        $region102: #{tpu_custom_call.1} parent=99 // pred_check_branch
          %2370 = sbr.rel (%p2368) target = $region104
        $region103: #{tpu_custom_call.1} parent=99 // pred_region
          %s2371 = sand.u32 %s416, 1
          %s2372 = scalar_lea.sflag [#allocation5], %s2371
          %s2373 = sand.u32 %s416, 1
          %s2374 = smul.addr %s2373, 8
          %s2375 = scalar_lea.vmem [#allocation4], %s2374
          %2376 = dma.done %s2372, 128
        $region104: #{tpu_custom_call.1} parent=99 // pred_fallthru
          _
      $region100: #{tpu_custom_call.1} parent=5 // pred_fallthru
        _
    $region6: #{tpu_custom_call.1} parent=1 // loop_footer
      %s30 = sadd.s32 1, %s26
    $region7: #{tpu_custom_call.1} parent=1 // loop_footer_branch
      %25 = sbr.rel target = $region3
    $region8: #{tpu_custom_call.1} parent=1 // loop_exit
      _
    %2377 = vsyncpa [#allocation5], 1
    %s2378 = scalar_lea.sflag [#allocation5], 1
    %2379 = vsyncpa %s2378, 1

</llo_original>
